<compile_context>
chip_gen: v7x
topology: tpu7x:2x2x1
jax: 0.10.0
libtpu: 0.0.40
codegen_flags: <defaults>
</compile_context>

<pallas_src>
import math
from functools import partial

import jax
import jax.numpy as jnp
from jax.experimental import pallas as pl
from jax.experimental.pallas import tpu as pltpu

D_MODEL = 32
N_HEAD = 2
FFN = 64
N_LAYER = 2
LN_EPS = 1e-5
NEG_INF = -1e30   # additive key-padding bias; finite & f32-safe


# ----------------------------- Pallas kernel ---------------------------------
def _encoder_kernel(x_ref, bias_ref, wqkv_ref, bqkv_ref, wo_ref, bo_ref,
                    ln1w_ref, ln1b_ref, w1g_ref, b1g_ref, w2_ref, b2_ref,
                    ln2w_ref, ln2b_ref, o_ref, *,
                    n_layer, n_head, d_model, ffn, b_blk, seq):
    d_head = d_model // n_head
    scale = 1.0 / math.sqrt(d_head)
    n = b_blk * seq

    x = x_ref[...].astype(jnp.float32).reshape(n, d_model)     # (N, D) activation slab
    kbias = bias_ref[...].astype(jnp.float32)[:, None, :]      # (B_blk, 1, S)

    def layer_norm(t, w, b):
        mu = jnp.mean(t, axis=-1, keepdims=True)
        var = jnp.mean((t - mu) ** 2, axis=-1, keepdims=True)
        return (t - mu) * jax.lax.rsqrt(var + LN_EPS) * w + b

    for l in range(n_layer):                                   # static unroll (small L)
        # ---------------- self-attention ----------------
        qkv = jnp.dot(x, wqkv_ref[l], preferred_element_type=jnp.float32) + bqkv_ref[l]
        attn = jnp.zeros((n, d_model), jnp.float32)
        for h in range(n_head):                                # static, n_head = 2
            q = qkv[:, h * d_head:(h + 1) * d_head].reshape(b_blk, seq, d_head)
            k = qkv[:, d_model + h * d_head:
                       d_model + (h + 1) * d_head].reshape(b_blk, seq, d_head)
            v = qkv[:, 2 * d_model + h * d_head:
                       2 * d_model + (h + 1) * d_head].reshape(b_blk, seq, d_head)

            s = jnp.einsum("bqd,bkd->bqk", q, k,
                           preferred_element_type=jnp.float32) * scale + kbias
            # NOTE: a row whose keys are ALL padded gets a uniform distribution here,
            # whereas PyTorch MultiheadAttention would emit NaN (documented difference).
            s = s - jnp.max(s, axis=-1, keepdims=True)
            p = jnp.exp(s)
            denom = jnp.sum(p, axis=-1, keepdims=True)
            r = pl.reciprocal(denom, approx=True)              # EUP slot (nearly free)
            r = r * (2.0 - denom * r)                          # one Newton step -> f32 acc.
            p = p * r

            ctx = jnp.einsum("bqk,bkd->bqd", p, v,
                             preferred_element_type=jnp.float32).reshape(n, d_head)
            # fold this head straight into the output projection: no concat needed
            attn = attn + jnp.dot(ctx, wo_ref[l, h], preferred_element_type=jnp.float32)
        attn = attn + bo_ref[l]

        # ---------------- residual + LayerNorm1 ----------------
        y = layer_norm(x + attn, ln1w_ref[l], ln1b_ref[l])

        # ---------------- gated feed-forward (gate column fused into W1) ------
        hg = jnp.dot(y, w1g_ref[l], preferred_element_type=jnp.float32) + b1g_ref[l]
        g = jax.nn.sigmoid(hg[:, ffn:ffn + 1])                 # gate column (no bias)
        h1 = jnp.maximum(hg[:, :ffn] * g, 0.0)                 # relu(h * g)
        ff = jnp.dot(h1, w2_ref[l], preferred_element_type=jnp.float32) + b2_ref[l]

        # ---------------- residual + LayerNorm2 ----------------
        x = layer_norm(y + ff, ln2w_ref[l], ln2b_ref[l])

    o_ref[...] = x.reshape(b_blk, seq, d_model).astype(o_ref.dtype)


# ----------------------------- wrappers ---------------------------------------
def _pick_batch_block(B, max_blk=16):
    if B <= max_blk:
        return B
    for cand in range(max_blk, 7, -1):                 # keep (8,128)-friendly blocks
        if cand % 8 == 0 and B % cand == 0:
            return cand
    return B


def pack_params(params_list, d_model, n_head):
    """Stack per-layer params along a leading layer axis; pre-reshape / fuse for kernel."""
    d_head = d_model // n_head
    stk = lambda key: jnp.stack([p[key] for p in params_list], 0)
    return dict(
        wqkv=stk("wqkv"),                                                 # (L, D, 3D)
        bqkv=stk("bqkv"),                                                 # (L, 1, 3D)
        wo=jnp.stack([p["wo"].reshape(n_head, d_head, d_model)
                      for p in params_list], 0),                          # (L, H, Dh, D)
        bo=stk("bo"),                                                     # (L, 1, D)
        ln1w=stk("ln1w"), ln1b=stk("ln1b"),
        w1g=jnp.stack([jnp.concatenate([p["w1"], p["wg"]], axis=1)
                       for p in params_list], 0),                         # (L, D, FFN+1)
        b1g=jnp.stack([jnp.concatenate([p["b1"],
                                        jnp.zeros((1, 1), p["b1"].dtype)], axis=1)
                       for p in params_list], 0),                         # (L, 1, FFN+1)
        w2=stk("w2"), b2=stk("b2"),                                       # (L, FFN, D)/(L,1,D)
        ln2w=stk("ln2w"), ln2b=stk("ln2b"),
    )


def cm2_encoder(x, attention_mask, params_list):
    # attention_mask: (B, S), 1 = valid token, 0 = padded (PyTorch flips it internally
    # into a key_padding_mask; here it becomes an additive bias).
    B, S, D = x.shape
    L = len(params_list)
    P = pack_params(params_list, D, N_HEAD)
    ffn = P["w2"].shape[1]
    mask_bias = jnp.where(attention_mask > 0, 0.0, NEG_INF).astype(jnp.float32)

    b_blk = _pick_batch_block(B)
    grid = (B // b_blk,)

    weights = (P["wqkv"], P["bqkv"], P["wo"], P["bo"], P["ln1w"], P["ln1b"],
               P["w1g"], P["b1g"], P["w2"], P["b2"], P["ln2w"], P["ln2b"])

    def full_spec(arr):
        nd = arr.ndim
        return pl.BlockSpec(arr.shape, lambda b, _nd=nd: (0,) * _nd)

    in_specs = ([pl.BlockSpec((b_blk, S, D), lambda b: (b, 0, 0)),
                 pl.BlockSpec((b_blk, S), lambda b: (b, 0))]
                + [full_spec(w) for w in weights])

    kernel = partial(_encoder_kernel, n_layer=L, n_head=N_HEAD,
                     d_model=D, ffn=ffn, b_blk=b_blk, seq=S)

    return pl.pallas_call(
        kernel,
        out_shape=jax.ShapeDtypeStruct((B, S, D), x.dtype),
        grid=grid,
        in_specs=in_specs,
        out_specs=pl.BlockSpec((b_blk, S, D), lambda b: (b, 0, 0)),
        compiler_params=pltpu.CompilerParams(dimension_semantics=("parallel",)),
    )(x, mask_bias, *weights)


# ----------------------------- pure-JAX reference -----------------------------
def _layer_ref(x, mask_bias, p):
    B, S, D = x.shape
    H, Dh = N_HEAD, D // N_HEAD
    qkv = jnp.einsum("bsd,de->bse", x, p["wqkv"]) + p["bqkv"][0]
    q, k, v = qkv[..., :D], qkv[..., D:2 * D], qkv[..., 2 * D:]
    q = q.reshape(B, S, H, Dh)
    k = k.reshape(B, S, H, Dh)
    v = v.reshape(B, S, H, Dh)
    s = jnp.einsum("bqhd,bkhd->bhqk", q, k) / math.sqrt(Dh)
    s = s + mask_bias[:, None, None, :]
    pattn = jax.nn.softmax(s, axis=-1)
    attn = jnp.einsum("bhqk,bkhd->bqhd", pattn, v).reshape(B, S, D)
    attn = jnp.einsum("bsd,de->bse", attn, p["wo"]) + p["bo"][0]

    def ln(t, w, b):
        mu = t.mean(-1, keepdims=True)
        var = ((t - mu) ** 2).mean(-1, keepdims=True)
        return (t - mu) * jax.lax.rsqrt(var + LN_EPS) * w[0] + b[0]

    y = ln(x + attn, p["ln1w"], p["ln1b"])
    g = jax.nn.sigmoid(jnp.einsum("bsd,de->bse", y, p["wg"]))
    h1 = jnp.einsum("bsd,df->bsf", y, p["w1"]) + p["b1"][0]
    h1 = jnp.maximum(h1 * g, 0.0)
    ff = jnp.einsum("bsf,fd->bsd", h1, p["w2"]) + p["b2"][0]
    return ln(y + ff, p["ln2w"], p["ln2b"])


def cm2_encoder_ref(x, attention_mask, params_list):
    mask_bias = jnp.where(attention_mask > 0, 0.0, NEG_INF).astype(jnp.float32)
    out = x
    for p in params_list:
        out = _layer_ref(out, mask_bias, p)
    return out


# ----------------------------- param init -------------------------------------
def init_layer_params(key, d_model, ffn):
    ks = jax.random.split(key, 8)
    std = 0.05
    return dict(
        wqkv=jax.random.normal(ks[0], (d_model, 3 * d_model), jnp.float32) * std,
        bqkv=jax.random.normal(ks[1], (1, 3 * d_model), jnp.float32) * 0.01,
        wo=jax.random.normal(ks[2], (d_model, d_model), jnp.float32) * std,
        bo=jax.random.normal(ks[3], (1, d_model), jnp.float32) * 0.01,
        wg=jax.random.normal(ks[4], (d_model, 1), jnp.float32) * std,
        w1=jax.random.normal(ks[5], (d_model, ffn), jnp.float32) * std,
        b1=jax.random.normal(ks[6], (1, ffn), jnp.float32) * 0.01,
        w2=jax.random.normal(ks[7], (ffn, d_model), jnp.float32) * std,
        b2=jnp.zeros((1, d_model), jnp.float32),
        ln1w=jnp.ones((1, d_model), jnp.float32),
        ln1b=jnp.zeros((1, d_model), jnp.float32),
        ln2w=jnp.ones((1, d_model), jnp.float32),
        ln2b=jnp.zeros((1, d_model), jnp.float32),
    )


if __name__ == "__main__":
    B, S = 2, 8
    key = jax.random.PRNGKey(0)
    kx, kp = jax.random.split(key)

    x = jax.random.normal(kx, (B, S, D_MODEL), jnp.float32)
    attention_mask = jnp.ones((B, S), jnp.float32).at[1, -2:].set(0.0)  # last 2 tokens padded
    params = [init_layer_params(k, D_MODEL, FFN) for k in jax.random.split(kp, N_LAYER)]

    encoder = jax.jit(cm2_encoder)
    out = encoder(x, attention_mask, params)
    out = jax.block_until_ready(out)

    ref = cm2_encoder_ref(x, attention_mask, params)
    assert out.shape == (B, S, D_MODEL)
    assert not bool(jnp.any(jnp.isnan(out)))
    # tolerance slightly relaxed vs. 1e-4 to leave margin for the EUP approximate
    # reciprocal (Newton-refined) in the softmax denominator.
    assert bool(jnp.allclose(out, ref, atol=1e-3, rtol=1e-3)), "mismatch vs reference"

    print("KERNEL_OK")
</pallas_src>

<mosaic_0001>
module attributes {stable_mosaic.version = 11 : i64} {
  func.func @_encoder_kernel(%arg0: i32, %arg1: memref<2x8x32xf32, #tpu.memory_space<vmem>>, %arg2: memref<2x8xf32, #tpu.memory_space<vmem>>, %arg3: memref<2x32x96xf32, #tpu.memory_space<vmem>>, %arg4: memref<2x1x96xf32, #tpu.memory_space<vmem>>, %arg5: memref<2x2x16x32xf32, #tpu.memory_space<vmem>>, %arg6: memref<2x1x32xf32, #tpu.memory_space<vmem>>, %arg7: memref<2x1x32xf32, #tpu.memory_space<vmem>>, %arg8: memref<2x1x32xf32, #tpu.memory_space<vmem>>, %arg9: memref<2x32x65xf32, #tpu.memory_space<vmem>>, %arg10: memref<2x1x65xf32, #tpu.memory_space<vmem>>, %arg11: memref<2x64x32xf32, #tpu.memory_space<vmem>>, %arg12: memref<2x1x32xf32, #tpu.memory_space<vmem>>, %arg13: memref<2x1x32xf32, #tpu.memory_space<vmem>>, %arg14: memref<2x1x32xf32, #tpu.memory_space<vmem>>, %arg15: memref<2x8x32xf32, #tpu.memory_space<vmem>>) attributes {dimension_semantics = [#tpu.dimension_semantics<parallel>], iteration_bounds = array<i64: 1>, scalar_prefetch = 0 : i64, scratch_operands = 0 : i64, tpu.core_type = #tpu.core_type<tc>, window_params = [{transform_indices = @transform_0, window_bounds = array<i64: 2, 8, 32>}, {transform_indices = @transform_1, window_bounds = array<i64: 2, 8>}, {pipeline_mode = #tpu.pipeline_mode<synchronous>, transform_indices = @transform_2, window_bounds = array<i64: 2, 32, 96>}, {pipeline_mode = #tpu.pipeline_mode<synchronous>, transform_indices = @transform_3, window_bounds = array<i64: 2, 1, 96>}, {pipeline_mode = #tpu.pipeline_mode<synchronous>, transform_indices = @transform_4, window_bounds = array<i64: 2, 2, 16, 32>}, {pipeline_mode = #tpu.pipeline_mode<synchronous>, transform_indices = @transform_5, window_bounds = array<i64: 2, 1, 32>}, {pipeline_mode = #tpu.pipeline_mode<synchronous>, transform_indices = @transform_6, window_bounds = array<i64: 2, 1, 32>}, {pipeline_mode = #tpu.pipeline_mode<synchronous>, transform_indices = @transform_7, window_bounds = array<i64: 2, 1, 32>}, {pipeline_mode = #tpu.pipeline_mode<synchronous>, transform_indices = @transform_8, window_bounds = array<i64: 2, 32, 65>}, {pipeline_mode = #tpu.pipeline_mode<synchronous>, transform_indices = @transform_9, window_bounds = array<i64: 2, 1, 65>}, {pipeline_mode = #tpu.pipeline_mode<synchronous>, transform_indices = @transform_10, window_bounds = array<i64: 2, 64, 32>}, {pipeline_mode = #tpu.pipeline_mode<synchronous>, transform_indices = @transform_11, window_bounds = array<i64: 2, 1, 32>}, {pipeline_mode = #tpu.pipeline_mode<synchronous>, transform_indices = @transform_12, window_bounds = array<i64: 2, 1, 32>}, {pipeline_mode = #tpu.pipeline_mode<synchronous>, transform_indices = @transform_13, window_bounds = array<i64: 2, 1, 32>}, {transform_indices = @transform_14, window_bounds = array<i64: 2, 8, 32>}]} {
    %c0 = arith.constant 0 : index
    %c0_0 = arith.constant 0 : index
    %c0_1 = arith.constant 0 : index
    %0 = vector.load %arg1[%c0, %c0_0, %c0_1] : memref<2x8x32xf32, #tpu.memory_space<vmem>>, vector<2x8x32xf32>
    %1 = vector.shape_cast %0 : vector<2x8x32xf32> to vector<16x32xf32>
    %c0_2 = arith.constant 0 : index
    %c0_3 = arith.constant 0 : index
    %2 = vector.load %arg2[%c0_2, %c0_3] : memref<2x8xf32, #tpu.memory_space<vmem>>, vector<2x8xf32>
    %3 = vector.shape_cast %2 : vector<2x8xf32> to vector<2x1x8xf32>
    %c0_4 = arith.constant 0 : index
    %c0_5 = arith.constant 0 : index
    %c0_6 = arith.constant 0 : index
    %4 = vector.load %arg3[%c0_4, %c0_5, %c0_6] : memref<2x32x96xf32, #tpu.memory_space<vmem>>, vector<1x32x96xf32>
    %5 = vector.shape_cast %4 : vector<1x32x96xf32> to vector<32x96xf32>
    %cst = arith.constant dense<0.000000e+00> : vector<16x96xf32>
    %6 = tpu.matmul %1, %5, %cst {dimension_numbers = #tpu.dot_dimension_numbers<[1], [0], [0], [1], [0, 0, 1, 1], [], []>} : vector<16x32xf32>, vector<32x96xf32>, vector<16x96xf32> -> vector<16x96xf32>
    %c0_7 = arith.constant 0 : index
    %c0_8 = arith.constant 0 : index
    %c0_9 = arith.constant 0 : index
    %7 = vector.load %arg4[%c0_7, %c0_8, %c0_9] : memref<2x1x96xf32, #tpu.memory_space<vmem>>, vector<1x1x96xf32>
    %8 = vector.shape_cast %7 : vector<1x1x96xf32> to vector<1x96xf32>
    %9 = vector.broadcast %8 : vector<1x96xf32> to vector<16x96xf32>
    %10 = arith.addf %6, %9 : vector<16x96xf32>
    %cst_10 = arith.constant 0.000000e+00 : f32
    %11 = vector.broadcast %cst_10 : f32 to vector<16x32xf32>
    %12 = vector.extract_strided_slice %10 {offsets = [0, 0], sizes = [16, 16], strides = [1, 1]} : vector<16x96xf32> to vector<16x16xf32>
    %13 = vector.shape_cast %12 : vector<16x16xf32> to vector<2x8x16xf32>
    %14 = vector.extract_strided_slice %10 {offsets = [0, 32], sizes = [16, 16], strides = [1, 1]} : vector<16x96xf32> to vector<16x16xf32>
    %15 = vector.shape_cast %14 : vector<16x16xf32> to vector<2x8x16xf32>
    %16 = vector.extract_strided_slice %10 {offsets = [0, 64], sizes = [16, 16], strides = [1, 1]} : vector<16x96xf32> to vector<16x16xf32>
    %17 = vector.shape_cast %16 : vector<16x16xf32> to vector<2x8x16xf32>
    "tpu.trace_start"() <{level = 10 : i32, message = "bqd,bkd->bqk"}> : () -> ()
    %cst_11 = arith.constant dense<0.000000e+00> : vector<2x8x8xf32>
    %18 = tpu.matmul %13, %15, %cst_11 {dimension_numbers = #tpu.dot_dimension_numbers<[2], [2], [1], [1], [0, 0, 0, 1, 1, 1], [0], [0]>} : vector<2x8x16xf32>, vector<2x8x16xf32>, vector<2x8x8xf32> -> vector<2x8x8xf32>
    "tpu.trace_stop"() : () -> ()
    %cst_12 = arith.constant 2.500000e-01 : f32
    %19 = vector.broadcast %cst_12 : f32 to vector<2x8x8xf32>
    %20 = arith.mulf %18, %19 : vector<2x8x8xf32>
    %21 = vector.broadcast %3 : vector<2x1x8xf32> to vector<2x8x8xf32>
    %22 = arith.addf %20, %21 : vector<2x8x8xf32>
    %cst_13 = arith.constant dense<0xFF800000> : vector<2x8xf32>
    %23 = vector.multi_reduction <maximumf>, %22, %cst_13 [2] : vector<2x8x8xf32> to vector<2x8xf32>
    %24 = vector.shape_cast %23 : vector<2x8xf32> to vector<2x8x1xf32>
    %25 = vector.broadcast %24 : vector<2x8x1xf32> to vector<2x8x8xf32>
    %26 = arith.subf %22, %25 : vector<2x8x8xf32>
    %27 = math.exp %26 : vector<2x8x8xf32>
    %cst_14 = arith.constant dense<0.000000e+00> : vector<2x8xf32>
    %28 = vector.multi_reduction <add>, %27, %cst_14 [2] : vector<2x8x8xf32> to vector<2x8xf32>
    %29 = vector.shape_cast %28 : vector<2x8xf32> to vector<2x8x1xf32>
    %30 = tpu.reciprocal %29 {approx = true} : vector<2x8x1xf32> -> vector<2x8x1xf32>
    %31 = arith.mulf %29, %30 : vector<2x8x1xf32>
    %cst_15 = arith.constant 2.000000e+00 : f32
    %32 = vector.broadcast %cst_15 : f32 to vector<2x8x1xf32>
    %33 = arith.subf %32, %31 : vector<2x8x1xf32>
    %34 = arith.mulf %30, %33 : vector<2x8x1xf32>
    %35 = vector.broadcast %34 : vector<2x8x1xf32> to vector<2x8x8xf32>
    %36 = arith.mulf %27, %35 : vector<2x8x8xf32>
    "tpu.trace_start"() <{level = 10 : i32, message = "bqk,bkd->bqd"}> : () -> ()
    %cst_16 = arith.constant dense<0.000000e+00> : vector<2x8x16xf32>
    %37 = tpu.matmul %36, %17, %cst_16 {dimension_numbers = #tpu.dot_dimension_numbers<[2], [1], [1], [2], [0, 0, 0, 1, 1, 2], [0], [0]>} : vector<2x8x8xf32>, vector<2x8x16xf32>, vector<2x8x16xf32> -> vector<2x8x16xf32>
    "tpu.trace_stop"() : () -> ()
    %38 = vector.shape_cast %37 : vector<2x8x16xf32> to vector<16x16xf32>
    %c0_17 = arith.constant 0 : index
    %c0_18 = arith.constant 0 : index
    %c0_19 = arith.constant 0 : index
    %c0_20 = arith.constant 0 : index
    %39 = vector.load %arg5[%c0_17, %c0_18, %c0_19, %c0_20] : memref<2x2x16x32xf32, #tpu.memory_space<vmem>>, vector<1x1x16x32xf32>
    %40 = vector.shape_cast %39 : vector<1x1x16x32xf32> to vector<16x32xf32>
    %cst_21 = arith.constant dense<0.000000e+00> : vector<16x32xf32>
    %41 = tpu.matmul %38, %40, %cst_21 {dimension_numbers = #tpu.dot_dimension_numbers<[1], [0], [0], [1], [0, 0, 1, 1], [], []>} : vector<16x16xf32>, vector<16x32xf32>, vector<16x32xf32> -> vector<16x32xf32>
    %42 = arith.addf %11, %41 : vector<16x32xf32>
    %43 = vector.extract_strided_slice %10 {offsets = [0, 16], sizes = [16, 16], strides = [1, 1]} : vector<16x96xf32> to vector<16x16xf32>
    %44 = vector.shape_cast %43 : vector<16x16xf32> to vector<2x8x16xf32>
    %45 = vector.extract_strided_slice %10 {offsets = [0, 48], sizes = [16, 16], strides = [1, 1]} : vector<16x96xf32> to vector<16x16xf32>
    %46 = vector.shape_cast %45 : vector<16x16xf32> to vector<2x8x16xf32>
    %47 = vector.extract_strided_slice %10 {offsets = [0, 80], sizes = [16, 16], strides = [1, 1]} : vector<16x96xf32> to vector<16x16xf32>
    %48 = vector.shape_cast %47 : vector<16x16xf32> to vector<2x8x16xf32>
    "tpu.trace_start"() <{level = 10 : i32, message = "bqd,bkd->bqk"}> : () -> ()
    %cst_22 = arith.constant dense<0.000000e+00> : vector<2x8x8xf32>
    %49 = tpu.matmul %44, %46, %cst_22 {dimension_numbers = #tpu.dot_dimension_numbers<[2], [2], [1], [1], [0, 0, 0, 1, 1, 1], [0], [0]>} : vector<2x8x16xf32>, vector<2x8x16xf32>, vector<2x8x8xf32> -> vector<2x8x8xf32>
    "tpu.trace_stop"() : () -> ()
    %cst_23 = arith.constant 2.500000e-01 : f32
    %50 = vector.broadcast %cst_23 : f32 to vector<2x8x8xf32>
    %51 = arith.mulf %49, %50 : vector<2x8x8xf32>
    %52 = vector.broadcast %3 : vector<2x1x8xf32> to vector<2x8x8xf32>
    %53 = arith.addf %51, %52 : vector<2x8x8xf32>
    %cst_24 = arith.constant dense<0xFF800000> : vector<2x8xf32>
    %54 = vector.multi_reduction <maximumf>, %53, %cst_24 [2] : vector<2x8x8xf32> to vector<2x8xf32>
    %55 = vector.shape_cast %54 : vector<2x8xf32> to vector<2x8x1xf32>
    %56 = vector.broadcast %55 : vector<2x8x1xf32> to vector<2x8x8xf32>
    %57 = arith.subf %53, %56 : vector<2x8x8xf32>
    %58 = math.exp %57 : vector<2x8x8xf32>
    %cst_25 = arith.constant dense<0.000000e+00> : vector<2x8xf32>
    %59 = vector.multi_reduction <add>, %58, %cst_25 [2] : vector<2x8x8xf32> to vector<2x8xf32>
    %60 = vector.shape_cast %59 : vector<2x8xf32> to vector<2x8x1xf32>
    %61 = tpu.reciprocal %60 {approx = true} : vector<2x8x1xf32> -> vector<2x8x1xf32>
    %62 = arith.mulf %60, %61 : vector<2x8x1xf32>
    %cst_26 = arith.constant 2.000000e+00 : f32
    %63 = vector.broadcast %cst_26 : f32 to vector<2x8x1xf32>
    %64 = arith.subf %63, %62 : vector<2x8x1xf32>
    %65 = arith.mulf %61, %64 : vector<2x8x1xf32>
    %66 = vector.broadcast %65 : vector<2x8x1xf32> to vector<2x8x8xf32>
    %67 = arith.mulf %58, %66 : vector<2x8x8xf32>
    "tpu.trace_start"() <{level = 10 : i32, message = "bqk,bkd->bqd"}> : () -> ()
    %cst_27 = arith.constant dense<0.000000e+00> : vector<2x8x16xf32>
    %68 = tpu.matmul %67, %48, %cst_27 {dimension_numbers = #tpu.dot_dimension_numbers<[2], [1], [1], [2], [0, 0, 0, 1, 1, 2], [0], [0]>} : vector<2x8x8xf32>, vector<2x8x16xf32>, vector<2x8x16xf32> -> vector<2x8x16xf32>
    "tpu.trace_stop"() : () -> ()
    %69 = vector.shape_cast %68 : vector<2x8x16xf32> to vector<16x16xf32>
    %c0_28 = arith.constant 0 : index
    %c1 = arith.constant 1 : index
    %c0_29 = arith.constant 0 : index
    %c0_30 = arith.constant 0 : index
    %70 = vector.load %arg5[%c0_28, %c1, %c0_29, %c0_30] : memref<2x2x16x32xf32, #tpu.memory_space<vmem>>, vector<1x1x16x32xf32>
    %71 = vector.shape_cast %70 : vector<1x1x16x32xf32> to vector<16x32xf32>
    %cst_31 = arith.constant dense<0.000000e+00> : vector<16x32xf32>
    %72 = tpu.matmul %69, %71, %cst_31 {dimension_numbers = #tpu.dot_dimension_numbers<[1], [0], [0], [1], [0, 0, 1, 1], [], []>} : vector<16x16xf32>, vector<16x32xf32>, vector<16x32xf32> -> vector<16x32xf32>
    %73 = arith.addf %42, %72 : vector<16x32xf32>
    %c0_32 = arith.constant 0 : index
    %c0_33 = arith.constant 0 : index
    %c0_34 = arith.constant 0 : index
    %74 = vector.load %arg6[%c0_32, %c0_33, %c0_34] : memref<2x1x32xf32, #tpu.memory_space<vmem>>, vector<1x1x32xf32>
    %75 = vector.shape_cast %74 : vector<1x1x32xf32> to vector<1x32xf32>
    %76 = vector.broadcast %75 : vector<1x32xf32> to vector<16x32xf32>
    %77 = arith.addf %73, %76 : vector<16x32xf32>
    %78 = arith.addf %1, %77 : vector<16x32xf32>
    %c0_35 = arith.constant 0 : index
    %c0_36 = arith.constant 0 : index
    %c0_37 = arith.constant 0 : index
    %79 = vector.load %arg7[%c0_35, %c0_36, %c0_37] : memref<2x1x32xf32, #tpu.memory_space<vmem>>, vector<1x1x32xf32>
    %80 = vector.shape_cast %79 : vector<1x1x32xf32> to vector<1x32xf32>
    %c0_38 = arith.constant 0 : index
    %c0_39 = arith.constant 0 : index
    %c0_40 = arith.constant 0 : index
    %81 = vector.load %arg8[%c0_38, %c0_39, %c0_40] : memref<2x1x32xf32, #tpu.memory_space<vmem>>, vector<1x1x32xf32>
    %82 = vector.shape_cast %81 : vector<1x1x32xf32> to vector<1x32xf32>
    %cst_41 = arith.constant dense<0.000000e+00> : vector<16xf32>
    %83 = vector.multi_reduction <add>, %78, %cst_41 [1] : vector<16x32xf32> to vector<16xf32>
    %84 = vector.shape_cast %83 : vector<16xf32> to vector<16x1xf32>
    %cst_42 = arith.constant 3.200000e+01 : f32
    %85 = vector.broadcast %cst_42 : f32 to vector<16x1xf32>
    %86 = arith.divf %84, %85 : vector<16x1xf32>
    %87 = vector.broadcast %86 : vector<16x1xf32> to vector<16x32xf32>
    %88 = arith.subf %78, %87 : vector<16x32xf32>
    %89 = arith.mulf %88, %88 : vector<16x32xf32>
    %cst_43 = arith.constant dense<0.000000e+00> : vector<16xf32>
    %90 = vector.multi_reduction <add>, %89, %cst_43 [1] : vector<16x32xf32> to vector<16xf32>
    %91 = vector.shape_cast %90 : vector<16xf32> to vector<16x1xf32>
    %cst_44 = arith.constant 3.200000e+01 : f32
    %92 = vector.broadcast %cst_44 : f32 to vector<16x1xf32>
    %93 = arith.divf %91, %92 : vector<16x1xf32>
    %94 = vector.broadcast %86 : vector<16x1xf32> to vector<16x32xf32>
    %95 = arith.subf %78, %94 : vector<16x32xf32>
    %cst_45 = arith.constant 9.99999974E-6 : f32
    %96 = vector.broadcast %cst_45 : f32 to vector<16x1xf32>
    %97 = arith.addf %93, %96 : vector<16x1xf32>
    %98 = math.rsqrt %97 : vector<16x1xf32>
    %99 = vector.broadcast %98 : vector<16x1xf32> to vector<16x32xf32>
    %100 = arith.mulf %95, %99 : vector<16x32xf32>
    %101 = vector.broadcast %80 : vector<1x32xf32> to vector<16x32xf32>
    %102 = arith.mulf %100, %101 : vector<16x32xf32>
    %103 = vector.broadcast %82 : vector<1x32xf32> to vector<16x32xf32>
    %104 = arith.addf %102, %103 : vector<16x32xf32>
    %c0_46 = arith.constant 0 : index
    %c0_47 = arith.constant 0 : index
    %c0_48 = arith.constant 0 : index
    %105 = vector.load %arg9[%c0_46, %c0_47, %c0_48] : memref<2x32x65xf32, #tpu.memory_space<vmem>>, vector<1x32x65xf32>
    %106 = vector.shape_cast %105 : vector<1x32x65xf32> to vector<32x65xf32>
    %cst_49 = arith.constant dense<0.000000e+00> : vector<16x65xf32>
    %107 = tpu.matmul %104, %106, %cst_49 {dimension_numbers = #tpu.dot_dimension_numbers<[1], [0], [0], [1], [0, 0, 1, 1], [], []>} : vector<16x32xf32>, vector<32x65xf32>, vector<16x65xf32> -> vector<16x65xf32>
    %c0_50 = arith.constant 0 : index
    %c0_51 = arith.constant 0 : index
    %c0_52 = arith.constant 0 : index
    %108 = vector.load %arg10[%c0_50, %c0_51, %c0_52] : memref<2x1x65xf32, #tpu.memory_space<vmem>>, vector<1x1x65xf32>
    %109 = vector.shape_cast %108 : vector<1x1x65xf32> to vector<1x65xf32>
    %110 = vector.broadcast %109 : vector<1x65xf32> to vector<16x65xf32>
    %111 = arith.addf %107, %110 : vector<16x65xf32>
    %112 = vector.extract_strided_slice %111 {offsets = [0, 64], sizes = [16, 1], strides = [1, 1]} : vector<16x65xf32> to vector<16x1xf32>
    %113 = arith.negf %112 : vector<16x1xf32>
    %114 = math.exp %113 : vector<16x1xf32>
    %cst_53 = arith.constant 1.000000e+00 : f32
    %115 = vector.broadcast %cst_53 : f32 to vector<16x1xf32>
    %116 = arith.addf %115, %114 : vector<16x1xf32>
    %117 = arith.divf %115, %116 : vector<16x1xf32>
    %118 = vector.extract_strided_slice %111 {offsets = [0, 0], sizes = [16, 64], strides = [1, 1]} : vector<16x65xf32> to vector<16x64xf32>
    %119 = vector.broadcast %117 : vector<16x1xf32> to vector<16x64xf32>
    %120 = arith.mulf %118, %119 : vector<16x64xf32>
    %cst_54 = arith.constant 0.000000e+00 : f32
    %121 = vector.broadcast %cst_54 : f32 to vector<16x64xf32>
    %122 = arith.maximumf %120, %121 : vector<16x64xf32>
    %c0_55 = arith.constant 0 : index
    %c0_56 = arith.constant 0 : index
    %c0_57 = arith.constant 0 : index
    %123 = vector.load %arg11[%c0_55, %c0_56, %c0_57] : memref<2x64x32xf32, #tpu.memory_space<vmem>>, vector<1x64x32xf32>
    %124 = vector.shape_cast %123 : vector<1x64x32xf32> to vector<64x32xf32>
    %cst_58 = arith.constant dense<0.000000e+00> : vector<16x32xf32>
    %125 = tpu.matmul %122, %124, %cst_58 {dimension_numbers = #tpu.dot_dimension_numbers<[1], [0], [0], [1], [0, 0, 1, 1], [], []>} : vector<16x64xf32>, vector<64x32xf32>, vector<16x32xf32> -> vector<16x32xf32>
    %c0_59 = arith.constant 0 : index
    %c0_60 = arith.constant 0 : index
    %c0_61 = arith.constant 0 : index
    %126 = vector.load %arg12[%c0_59, %c0_60, %c0_61] : memref<2x1x32xf32, #tpu.memory_space<vmem>>, vector<1x1x32xf32>
    %127 = vector.shape_cast %126 : vector<1x1x32xf32> to vector<1x32xf32>
    %128 = vector.broadcast %127 : vector<1x32xf32> to vector<16x32xf32>
    %129 = arith.addf %125, %128 : vector<16x32xf32>
    %130 = arith.addf %104, %129 : vector<16x32xf32>
    %c0_62 = arith.constant 0 : index
    %c0_63 = arith.constant 0 : index
    %c0_64 = arith.constant 0 : index
    %131 = vector.load %arg13[%c0_62, %c0_63, %c0_64] : memref<2x1x32xf32, #tpu.memory_space<vmem>>, vector<1x1x32xf32>
    %132 = vector.shape_cast %131 : vector<1x1x32xf32> to vector<1x32xf32>
    %c0_65 = arith.constant 0 : index
    %c0_66 = arith.constant 0 : index
    %c0_67 = arith.constant 0 : index
    %133 = vector.load %arg14[%c0_65, %c0_66, %c0_67] : memref<2x1x32xf32, #tpu.memory_space<vmem>>, vector<1x1x32xf32>
    %134 = vector.shape_cast %133 : vector<1x1x32xf32> to vector<1x32xf32>
    %cst_68 = arith.constant dense<0.000000e+00> : vector<16xf32>
    %135 = vector.multi_reduction <add>, %130, %cst_68 [1] : vector<16x32xf32> to vector<16xf32>
    %136 = vector.shape_cast %135 : vector<16xf32> to vector<16x1xf32>
    %cst_69 = arith.constant 3.200000e+01 : f32
    %137 = vector.broadcast %cst_69 : f32 to vector<16x1xf32>
    %138 = arith.divf %136, %137 : vector<16x1xf32>
    %139 = vector.broadcast %138 : vector<16x1xf32> to vector<16x32xf32>
    %140 = arith.subf %130, %139 : vector<16x32xf32>
    %141 = arith.mulf %140, %140 : vector<16x32xf32>
    %cst_70 = arith.constant dense<0.000000e+00> : vector<16xf32>
    %142 = vector.multi_reduction <add>, %141, %cst_70 [1] : vector<16x32xf32> to vector<16xf32>
    %143 = vector.shape_cast %142 : vector<16xf32> to vector<16x1xf32>
    %cst_71 = arith.constant 3.200000e+01 : f32
    %144 = vector.broadcast %cst_71 : f32 to vector<16x1xf32>
    %145 = arith.divf %143, %144 : vector<16x1xf32>
    %146 = vector.broadcast %138 : vector<16x1xf32> to vector<16x32xf32>
    %147 = arith.subf %130, %146 : vector<16x32xf32>
    %cst_72 = arith.constant 9.99999974E-6 : f32
    %148 = vector.broadcast %cst_72 : f32 to vector<16x1xf32>
    %149 = arith.addf %145, %148 : vector<16x1xf32>
    %150 = math.rsqrt %149 : vector<16x1xf32>
    %151 = vector.broadcast %150 : vector<16x1xf32> to vector<16x32xf32>
    %152 = arith.mulf %147, %151 : vector<16x32xf32>
    %153 = vector.broadcast %132 : vector<1x32xf32> to vector<16x32xf32>
    %154 = arith.mulf %152, %153 : vector<16x32xf32>
    %155 = vector.broadcast %134 : vector<1x32xf32> to vector<16x32xf32>
    %156 = arith.addf %154, %155 : vector<16x32xf32>
    %c1_73 = arith.constant 1 : index
    %c0_74 = arith.constant 0 : index
    %c0_75 = arith.constant 0 : index
    %157 = vector.load %arg3[%c1_73, %c0_74, %c0_75] : memref<2x32x96xf32, #tpu.memory_space<vmem>>, vector<1x32x96xf32>
    %158 = vector.shape_cast %157 : vector<1x32x96xf32> to vector<32x96xf32>
    %cst_76 = arith.constant dense<0.000000e+00> : vector<16x96xf32>
    %159 = tpu.matmul %156, %158, %cst_76 {dimension_numbers = #tpu.dot_dimension_numbers<[1], [0], [0], [1], [0, 0, 1, 1], [], []>} : vector<16x32xf32>, vector<32x96xf32>, vector<16x96xf32> -> vector<16x96xf32>
    %c1_77 = arith.constant 1 : index
    %c0_78 = arith.constant 0 : index
    %c0_79 = arith.constant 0 : index
    %160 = vector.load %arg4[%c1_77, %c0_78, %c0_79] : memref<2x1x96xf32, #tpu.memory_space<vmem>>, vector<1x1x96xf32>
    %161 = vector.shape_cast %160 : vector<1x1x96xf32> to vector<1x96xf32>
    %162 = vector.broadcast %161 : vector<1x96xf32> to vector<16x96xf32>
    %163 = arith.addf %159, %162 : vector<16x96xf32>
    %cst_80 = arith.constant 0.000000e+00 : f32
    %164 = vector.broadcast %cst_80 : f32 to vector<16x32xf32>
    %165 = vector.extract_strided_slice %163 {offsets = [0, 0], sizes = [16, 16], strides = [1, 1]} : vector<16x96xf32> to vector<16x16xf32>
    %166 = vector.shape_cast %165 : vector<16x16xf32> to vector<2x8x16xf32>
    %167 = vector.extract_strided_slice %163 {offsets = [0, 32], sizes = [16, 16], strides = [1, 1]} : vector<16x96xf32> to vector<16x16xf32>
    %168 = vector.shape_cast %167 : vector<16x16xf32> to vector<2x8x16xf32>
    %169 = vector.extract_strided_slice %163 {offsets = [0, 64], sizes = [16, 16], strides = [1, 1]} : vector<16x96xf32> to vector<16x16xf32>
    %170 = vector.shape_cast %169 : vector<16x16xf32> to vector<2x8x16xf32>
    "tpu.trace_start"() <{level = 10 : i32, message = "bqd,bkd->bqk"}> : () -> ()
    %cst_81 = arith.constant dense<0.000000e+00> : vector<2x8x8xf32>
    %171 = tpu.matmul %166, %168, %cst_81 {dimension_numbers = #tpu.dot_dimension_numbers<[2], [2], [1], [1], [0, 0, 0, 1, 1, 1], [0], [0]>} : vector<2x8x16xf32>, vector<2x8x16xf32>, vector<2x8x8xf32> -> vector<2x8x8xf32>
    "tpu.trace_stop"() : () -> ()
    %cst_82 = arith.constant 2.500000e-01 : f32
    %172 = vector.broadcast %cst_82 : f32 to vector<2x8x8xf32>
    %173 = arith.mulf %171, %172 : vector<2x8x8xf32>
    %174 = vector.broadcast %3 : vector<2x1x8xf32> to vector<2x8x8xf32>
    %175 = arith.addf %173, %174 : vector<2x8x8xf32>
    %cst_83 = arith.constant dense<0xFF800000> : vector<2x8xf32>
    %176 = vector.multi_reduction <maximumf>, %175, %cst_83 [2] : vector<2x8x8xf32> to vector<2x8xf32>
    %177 = vector.shape_cast %176 : vector<2x8xf32> to vector<2x8x1xf32>
    %178 = vector.broadcast %177 : vector<2x8x1xf32> to vector<2x8x8xf32>
    %179 = arith.subf %175, %178 : vector<2x8x8xf32>
    %180 = math.exp %179 : vector<2x8x8xf32>
    %cst_84 = arith.constant dense<0.000000e+00> : vector<2x8xf32>
    %181 = vector.multi_reduction <add>, %180, %cst_84 [2] : vector<2x8x8xf32> to vector<2x8xf32>
    %182 = vector.shape_cast %181 : vector<2x8xf32> to vector<2x8x1xf32>
    %183 = tpu.reciprocal %182 {approx = true} : vector<2x8x1xf32> -> vector<2x8x1xf32>
    %184 = arith.mulf %182, %183 : vector<2x8x1xf32>
    %cst_85 = arith.constant 2.000000e+00 : f32
    %185 = vector.broadcast %cst_85 : f32 to vector<2x8x1xf32>
    %186 = arith.subf %185, %184 : vector<2x8x1xf32>
    %187 = arith.mulf %183, %186 : vector<2x8x1xf32>
    %188 = vector.broadcast %187 : vector<2x8x1xf32> to vector<2x8x8xf32>
    %189 = arith.mulf %180, %188 : vector<2x8x8xf32>
    "tpu.trace_start"() <{level = 10 : i32, message = "bqk,bkd->bqd"}> : () -> ()
    %cst_86 = arith.constant dense<0.000000e+00> : vector<2x8x16xf32>
    %190 = tpu.matmul %189, %170, %cst_86 {dimension_numbers = #tpu.dot_dimension_numbers<[2], [1], [1], [2], [0, 0, 0, 1, 1, 2], [0], [0]>} : vector<2x8x8xf32>, vector<2x8x16xf32>, vector<2x8x16xf32> -> vector<2x8x16xf32>
    "tpu.trace_stop"() : () -> ()
    %191 = vector.shape_cast %190 : vector<2x8x16xf32> to vector<16x16xf32>
    %c1_87 = arith.constant 1 : index
    %c0_88 = arith.constant 0 : index
    %c0_89 = arith.constant 0 : index
    %c0_90 = arith.constant 0 : index
    %192 = vector.load %arg5[%c1_87, %c0_88, %c0_89, %c0_90] : memref<2x2x16x32xf32, #tpu.memory_space<vmem>>, vector<1x1x16x32xf32>
    %193 = vector.shape_cast %192 : vector<1x1x16x32xf32> to vector<16x32xf32>
    %cst_91 = arith.constant dense<0.000000e+00> : vector<16x32xf32>
    %194 = tpu.matmul %191, %193, %cst_91 {dimension_numbers = #tpu.dot_dimension_numbers<[1], [0], [0], [1], [0, 0, 1, 1], [], []>} : vector<16x16xf32>, vector<16x32xf32>, vector<16x32xf32> -> vector<16x32xf32>
    %195 = arith.addf %164, %194 : vector<16x32xf32>
    %196 = vector.extract_strided_slice %163 {offsets = [0, 16], sizes = [16, 16], strides = [1, 1]} : vector<16x96xf32> to vector<16x16xf32>
    %197 = vector.shape_cast %196 : vector<16x16xf32> to vector<2x8x16xf32>
    %198 = vector.extract_strided_slice %163 {offsets = [0, 48], sizes = [16, 16], strides = [1, 1]} : vector<16x96xf32> to vector<16x16xf32>
    %199 = vector.shape_cast %198 : vector<16x16xf32> to vector<2x8x16xf32>
    %200 = vector.extract_strided_slice %163 {offsets = [0, 80], sizes = [16, 16], strides = [1, 1]} : vector<16x96xf32> to vector<16x16xf32>
    %201 = vector.shape_cast %200 : vector<16x16xf32> to vector<2x8x16xf32>
    "tpu.trace_start"() <{level = 10 : i32, message = "bqd,bkd->bqk"}> : () -> ()
    %cst_92 = arith.constant dense<0.000000e+00> : vector<2x8x8xf32>
    %202 = tpu.matmul %197, %199, %cst_92 {dimension_numbers = #tpu.dot_dimension_numbers<[2], [2], [1], [1], [0, 0, 0, 1, 1, 1], [0], [0]>} : vector<2x8x16xf32>, vector<2x8x16xf32>, vector<2x8x8xf32> -> vector<2x8x8xf32>
    "tpu.trace_stop"() : () -> ()
    %cst_93 = arith.constant 2.500000e-01 : f32
    %203 = vector.broadcast %cst_93 : f32 to vector<2x8x8xf32>
    %204 = arith.mulf %202, %203 : vector<2x8x8xf32>
    %205 = vector.broadcast %3 : vector<2x1x8xf32> to vector<2x8x8xf32>
    %206 = arith.addf %204, %205 : vector<2x8x8xf32>
    %cst_94 = arith.constant dense<0xFF800000> : vector<2x8xf32>
    %207 = vector.multi_reduction <maximumf>, %206, %cst_94 [2] : vector<2x8x8xf32> to vector<2x8xf32>
    %208 = vector.shape_cast %207 : vector<2x8xf32> to vector<2x8x1xf32>
    %209 = vector.broadcast %208 : vector<2x8x1xf32> to vector<2x8x8xf32>
    %210 = arith.subf %206, %209 : vector<2x8x8xf32>
    %211 = math.exp %210 : vector<2x8x8xf32>
    %cst_95 = arith.constant dense<0.000000e+00> : vector<2x8xf32>
    %212 = vector.multi_reduction <add>, %211, %cst_95 [2] : vector<2x8x8xf32> to vector<2x8xf32>
    %213 = vector.shape_cast %212 : vector<2x8xf32> to vector<2x8x1xf32>
    %214 = tpu.reciprocal %213 {approx = true} : vector<2x8x1xf32> -> vector<2x8x1xf32>
    %215 = arith.mulf %213, %214 : vector<2x8x1xf32>
    %cst_96 = arith.constant 2.000000e+00 : f32
    %216 = vector.broadcast %cst_96 : f32 to vector<2x8x1xf32>
    %217 = arith.subf %216, %215 : vector<2x8x1xf32>
    %218 = arith.mulf %214, %217 : vector<2x8x1xf32>
    %219 = vector.broadcast %218 : vector<2x8x1xf32> to vector<2x8x8xf32>
    %220 = arith.mulf %211, %219 : vector<2x8x8xf32>
    "tpu.trace_start"() <{level = 10 : i32, message = "bqk,bkd->bqd"}> : () -> ()
    %cst_97 = arith.constant dense<0.000000e+00> : vector<2x8x16xf32>
    %221 = tpu.matmul %220, %201, %cst_97 {dimension_numbers = #tpu.dot_dimension_numbers<[2], [1], [1], [2], [0, 0, 0, 1, 1, 2], [0], [0]>} : vector<2x8x8xf32>, vector<2x8x16xf32>, vector<2x8x16xf32> -> vector<2x8x16xf32>
    "tpu.trace_stop"() : () -> ()
    %222 = vector.shape_cast %221 : vector<2x8x16xf32> to vector<16x16xf32>
    %c1_98 = arith.constant 1 : index
    %c1_99 = arith.constant 1 : index
    %c0_100 = arith.constant 0 : index
    %c0_101 = arith.constant 0 : index
    %223 = vector.load %arg5[%c1_98, %c1_99, %c0_100, %c0_101] : memref<2x2x16x32xf32, #tpu.memory_space<vmem>>, vector<1x1x16x32xf32>
    %224 = vector.shape_cast %223 : vector<1x1x16x32xf32> to vector<16x32xf32>
    %cst_102 = arith.constant dense<0.000000e+00> : vector<16x32xf32>
    %225 = tpu.matmul %222, %224, %cst_102 {dimension_numbers = #tpu.dot_dimension_numbers<[1], [0], [0], [1], [0, 0, 1, 1], [], []>} : vector<16x16xf32>, vector<16x32xf32>, vector<16x32xf32> -> vector<16x32xf32>
    %226 = arith.addf %195, %225 : vector<16x32xf32>
    %c1_103 = arith.constant 1 : index
    %c0_104 = arith.constant 0 : index
    %c0_105 = arith.constant 0 : index
    %227 = vector.load %arg6[%c1_103, %c0_104, %c0_105] : memref<2x1x32xf32, #tpu.memory_space<vmem>>, vector<1x1x32xf32>
    %228 = vector.shape_cast %227 : vector<1x1x32xf32> to vector<1x32xf32>
    %229 = vector.broadcast %228 : vector<1x32xf32> to vector<16x32xf32>
    %230 = arith.addf %226, %229 : vector<16x32xf32>
    %231 = arith.addf %156, %230 : vector<16x32xf32>
    %c1_106 = arith.constant 1 : index
    %c0_107 = arith.constant 0 : index
    %c0_108 = arith.constant 0 : index
    %232 = vector.load %arg7[%c1_106, %c0_107, %c0_108] : memref<2x1x32xf32, #tpu.memory_space<vmem>>, vector<1x1x32xf32>
    %233 = vector.shape_cast %232 : vector<1x1x32xf32> to vector<1x32xf32>
    %c1_109 = arith.constant 1 : index
    %c0_110 = arith.constant 0 : index
    %c0_111 = arith.constant 0 : index
    %234 = vector.load %arg8[%c1_109, %c0_110, %c0_111] : memref<2x1x32xf32, #tpu.memory_space<vmem>>, vector<1x1x32xf32>
    %235 = vector.shape_cast %234 : vector<1x1x32xf32> to vector<1x32xf32>
    %cst_112 = arith.constant dense<0.000000e+00> : vector<16xf32>
    %236 = vector.multi_reduction <add>, %231, %cst_112 [1] : vector<16x32xf32> to vector<16xf32>
    %237 = vector.shape_cast %236 : vector<16xf32> to vector<16x1xf32>
    %cst_113 = arith.constant 3.200000e+01 : f32
    %238 = vector.broadcast %cst_113 : f32 to vector<16x1xf32>
    %239 = arith.divf %237, %238 : vector<16x1xf32>
    %240 = vector.broadcast %239 : vector<16x1xf32> to vector<16x32xf32>
    %241 = arith.subf %231, %240 : vector<16x32xf32>
    %242 = arith.mulf %241, %241 : vector<16x32xf32>
    %cst_114 = arith.constant dense<0.000000e+00> : vector<16xf32>
    %243 = vector.multi_reduction <add>, %242, %cst_114 [1] : vector<16x32xf32> to vector<16xf32>
    %244 = vector.shape_cast %243 : vector<16xf32> to vector<16x1xf32>
    %cst_115 = arith.constant 3.200000e+01 : f32
    %245 = vector.broadcast %cst_115 : f32 to vector<16x1xf32>
    %246 = arith.divf %244, %245 : vector<16x1xf32>
    %247 = vector.broadcast %239 : vector<16x1xf32> to vector<16x32xf32>
    %248 = arith.subf %231, %247 : vector<16x32xf32>
    %cst_116 = arith.constant 9.99999974E-6 : f32
    %249 = vector.broadcast %cst_116 : f32 to vector<16x1xf32>
    %250 = arith.addf %246, %249 : vector<16x1xf32>
    %251 = math.rsqrt %250 : vector<16x1xf32>
    %252 = vector.broadcast %251 : vector<16x1xf32> to vector<16x32xf32>
    %253 = arith.mulf %248, %252 : vector<16x32xf32>
    %254 = vector.broadcast %233 : vector<1x32xf32> to vector<16x32xf32>
    %255 = arith.mulf %253, %254 : vector<16x32xf32>
    %256 = vector.broadcast %235 : vector<1x32xf32> to vector<16x32xf32>
    %257 = arith.addf %255, %256 : vector<16x32xf32>
    %c1_117 = arith.constant 1 : index
    %c0_118 = arith.constant 0 : index
    %c0_119 = arith.constant 0 : index
    %258 = vector.load %arg9[%c1_117, %c0_118, %c0_119] : memref<2x32x65xf32, #tpu.memory_space<vmem>>, vector<1x32x65xf32>
    %259 = vector.shape_cast %258 : vector<1x32x65xf32> to vector<32x65xf32>
    %cst_120 = arith.constant dense<0.000000e+00> : vector<16x65xf32>
    %260 = tpu.matmul %257, %259, %cst_120 {dimension_numbers = #tpu.dot_dimension_numbers<[1], [0], [0], [1], [0, 0, 1, 1], [], []>} : vector<16x32xf32>, vector<32x65xf32>, vector<16x65xf32> -> vector<16x65xf32>
    %c1_121 = arith.constant 1 : index
    %c0_122 = arith.constant 0 : index
    %c0_123 = arith.constant 0 : index
    %261 = vector.load %arg10[%c1_121, %c0_122, %c0_123] : memref<2x1x65xf32, #tpu.memory_space<vmem>>, vector<1x1x65xf32>
    %262 = vector.shape_cast %261 : vector<1x1x65xf32> to vector<1x65xf32>
    %263 = vector.broadcast %262 : vector<1x65xf32> to vector<16x65xf32>
    %264 = arith.addf %260, %263 : vector<16x65xf32>
    %265 = vector.extract_strided_slice %264 {offsets = [0, 64], sizes = [16, 1], strides = [1, 1]} : vector<16x65xf32> to vector<16x1xf32>
    %266 = arith.negf %265 : vector<16x1xf32>
    %267 = math.exp %266 : vector<16x1xf32>
    %cst_124 = arith.constant 1.000000e+00 : f32
    %268 = vector.broadcast %cst_124 : f32 to vector<16x1xf32>
    %269 = arith.addf %268, %267 : vector<16x1xf32>
    %270 = arith.divf %268, %269 : vector<16x1xf32>
    %271 = vector.extract_strided_slice %264 {offsets = [0, 0], sizes = [16, 64], strides = [1, 1]} : vector<16x65xf32> to vector<16x64xf32>
    %272 = vector.broadcast %270 : vector<16x1xf32> to vector<16x64xf32>
    %273 = arith.mulf %271, %272 : vector<16x64xf32>
    %cst_125 = arith.constant 0.000000e+00 : f32
    %274 = vector.broadcast %cst_125 : f32 to vector<16x64xf32>
    %275 = arith.maximumf %273, %274 : vector<16x64xf32>
    %c1_126 = arith.constant 1 : index
    %c0_127 = arith.constant 0 : index
    %c0_128 = arith.constant 0 : index
    %276 = vector.load %arg11[%c1_126, %c0_127, %c0_128] : memref<2x64x32xf32, #tpu.memory_space<vmem>>, vector<1x64x32xf32>
    %277 = vector.shape_cast %276 : vector<1x64x32xf32> to vector<64x32xf32>
    %cst_129 = arith.constant dense<0.000000e+00> : vector<16x32xf32>
    %278 = tpu.matmul %275, %277, %cst_129 {dimension_numbers = #tpu.dot_dimension_numbers<[1], [0], [0], [1], [0, 0, 1, 1], [], []>} : vector<16x64xf32>, vector<64x32xf32>, vector<16x32xf32> -> vector<16x32xf32>
    %c1_130 = arith.constant 1 : index
    %c0_131 = arith.constant 0 : index
    %c0_132 = arith.constant 0 : index
    %279 = vector.load %arg12[%c1_130, %c0_131, %c0_132] : memref<2x1x32xf32, #tpu.memory_space<vmem>>, vector<1x1x32xf32>
    %280 = vector.shape_cast %279 : vector<1x1x32xf32> to vector<1x32xf32>
    %281 = vector.broadcast %280 : vector<1x32xf32> to vector<16x32xf32>
    %282 = arith.addf %278, %281 : vector<16x32xf32>
    %283 = arith.addf %257, %282 : vector<16x32xf32>
    %c1_133 = arith.constant 1 : index
    %c0_134 = arith.constant 0 : index
    %c0_135 = arith.constant 0 : index
    %284 = vector.load %arg13[%c1_133, %c0_134, %c0_135] : memref<2x1x32xf32, #tpu.memory_space<vmem>>, vector<1x1x32xf32>
    %285 = vector.shape_cast %284 : vector<1x1x32xf32> to vector<1x32xf32>
    %c1_136 = arith.constant 1 : index
    %c0_137 = arith.constant 0 : index
    %c0_138 = arith.constant 0 : index
    %286 = vector.load %arg14[%c1_136, %c0_137, %c0_138] : memref<2x1x32xf32, #tpu.memory_space<vmem>>, vector<1x1x32xf32>
    %287 = vector.shape_cast %286 : vector<1x1x32xf32> to vector<1x32xf32>
    %cst_139 = arith.constant dense<0.000000e+00> : vector<16xf32>
    %288 = vector.multi_reduction <add>, %283, %cst_139 [1] : vector<16x32xf32> to vector<16xf32>
    %289 = vector.shape_cast %288 : vector<16xf32> to vector<16x1xf32>
    %cst_140 = arith.constant 3.200000e+01 : f32
    %290 = vector.broadcast %cst_140 : f32 to vector<16x1xf32>
    %291 = arith.divf %289, %290 : vector<16x1xf32>
    %292 = vector.broadcast %291 : vector<16x1xf32> to vector<16x32xf32>
    %293 = arith.subf %283, %292 : vector<16x32xf32>
    %294 = arith.mulf %293, %293 : vector<16x32xf32>
    %cst_141 = arith.constant dense<0.000000e+00> : vector<16xf32>
    %295 = vector.multi_reduction <add>, %294, %cst_141 [1] : vector<16x32xf32> to vector<16xf32>
    %296 = vector.shape_cast %295 : vector<16xf32> to vector<16x1xf32>
    %cst_142 = arith.constant 3.200000e+01 : f32
    %297 = vector.broadcast %cst_142 : f32 to vector<16x1xf32>
    %298 = arith.divf %296, %297 : vector<16x1xf32>
    %299 = vector.broadcast %291 : vector<16x1xf32> to vector<16x32xf32>
    %300 = arith.subf %283, %299 : vector<16x32xf32>
    %cst_143 = arith.constant 9.99999974E-6 : f32
    %301 = vector.broadcast %cst_143 : f32 to vector<16x1xf32>
    %302 = arith.addf %298, %301 : vector<16x1xf32>
    %303 = math.rsqrt %302 : vector<16x1xf32>
    %304 = vector.broadcast %303 : vector<16x1xf32> to vector<16x32xf32>
    %305 = arith.mulf %300, %304 : vector<16x32xf32>
    %306 = vector.broadcast %285 : vector<1x32xf32> to vector<16x32xf32>
    %307 = arith.mulf %305, %306 : vector<16x32xf32>
    %308 = vector.broadcast %287 : vector<1x32xf32> to vector<16x32xf32>
    %309 = arith.addf %307, %308 : vector<16x32xf32>
    %310 = vector.shape_cast %309 : vector<16x32xf32> to vector<2x8x32xf32>
    %c0_144 = arith.constant 0 : index
    %c0_145 = arith.constant 0 : index
    %c0_146 = arith.constant 0 : index
    %311 = vector.load %arg15[%c0_144, %c0_145, %c0_146] : memref<2x8x32xf32, #tpu.memory_space<vmem>>, vector<2x8x32xf32>
    tpu.vector_store %arg15[%c0_144, %c0_145, %c0_146], %310 {strides = array<i32>} : memref<2x8x32xf32, #tpu.memory_space<vmem>>, vector<2x8x32xf32>,
    return
  }
  func.func @transform_0(%arg0: i32) -> (i32, i32, i32) {
    %c0_i32 = arith.constant 0 : i32
    %c0_i32_0 = arith.constant 0 : i32
    %c0_i32_1 = arith.constant 0 : i32
    return %arg0, %c0_i32, %c0_i32_0 : i32, i32, i32
  }
  func.func @transform_1(%arg0: i32) -> (i32, i32) {
    %c0_i32 = arith.constant 0 : i32
    %c0_i32_0 = arith.constant 0 : i32
    return %arg0, %c0_i32 : i32, i32
  }
  func.func @transform_2(%arg0: i32) -> (i32, i32, i32) {
    %c0_i32 = arith.constant 0 : i32
    %c0_i32_0 = arith.constant 0 : i32
    %c0_i32_1 = arith.constant 0 : i32
    %c0_i32_2 = arith.constant 0 : i32
    return %c0_i32, %c0_i32_0, %c0_i32_1 : i32, i32, i32
  }
  func.func @transform_3(%arg0: i32) -> (i32, i32, i32) {
    %c0_i32 = arith.constant 0 : i32
    %c0_i32_0 = arith.constant 0 : i32
    %c0_i32_1 = arith.constant 0 : i32
    %c0_i32_2 = arith.constant 0 : i32
    return %c0_i32, %c0_i32_0, %c0_i32_1 : i32, i32, i32
  }
  func.func @transform_4(%arg0: i32) -> (i32, i32, i32, i32) {
    %c0_i32 = arith.constant 0 : i32
    %c0_i32_0 = arith.constant 0 : i32
    %c0_i32_1 = arith.constant 0 : i32
    %c0_i32_2 = arith.constant 0 : i32
    %c0_i32_3 = arith.constant 0 : i32
    return %c0_i32, %c0_i32_0, %c0_i32_1, %c0_i32_2 : i32, i32, i32, i32
  }
  func.func @transform_5(%arg0: i32) -> (i32, i32, i32) {
    %c0_i32 = arith.constant 0 : i32
    %c0_i32_0 = arith.constant 0 : i32
    %c0_i32_1 = arith.constant 0 : i32
    %c0_i32_2 = arith.constant 0 : i32
    return %c0_i32, %c0_i32_0, %c0_i32_1 : i32, i32, i32
  }
  func.func @transform_6(%arg0: i32) -> (i32, i32, i32) {
    %c0_i32 = arith.constant 0 : i32
    %c0_i32_0 = arith.constant 0 : i32
    %c0_i32_1 = arith.constant 0 : i32
    %c0_i32_2 = arith.constant 0 : i32
    return %c0_i32, %c0_i32_0, %c0_i32_1 : i32, i32, i32
  }
  func.func @transform_7(%arg0: i32) -> (i32, i32, i32) {
    %c0_i32 = arith.constant 0 : i32
    %c0_i32_0 = arith.constant 0 : i32
    %c0_i32_1 = arith.constant 0 : i32
    %c0_i32_2 = arith.constant 0 : i32
    return %c0_i32, %c0_i32_0, %c0_i32_1 : i32, i32, i32
  }
  func.func @transform_8(%arg0: i32) -> (i32, i32, i32) {
    %c0_i32 = arith.constant 0 : i32
    %c0_i32_0 = arith.constant 0 : i32
    %c0_i32_1 = arith.constant 0 : i32
    %c0_i32_2 = arith.constant 0 : i32
    return %c0_i32, %c0_i32_0, %c0_i32_1 : i32, i32, i32
  }
  func.func @transform_9(%arg0: i32) -> (i32, i32, i32) {
    %c0_i32 = arith.constant 0 : i32
    %c0_i32_0 = arith.constant 0 : i32
    %c0_i32_1 = arith.constant 0 : i32
    %c0_i32_2 = arith.constant 0 : i32
    return %c0_i32, %c0_i32_0, %c0_i32_1 : i32, i32, i32
  }
  func.func @transform_10(%arg0: i32) -> (i32, i32, i32) {
    %c0_i32 = arith.constant 0 : i32
    %c0_i32_0 = arith.constant 0 : i32
    %c0_i32_1 = arith.constant 0 : i32
    %c0_i32_2 = arith.constant 0 : i32
    return %c0_i32, %c0_i32_0, %c0_i32_1 : i32, i32, i32
  }
  func.func @transform_11(%arg0: i32) -> (i32, i32, i32) {
    %c0_i32 = arith.constant 0 : i32
    %c0_i32_0 = arith.constant 0 : i32
    %c0_i32_1 = arith.constant 0 : i32
    %c0_i32_2 = arith.constant 0 : i32
    return %c0_i32, %c0_i32_0, %c0_i32_1 : i32, i32, i32
  }
  func.func @transform_12(%arg0: i32) -> (i32, i32, i32) {
    %c0_i32 = arith.constant 0 : i32
    %c0_i32_0 = arith.constant 0 : i32
    %c0_i32_1 = arith.constant 0 : i32
    %c0_i32_2 = arith.constant 0 : i32
    return %c0_i32, %c0_i32_0, %c0_i32_1 : i32, i32, i32
  }
  func.func @transform_13(%arg0: i32) -> (i32, i32, i32) {
    %c0_i32 = arith.constant 0 : i32
    %c0_i32_0 = arith.constant 0 : i32
    %c0_i32_1 = arith.constant 0 : i32
    %c0_i32_2 = arith.constant 0 : i32
    return %c0_i32, %c0_i32_0, %c0_i32_1 : i32, i32, i32
  }
  func.func @transform_14(%arg0: i32) -> (i32, i32, i32) {
    %c0_i32 = arith.constant 0 : i32
    %c0_i32_0 = arith.constant 0 : i32
    %c0_i32_1 = arith.constant 0 : i32
    return %arg0, %c0_i32, %c0_i32_0 : i32, i32, i32
  }
}

</mosaic_0001>

<llo_original>
// kernel: cm2_encoder.1
$region0: #{cm2_encoder.1}
  #allocation0 [shape = 'u32[]', space=smem, size = 0x4, offset = 0x4, fixed_abs, tag = 'smem constant byte address 0x4 - core index']
  #allocation1 [shape = 'u32[144,128]{1,0:T(1,128)}', space=vmem, size = 0x12000, scoped, tag = 'internal scratch']
  %s0 = inlined_call_operand.vmem [shape: f32[2,8,32], index: 0, kind: input, shape index: {}]
  %s1 = inlined_call_operand.vmem [shape: f32[2,8], index: 1, kind: input, shape index: {}]
  %s2 = inlined_call_operand.vmem [shape: f32[2,32,96], index: 2, kind: input, shape index: {}]
  %s3 = inlined_call_operand.vmem [shape: f32[2,1,96], index: 3, kind: input, shape index: {}]
  %s4 = inlined_call_operand.vmem [shape: f32[2,2,16,32], index: 4, kind: input, shape index: {}]
  %s5 = inlined_call_operand.vmem [shape: f32[2,1,32], index: 5, kind: input, shape index: {}]
  %s6 = inlined_call_operand.vmem [shape: f32[2,1,32], index: 6, kind: input, shape index: {}]
  %s7 = inlined_call_operand.vmem [shape: f32[2,1,32], index: 7, kind: input, shape index: {}]
  %s8 = inlined_call_operand.vmem [shape: f32[2,32,65], index: 8, kind: input, shape index: {}]
  %s9 = inlined_call_operand.vmem [shape: f32[2,1,65], index: 9, kind: input, shape index: {}]
  %s10 = inlined_call_operand.vmem [shape: f32[2,64,32], index: 10, kind: input, shape index: {}]
  %s11 = inlined_call_operand.vmem [shape: f32[2,1,32], index: 11, kind: input, shape index: {}]
  %s12 = inlined_call_operand.vmem [shape: f32[2,1,32], index: 12, kind: input, shape index: {}]
  %s13 = inlined_call_operand.vmem [shape: f32[2,1,32], index: 13, kind: input, shape index: {}]
  %s14 = inlined_call_operand.hbm [shape: f32[2,8,32], index: 14, kind: output, shape index: {}]
  %s15 = sld [smem:[#allocation0]]
  $region66: #{cm2_encoder.1} parent=0
    _
  %s17 = ssub.s32 1, %s15
  %s18 = scalar_select 0, %s17, %s15
  $region1: #{cm2_encoder.1} parent=0
    #allocation2 [shape = 'u8[8192]{0}', space=vmem, size = 0x2000, scoped, tag = 'output window, operand 0, single buffered']
    #allocation3 [shape = 's32[1]{0}', space=sflag, size = 0x4, scoped, tag = 'scoped memory for cm2_encoder.1']
    %19 = vsyncpa [#allocation3], 0
    // Predicated region
    $region2: #{cm2_encoder.1} parent=1 // pred_check
      _
    $region3: #{cm2_encoder.1} parent=1 // pred_check_branch
      %21 = sbr.rel (0) target = $region5
    $region4: #{cm2_encoder.1} parent=1 // pred_region
      _
    $region5: #{cm2_encoder.1} parent=1 // pred_fallthru
      _
    // Predicated region
    $region6: #{cm2_encoder.1} parent=1 // pred_check
      _
    $region7: #{cm2_encoder.1} parent=1 // pred_check_branch
      %23 = sbr.rel (0) target = $region9
    $region8: #{cm2_encoder.1} parent=1 // pred_region
      _
    $region9: #{cm2_encoder.1} parent=1 // pred_fallthru
      _
    // Predicated region
    $region10: #{cm2_encoder.1} parent=1 // pred_check
      _
    $region11: #{cm2_encoder.1} parent=1 // pred_check_branch
      %25 = sbr.rel (0) target = $region13
    $region12: #{cm2_encoder.1} parent=1 // pred_region
      _
    $region13: #{cm2_encoder.1} parent=1 // pred_fallthru
      _
    // Predicated region
    $region14: #{cm2_encoder.1} parent=1 // pred_check
      _
    $region15: #{cm2_encoder.1} parent=1 // pred_check_branch
      %27 = sbr.rel (0) target = $region17
    $region16: #{cm2_encoder.1} parent=1 // pred_region
      _
    $region17: #{cm2_encoder.1} parent=1 // pred_fallthru
      _
    // Predicated region
    $region18: #{cm2_encoder.1} parent=1 // pred_check
      _
    $region19: #{cm2_encoder.1} parent=1 // pred_check_branch
      %29 = sbr.rel (0) target = $region21
    $region20: #{cm2_encoder.1} parent=1 // pred_region
      _
    $region21: #{cm2_encoder.1} parent=1 // pred_fallthru
      _
    // Predicated region
    $region22: #{cm2_encoder.1} parent=1 // pred_check
      _
    $region23: #{cm2_encoder.1} parent=1 // pred_check_branch
      %31 = sbr.rel (0) target = $region25
    $region24: #{cm2_encoder.1} parent=1 // pred_region
      _
    $region25: #{cm2_encoder.1} parent=1 // pred_fallthru
      _
    // Predicated region
    $region26: #{cm2_encoder.1} parent=1 // pred_check
      _
    $region27: #{cm2_encoder.1} parent=1 // pred_check_branch
      %33 = sbr.rel (0) target = $region29
    $region28: #{cm2_encoder.1} parent=1 // pred_region
      _
    $region29: #{cm2_encoder.1} parent=1 // pred_fallthru
      _
    // Predicated region
    $region30: #{cm2_encoder.1} parent=1 // pred_check
      _
    $region31: #{cm2_encoder.1} parent=1 // pred_check_branch
      %35 = sbr.rel (0) target = $region33
    $region32: #{cm2_encoder.1} parent=1 // pred_region
      _
    $region33: #{cm2_encoder.1} parent=1 // pred_fallthru
      _
    // Predicated region
    $region34: #{cm2_encoder.1} parent=1 // pred_check
      _
    $region35: #{cm2_encoder.1} parent=1 // pred_check_branch
      %37 = sbr.rel (0) target = $region37
    $region36: #{cm2_encoder.1} parent=1 // pred_region
      _
    $region37: #{cm2_encoder.1} parent=1 // pred_fallthru
      _
    // Predicated region
    $region38: #{cm2_encoder.1} parent=1 // pred_check
      _
    $region39: #{cm2_encoder.1} parent=1 // pred_check_branch
      %39 = sbr.rel (0) target = $region41
    $region40: #{cm2_encoder.1} parent=1 // pred_region
      _
    $region41: #{cm2_encoder.1} parent=1 // pred_fallthru
      _
    // Predicated region
    $region42: #{cm2_encoder.1} parent=1 // pred_check
      _
    $region43: #{cm2_encoder.1} parent=1 // pred_check_branch
      %41 = sbr.rel (0) target = $region45
    $region44: #{cm2_encoder.1} parent=1 // pred_region
      _
    $region45: #{cm2_encoder.1} parent=1 // pred_fallthru
      _
    // Predicated region
    $region46: #{cm2_encoder.1} parent=1 // pred_check
      _
    $region47: #{cm2_encoder.1} parent=1 // pred_check_branch
      %43 = sbr.rel (0) target = $region49
    $region48: #{cm2_encoder.1} parent=1 // pred_region
      _
    $region49: #{cm2_encoder.1} parent=1 // pred_fallthru
      _
    // Predicated region
    $region50: #{cm2_encoder.1} parent=1 // pred_check
      _
    $region51: #{cm2_encoder.1} parent=1 // pred_check_branch
      %45 = sbr.rel (0) target = $region53
    $region52: #{cm2_encoder.1} parent=1 // pred_region
      _
    $region53: #{cm2_encoder.1} parent=1 // pred_fallthru
      _
    // Predicated region
    $region54: #{cm2_encoder.1} parent=1 // pred_check
      _
    $region55: #{cm2_encoder.1} parent=1 // pred_check_branch
      %47 = sbr.rel (0) target = $region57
    $region56: #{cm2_encoder.1} parent=1 // pred_region
      _
    $region57: #{cm2_encoder.1} parent=1 // pred_fallthru
      _
    %v48 = vld [vmem:[%s0] sm:$0xff]
    %v49 = vld [vmem:[%s0 + $0x8] sm:$0xff]
    %v50 = vld [vmem:[%s1] sm:$0x3]
    %v53 = vunpack.c.l.s4 1966171168
    %v54 = vunpack.c.0.s8 %v53
    %v55 = vlaneseq
    %v56 = vshrl.u32 %v55, 7
    %v57 = vsub.s32 %v54, %v56
    %v58 = vrot.slane %v50, %v57
    %v59 = vcombine.high %v58, %v58
    %v61 = vunpack.c.l.s4 1966171168
    %v62 = vunpack.c.0.s8 %v61
    %v63 = vlaneseq
    %v64 = vshrl.u32 %v63, 7
    %v65 = vsub.s32 %v62, %v64
    %v66 = vrot.slane %v58, %v65
    %v68 = vunpack.c.l.s4 1966171168
    %v69 = vunpack.c.0.s8 %v68
    %v70 = vlaneseq
    %v71 = vshrl.u32 %v70, 7
    %v72 = vsub.s32 %v69, %v71
    %v73 = vrot.slane %v59, %v72
    %v74 = vld [vmem:[%s2] sm:$0xff]
    %v75 = vld [vmem:[%s2 + $0x8] sm:$0xff]
    %v76 = vld [vmem:[%s2 + $0x10] sm:$0xff]
    %v77 = vld [vmem:[%s2 + $0x18] sm:$0xff]
    %v78 = vld [vmem:[%s3] sm:$0x1]
    %v80 = vlaneseq
    %v81 = vshrl.u32 %v80, 7
    %v82 = vsub.s32 0, %v81
    %v83 = vrot.slane %v78, %v82
    %vm85 = vcmask 261120
    %v87 = vsel %vm85, %v48, 0
    %v90 = vsel %vm85, %v49, 0
    %92 = vmatprep.subr.mxu0 0.0
    %93 = vmatpush1.msra.mxu0 %v74
    %94 = vmatprep.subr.mxu0 0.0
    %95 = vmatpush1.msra.mxu0 %v75
    %96 = vmatprep.subr.mxu0 0.0
    %97 = vmatpush1.msra.mxu0 %v76
    %98 = vmatprep.subr.mxu0 0.0
    %99 = vmatpush1.msra.mxu0 %v77
    %100 = vmatprep.subr.mxu0 0.0
    %101 = vmatpush1.msra.mxu0 0.0
    %102 = vmatprep.subr.mxu0 0.0
    %103 = vmatpush1.msra.mxu0 0.0
    %104 = vmatprep.subr.mxu0 0.0
    %105 = vmatpush1.msra.mxu0 0.0
    %106 = vmatprep.subr.mxu0 0.0
    %107 = vmatpush1.msra.mxu0 0.0
    %108 = vmatprep.subr.mxu0 0.0
    %109 = vmatpush1.msra.mxu0 0.0
    %110 = vmatprep.subr.mxu0 0.0
    %111 = vmatpush1.msra.mxu0 0.0
    %112 = vmatprep.subr.mxu0 0.0
    %113 = vmatpush1.msra.mxu0 0.0
    %114 = vmatprep.subr.mxu0 0.0
    %115 = vmatpush1.msra.mxu0 0.0
    %116 = vmatprep.subr.mxu0 0.0
    %117 = vmatpush1.msra.mxu0 0.0
    %118 = vmatprep.subr.mxu0 0.0
    %119 = vmatpush1.msra.mxu0 0.0
    %120 = vmatprep.subr.mxu0 0.0
    %121 = vmatpush1.msra.mxu0 0.0
    %122 = vmatprep.subr.mxu0 0.0
    %123 = vmatpush1.msra.mxu0 0.0
    %124 = vmatprep.subr.mxu0 0.0
    %125 = vmatpush1.msra.mxu0 0.0
    %126 = vmatprep.subr.mxu0 0.0
    %127 = vmatpush1.msra.mxu0 0.0
    %128 = vmatprep.subr.mxu0 0.0
    %129 = vmatpush1.msra.mxu0 0.0
    %130 = vmatprep.subr.mxu0 0.0
    %131 = vmatpush1.msra.mxu0 0.0
    %132 = vmatprep.subr.mxu0 0.0
    %133 = vmatpush1.msra.mxu0 0.0
    %134 = vmatprep.subr.mxu0 0.0
    %135 = vmatpush1.msra.mxu0 0.0
    %136 = vmatprep.subr.mxu0 0.0
    %137 = vmatpush1.msra.mxu0 0.0
    %138 = vmatprep.subr.mxu0 0.0
    %139 = vmatpush1.msra.mxu0 0.0
    %140 = vmatprep.subr.mxu0 0.0
    %141 = vmatpush1.msra.mxu0 0.0
    %142 = vmatprep.subr.mxu0 0.0
    %143 = vmatpush1.msra.mxu0 0.0
    %144 = vmatprep.subr.mxu0 0.0
    %145 = vmatpush1.msra.mxu0 0.0
    %146 = vmatprep.subr.mxu0 0.0
    %147 = vmatpush1.msra.mxu0 0.0
    %148 = vmatprep.subr.mxu0 0.0
    %149 = vmatpush1.msra.mxu0 0.0
    %150 = vmatprep.subr.mxu0 0.0
    %151 = vmatpush1.msra.mxu0 0.0
    %152 = vmatprep.subr.mxu0 0.0
    %153 = vmatpush1.msra.mxu0 0.0
    %154 = vmatprep.subr.mxu0 0.0
    %155 = vmatpush1.msra.mxu0 0.0
    %156 = vmatprep.mubr.f32.mxu0 0.0
    %157 = vmatmul.mubr.f32.gmra.mrb[0].mxu0 %v87
    %v158 = vpop.f32.mrb[0].mxu0
    %v159 = vadd.f32 %v83, %v158
    %v160 = vpop.f32.mrb[0].mxu0
    %161 = vmatprep.mubr.f32.mxu0 0.0
    %162 = vmatmul.mubr.f32.gmra.mrb[0].mxu0 %v90
    %v163 = vpop.f32.mrb[0].mxu0
    %v164 = vadd.f32 %v83, %v163
    %v165 = vpop.f32.mrb[0].mxu0
    %166 = vdwg.mxu0
    %168 = vrot.lane.b32.xlu0 %v159, 96
    %v169 = vpop.permute.xlu0 %168
    %vm170 = vcmask 130048
    %v171 = vsel %vm170, %v159, 0
    %v173 = vsel %vm170, %v169, 0
    %175 = vmatprep.subr.mxu0 0.0
    %176 = vmatpush1.xpose.msra.mxu0 %v173
    %177 = vmatprep.subr.mxu0 0.0
    %178 = vmatpush1.xpose.msra.mxu0 0.0
    %179 = vmatprep.subr.mxu0 0.0
    %180 = vmatpush1.xpose.msra.mxu0 0.0
    %181 = vmatprep.subr.mxu0 0.0
    %182 = vmatpush1.xpose.msra.mxu0 0.0
    %183 = vmatprep.subr.mxu0 0.0
    %184 = vmatpush1.xpose.msra.mxu0 0.0
    %185 = vmatprep.subr.mxu0 0.0
    %186 = vmatpush1.xpose.msra.mxu0 0.0
    %187 = vmatprep.subr.mxu0 0.0
    %188 = vmatpush1.xpose.msra.mxu0 0.0
    %189 = vmatprep.subr.mxu0 0.0
    %190 = vmatpush1.xpose.msra.mxu0 0.0
    %191 = vmatprep.subr.mxu0 0.0
    %192 = vmatpush1.xpose.msra.mxu0 0.0
    %193 = vmatprep.subr.mxu0 0.0
    %194 = vmatpush1.xpose.msra.mxu0 0.0
    %195 = vmatprep.subr.mxu0 0.0
    %196 = vmatpush1.xpose.msra.mxu0 0.0
    %197 = vmatprep.subr.mxu0 0.0
    %198 = vmatpush1.xpose.msra.mxu0 0.0
    %199 = vmatprep.subr.mxu0 0.0
    %200 = vmatpush1.xpose.msra.mxu0 0.0
    %201 = vmatprep.subr.mxu0 0.0
    %202 = vmatpush1.xpose.msra.mxu0 0.0
    %203 = vmatprep.subr.mxu0 0.0
    %204 = vmatpush1.xpose.msra.mxu0 0.0
    %205 = vmatprep.subr.mxu0 0.0
    %206 = vmatpush1.xpose.msra.mxu0 0.0
    %207 = vmatprep.subr.mxu0 0.0
    %208 = vmatpush1.xpose.msra.mxu0 0.0
    %209 = vmatprep.subr.mxu0 0.0
    %210 = vmatpush1.xpose.msra.mxu0 0.0
    %211 = vmatprep.subr.mxu0 0.0
    %212 = vmatpush1.xpose.msra.mxu0 0.0
    %213 = vmatprep.subr.mxu0 0.0
    %214 = vmatpush1.xpose.msra.mxu0 0.0
    %215 = vmatprep.subr.mxu0 0.0
    %216 = vmatpush1.xpose.msra.mxu0 0.0
    %217 = vmatprep.subr.mxu0 0.0
    %218 = vmatpush1.xpose.msra.mxu0 0.0
    %219 = vmatprep.subr.mxu0 0.0
    %220 = vmatpush1.xpose.msra.mxu0 0.0
    %221 = vmatprep.subr.mxu0 0.0
    %222 = vmatpush1.xpose.msra.mxu0 0.0
    %223 = vmatprep.subr.mxu0 0.0
    %224 = vmatpush1.xpose.msra.mxu0 0.0
    %225 = vmatprep.subr.mxu0 0.0
    %226 = vmatpush1.xpose.msra.mxu0 0.0
    %227 = vmatprep.subr.mxu0 0.0
    %228 = vmatpush1.xpose.msra.mxu0 0.0
    %229 = vmatprep.subr.mxu0 0.0
    %230 = vmatpush1.xpose.msra.mxu0 0.0
    %231 = vmatprep.subr.mxu0 0.0
    %232 = vmatpush1.xpose.msra.mxu0 0.0
    %233 = vmatprep.subr.mxu0 0.0
    %234 = vmatpush1.xpose.msra.mxu0 0.0
    %235 = vmatprep.subr.mxu0 0.0
    %236 = vmatpush1.xpose.msra.mxu0 0.0
    %237 = vmatprep.subr.mxu0 0.0
    %238 = vmatpush1.xpose.msra.mxu0 0.0
    %239 = vmatprep.mubr.f32.mxu0 0.0
    %240 = vmatmul.mubr.f32.gmra.mrb[0].mxu0 %v171
    %v241 = vpop.f32.mrb[0].mxu0
    %v242 = vadd.f32 0.0, %v241
    %v243 = vpop.f32.mrb[0].mxu0
    %244 = vdwg.mxu0
    %246 = vrot.lane.b32.xlu0 %v164, 96
    %v247 = vpop.permute.xlu0 %246
    %v248 = vsel %vm170, %v164, 0
    %v250 = vsel %vm170, %v247, 0
    %252 = vmatprep.subr.mxu0 0.0
    %253 = vmatpush1.xpose.msra.mxu0 %v250
    %254 = vmatprep.subr.mxu0 0.0
    %255 = vmatpush1.xpose.msra.mxu0 0.0
    %256 = vmatprep.subr.mxu0 0.0
    %257 = vmatpush1.xpose.msra.mxu0 0.0
    %258 = vmatprep.subr.mxu0 0.0
    %259 = vmatpush1.xpose.msra.mxu0 0.0
    %260 = vmatprep.subr.mxu0 0.0
    %261 = vmatpush1.xpose.msra.mxu0 0.0
    %262 = vmatprep.subr.mxu0 0.0
    %263 = vmatpush1.xpose.msra.mxu0 0.0
    %264 = vmatprep.subr.mxu0 0.0
    %265 = vmatpush1.xpose.msra.mxu0 0.0
    %266 = vmatprep.subr.mxu0 0.0
    %267 = vmatpush1.xpose.msra.mxu0 0.0
    %268 = vmatprep.subr.mxu0 0.0
    %269 = vmatpush1.xpose.msra.mxu0 0.0
    %270 = vmatprep.subr.mxu0 0.0
    %271 = vmatpush1.xpose.msra.mxu0 0.0
    %272 = vmatprep.subr.mxu0 0.0
    %273 = vmatpush1.xpose.msra.mxu0 0.0
    %274 = vmatprep.subr.mxu0 0.0
    %275 = vmatpush1.xpose.msra.mxu0 0.0
    %276 = vmatprep.subr.mxu0 0.0
    %277 = vmatpush1.xpose.msra.mxu0 0.0
    %278 = vmatprep.subr.mxu0 0.0
    %279 = vmatpush1.xpose.msra.mxu0 0.0
    %280 = vmatprep.subr.mxu0 0.0
    %281 = vmatpush1.xpose.msra.mxu0 0.0
    %282 = vmatprep.subr.mxu0 0.0
    %283 = vmatpush1.xpose.msra.mxu0 0.0
    %284 = vmatprep.subr.mxu0 0.0
    %285 = vmatpush1.xpose.msra.mxu0 0.0
    %286 = vmatprep.subr.mxu0 0.0
    %287 = vmatpush1.xpose.msra.mxu0 0.0
    %288 = vmatprep.subr.mxu0 0.0
    %289 = vmatpush1.xpose.msra.mxu0 0.0
    %290 = vmatprep.subr.mxu0 0.0
    %291 = vmatpush1.xpose.msra.mxu0 0.0
    %292 = vmatprep.subr.mxu0 0.0
    %293 = vmatpush1.xpose.msra.mxu0 0.0
    %294 = vmatprep.subr.mxu0 0.0
    %295 = vmatpush1.xpose.msra.mxu0 0.0
    %296 = vmatprep.subr.mxu0 0.0
    %297 = vmatpush1.xpose.msra.mxu0 0.0
    %298 = vmatprep.subr.mxu0 0.0
    %299 = vmatpush1.xpose.msra.mxu0 0.0
    %300 = vmatprep.subr.mxu0 0.0
    %301 = vmatpush1.xpose.msra.mxu0 0.0
    %302 = vmatprep.subr.mxu0 0.0
    %303 = vmatpush1.xpose.msra.mxu0 0.0
    %304 = vmatprep.subr.mxu0 0.0
    %305 = vmatpush1.xpose.msra.mxu0 0.0
    %306 = vmatprep.subr.mxu0 0.0
    %307 = vmatpush1.xpose.msra.mxu0 0.0
    %308 = vmatprep.subr.mxu0 0.0
    %309 = vmatpush1.xpose.msra.mxu0 0.0
    %310 = vmatprep.subr.mxu0 0.0
    %311 = vmatpush1.xpose.msra.mxu0 0.0
    %312 = vmatprep.subr.mxu0 0.0
    %313 = vmatpush1.xpose.msra.mxu0 0.0
    %314 = vmatprep.subr.mxu0 0.0
    %315 = vmatpush1.xpose.msra.mxu0 0.0
    %316 = vmatprep.mubr.f32.mxu0 0.0
    %317 = vmatmul.mubr.f32.gmra.mrb[0].mxu0 %v248
    %v318 = vpop.f32.mrb[0].mxu0
    %v319 = vadd.f32 0.0, %v318
    %v320 = vpop.f32.mrb[0].mxu0
    %321 = vdwg.mxu0
    %v322 = vmul.f32 %v242, 0.25
    %v323 = vmul.f32 %v319, 0.25
    %v324 = vlaneseq
    %v325 = vshrl.u32 %v324, 7
    %v326 = vsub.s32 0, %v325
    %v327 = vrot.slane %v66, %v326
    %v328 = vlaneseq
    %v329 = vshrl.u32 %v328, 7
    %v330 = vsub.s32 0, %v329
    %v331 = vrot.slane %v73, %v330
    %v334 = vadd.f32 %v322, %v327
    %v335 = vadd.f32 %v323, %v331
    %vm336 = vcmask 64512
    %v337 = vsel %vm336, %v334, -inf
    %338 = vmax.xlane.f32.xlu0 %v337
    %v339 = vpop.xlane.xlu0 %338
    %v340 = vsel %vm336, %v335, -inf
    %341 = vmax.xlane.f32.xlu0 %v340
    %v342 = vpop.xlane.xlu0 %341
    %v343 = vsub.f32 %v334, %v339
    %v344 = vsub.f32 %v335, %v342
    %v345 = vmul.f32 %v343, 1.442695
    %v346 = vpow.pop %v345
    %v347 = vmul.f32 %v344, 1.442695
    %v348 = vpow.pop %v347
    %v349 = vsel %vm336, %v346, 0.0
    %350 = vadd.xlane.f32.xlu0 %v349
    %v351 = vpop.xlane.xlu0 %350
    %v352 = vsel %vm336, %v348, 0.0
    %353 = vadd.xlane.f32.xlu0 %v352
    %v354 = vpop.xlane.xlu0 %353
    %v355 = vrcp.pop %v351
    %v356 = vrcp.pop %v354
    %v357 = vmul.f32 %v351, %v355
    %v358 = vmul.f32 %v354, %v356
    %v359 = vsub.f32 2.0, %v357
    %v360 = vsub.f32 2.0, %v358
    %v361 = vmul.f32 %v355, %v359
    %v362 = vmul.f32 %v356, %v360
    %v363 = vmul.f32 %v346, %v361
    %v364 = vmul.f32 %v348, %v362
    %365 = vrot.lane.b32.xlu0 %v159, 64
    %v366 = vpop.permute.xlu0 %365
    %v369 = vsel %vm336, %v363, 0
    %371 = vmatprep.subr.mxu0 0.0
    %372 = vmatpush1.msra.mxu0 %v366
    %373 = vmatprep.subr.mxu0 0.0
    %374 = vmatpush1.msra.mxu0 0.0
    %375 = vmatprep.subr.mxu0 0.0
    %376 = vmatpush1.msra.mxu0 0.0
    %377 = vmatprep.subr.mxu0 0.0
    %378 = vmatpush1.msra.mxu0 0.0
    %379 = vmatprep.subr.mxu0 0.0
    %380 = vmatpush1.msra.mxu0 0.0
    %381 = vmatprep.subr.mxu0 0.0
    %382 = vmatpush1.msra.mxu0 0.0
    %383 = vmatprep.subr.mxu0 0.0
    %384 = vmatpush1.msra.mxu0 0.0
    %385 = vmatprep.subr.mxu0 0.0
    %386 = vmatpush1.msra.mxu0 0.0
    %387 = vmatprep.subr.mxu0 0.0
    %388 = vmatpush1.msra.mxu0 0.0
    %389 = vmatprep.subr.mxu0 0.0
    %390 = vmatpush1.msra.mxu0 0.0
    %391 = vmatprep.subr.mxu0 0.0
    %392 = vmatpush1.msra.mxu0 0.0
    %393 = vmatprep.subr.mxu0 0.0
    %394 = vmatpush1.msra.mxu0 0.0
    %395 = vmatprep.subr.mxu0 0.0
    %396 = vmatpush1.msra.mxu0 0.0
    %397 = vmatprep.subr.mxu0 0.0
    %398 = vmatpush1.msra.mxu0 0.0
    %399 = vmatprep.subr.mxu0 0.0
    %400 = vmatpush1.msra.mxu0 0.0
    %401 = vmatprep.subr.mxu0 0.0
    %402 = vmatpush1.msra.mxu0 0.0
    %403 = vmatprep.subr.mxu0 0.0
    %404 = vmatpush1.msra.mxu0 0.0
    %405 = vmatprep.subr.mxu0 0.0
    %406 = vmatpush1.msra.mxu0 0.0
    %407 = vmatprep.subr.mxu0 0.0
    %408 = vmatpush1.msra.mxu0 0.0
    %409 = vmatprep.subr.mxu0 0.0
    %410 = vmatpush1.msra.mxu0 0.0
    %411 = vmatprep.subr.mxu0 0.0
    %412 = vmatpush1.msra.mxu0 0.0
    %413 = vmatprep.subr.mxu0 0.0
    %414 = vmatpush1.msra.mxu0 0.0
    %415 = vmatprep.subr.mxu0 0.0
    %416 = vmatpush1.msra.mxu0 0.0
    %417 = vmatprep.subr.mxu0 0.0
    %418 = vmatpush1.msra.mxu0 0.0
    %419 = vmatprep.subr.mxu0 0.0
    %420 = vmatpush1.msra.mxu0 0.0
    %421 = vmatprep.subr.mxu0 0.0
    %422 = vmatpush1.msra.mxu0 0.0
    %423 = vmatprep.subr.mxu0 0.0
    %424 = vmatpush1.msra.mxu0 0.0
    %425 = vmatprep.subr.mxu0 0.0
    %426 = vmatpush1.msra.mxu0 0.0
    %427 = vmatprep.subr.mxu0 0.0
    %428 = vmatpush1.msra.mxu0 0.0
    %429 = vmatprep.subr.mxu0 0.0
    %430 = vmatpush1.msra.mxu0 0.0
    %431 = vmatprep.subr.mxu0 0.0
    %432 = vmatpush1.msra.mxu0 0.0
    %433 = vmatprep.subr.mxu0 0.0
    %434 = vmatpush1.msra.mxu0 0.0
    %435 = vmatprep.mubr.f32.mxu0 0.0
    %436 = vmatmul.mubr.f32.gmra.mrb[0].mxu0 %v369
    %v437 = vpop.f32.mrb[0].mxu0
    %v438 = vadd.f32 0.0, %v437
    %v439 = vpop.f32.mrb[0].mxu0
    %440 = vdwg.mxu0
    %441 = vrot.lane.b32.xlu0 %v164, 64
    %v442 = vpop.permute.xlu0 %441
    %v445 = vsel %vm336, %v364, 0
    %447 = vmatprep.subr.mxu0 0.0
    %448 = vmatpush1.msra.mxu0 %v442
    %449 = vmatprep.subr.mxu0 0.0
    %450 = vmatpush1.msra.mxu0 0.0
    %451 = vmatprep.subr.mxu0 0.0
    %452 = vmatpush1.msra.mxu0 0.0
    %453 = vmatprep.subr.mxu0 0.0
    %454 = vmatpush1.msra.mxu0 0.0
    %455 = vmatprep.subr.mxu0 0.0
    %456 = vmatpush1.msra.mxu0 0.0
    %457 = vmatprep.subr.mxu0 0.0
    %458 = vmatpush1.msra.mxu0 0.0
    %459 = vmatprep.subr.mxu0 0.0
    %460 = vmatpush1.msra.mxu0 0.0
    %461 = vmatprep.subr.mxu0 0.0
    %462 = vmatpush1.msra.mxu0 0.0
    %463 = vmatprep.subr.mxu0 0.0
    %464 = vmatpush1.msra.mxu0 0.0
    %465 = vmatprep.subr.mxu0 0.0
    %466 = vmatpush1.msra.mxu0 0.0
    %467 = vmatprep.subr.mxu0 0.0
    %468 = vmatpush1.msra.mxu0 0.0
    %469 = vmatprep.subr.mxu0 0.0
    %470 = vmatpush1.msra.mxu0 0.0
    %471 = vmatprep.subr.mxu0 0.0
    %472 = vmatpush1.msra.mxu0 0.0
    %473 = vmatprep.subr.mxu0 0.0
    %474 = vmatpush1.msra.mxu0 0.0
    %475 = vmatprep.subr.mxu0 0.0
    %476 = vmatpush1.msra.mxu0 0.0
    %477 = vmatprep.subr.mxu0 0.0
    %478 = vmatpush1.msra.mxu0 0.0
    %479 = vmatprep.subr.mxu0 0.0
    %480 = vmatpush1.msra.mxu0 0.0
    %481 = vmatprep.subr.mxu0 0.0
    %482 = vmatpush1.msra.mxu0 0.0
    %483 = vmatprep.subr.mxu0 0.0
    %484 = vmatpush1.msra.mxu0 0.0
    %485 = vmatprep.subr.mxu0 0.0
    %486 = vmatpush1.msra.mxu0 0.0
    %487 = vmatprep.subr.mxu0 0.0
    %488 = vmatpush1.msra.mxu0 0.0
    %489 = vmatprep.subr.mxu0 0.0
    %490 = vmatpush1.msra.mxu0 0.0
    %491 = vmatprep.subr.mxu0 0.0
    %492 = vmatpush1.msra.mxu0 0.0
    %493 = vmatprep.subr.mxu0 0.0
    %494 = vmatpush1.msra.mxu0 0.0
    %495 = vmatprep.subr.mxu0 0.0
    %496 = vmatpush1.msra.mxu0 0.0
    %497 = vmatprep.subr.mxu0 0.0
    %498 = vmatpush1.msra.mxu0 0.0
    %499 = vmatprep.subr.mxu0 0.0
    %500 = vmatpush1.msra.mxu0 0.0
    %501 = vmatprep.subr.mxu0 0.0
    %502 = vmatpush1.msra.mxu0 0.0
    %503 = vmatprep.subr.mxu0 0.0
    %504 = vmatpush1.msra.mxu0 0.0
    %505 = vmatprep.subr.mxu0 0.0
    %506 = vmatpush1.msra.mxu0 0.0
    %507 = vmatprep.subr.mxu0 0.0
    %508 = vmatpush1.msra.mxu0 0.0
    %509 = vmatprep.subr.mxu0 0.0
    %510 = vmatpush1.msra.mxu0 0.0
    %511 = vmatprep.mubr.f32.mxu0 0.0
    %512 = vmatmul.mubr.f32.gmra.mrb[0].mxu0 %v445
    %v513 = vpop.f32.mrb[0].mxu0
    %v514 = vadd.f32 0.0, %v513
    %v515 = vpop.f32.mrb[0].mxu0
    %516 = vdwg.mxu0
    %v517 = vld [vmem:[%s4] sm:$0xff]
    %v518 = vld [vmem:[%s4 + $0x8] sm:$0xff]
    %519 = vrot.lane.b32.xlu0 %v159, 112
    %v520 = vpop.permute.xlu0 %519
    %521 = vrot.lane.b32.xlu0 %v159, 80
    %v522 = vpop.permute.xlu0 %521
    %v523 = vsel %vm170, %v520, 0
    %v525 = vsel %vm170, %v522, 0
    %527 = vmatprep.subr.mxu0 0.0
    %528 = vmatpush1.xpose.msra.mxu0 %v525
    %529 = vmatprep.subr.mxu0 0.0
    %530 = vmatpush1.xpose.msra.mxu0 0.0
    %531 = vmatprep.subr.mxu0 0.0
    %532 = vmatpush1.xpose.msra.mxu0 0.0
    %533 = vmatprep.subr.mxu0 0.0
    %534 = vmatpush1.xpose.msra.mxu0 0.0
    %535 = vmatprep.subr.mxu0 0.0
    %536 = vmatpush1.xpose.msra.mxu0 0.0
    %537 = vmatprep.subr.mxu0 0.0
    %538 = vmatpush1.xpose.msra.mxu0 0.0
    %539 = vmatprep.subr.mxu0 0.0
    %540 = vmatpush1.xpose.msra.mxu0 0.0
    %541 = vmatprep.subr.mxu0 0.0
    %542 = vmatpush1.xpose.msra.mxu0 0.0
    %543 = vmatprep.subr.mxu0 0.0
    %544 = vmatpush1.xpose.msra.mxu0 0.0
    %545 = vmatprep.subr.mxu0 0.0
    %546 = vmatpush1.xpose.msra.mxu0 0.0
    %547 = vmatprep.subr.mxu0 0.0
    %548 = vmatpush1.xpose.msra.mxu0 0.0
    %549 = vmatprep.subr.mxu0 0.0
    %550 = vmatpush1.xpose.msra.mxu0 0.0
    %551 = vmatprep.subr.mxu0 0.0
    %552 = vmatpush1.xpose.msra.mxu0 0.0
    %553 = vmatprep.subr.mxu0 0.0
    %554 = vmatpush1.xpose.msra.mxu0 0.0
    %555 = vmatprep.subr.mxu0 0.0
    %556 = vmatpush1.xpose.msra.mxu0 0.0
    %557 = vmatprep.subr.mxu0 0.0
    %558 = vmatpush1.xpose.msra.mxu0 0.0
    %559 = vmatprep.subr.mxu0 0.0
    %560 = vmatpush1.xpose.msra.mxu0 0.0
    %561 = vmatprep.subr.mxu0 0.0
    %562 = vmatpush1.xpose.msra.mxu0 0.0
    %563 = vmatprep.subr.mxu0 0.0
    %564 = vmatpush1.xpose.msra.mxu0 0.0
    %565 = vmatprep.subr.mxu0 0.0
    %566 = vmatpush1.xpose.msra.mxu0 0.0
    %567 = vmatprep.subr.mxu0 0.0
    %568 = vmatpush1.xpose.msra.mxu0 0.0
    %569 = vmatprep.subr.mxu0 0.0
    %570 = vmatpush1.xpose.msra.mxu0 0.0
    %571 = vmatprep.subr.mxu0 0.0
    %572 = vmatpush1.xpose.msra.mxu0 0.0
    %573 = vmatprep.subr.mxu0 0.0
    %574 = vmatpush1.xpose.msra.mxu0 0.0
    %575 = vmatprep.subr.mxu0 0.0
    %576 = vmatpush1.xpose.msra.mxu0 0.0
    %577 = vmatprep.subr.mxu0 0.0
    %578 = vmatpush1.xpose.msra.mxu0 0.0
    %579 = vmatprep.subr.mxu0 0.0
    %580 = vmatpush1.xpose.msra.mxu0 0.0
    %581 = vmatprep.subr.mxu0 0.0
    %582 = vmatpush1.xpose.msra.mxu0 0.0
    %583 = vmatprep.subr.mxu0 0.0
    %584 = vmatpush1.xpose.msra.mxu0 0.0
    %585 = vmatprep.subr.mxu0 0.0
    %586 = vmatpush1.xpose.msra.mxu0 0.0
    %587 = vmatprep.subr.mxu0 0.0
    %588 = vmatpush1.xpose.msra.mxu0 0.0
    %589 = vmatprep.subr.mxu0 0.0
    %590 = vmatpush1.xpose.msra.mxu0 0.0
    %591 = vmatprep.mubr.f32.mxu0 0.0
    %592 = vmatmul.mubr.f32.gmra.mrb[0].mxu0 %v523
    %v593 = vpop.f32.mrb[0].mxu0
    %v594 = vadd.f32 0.0, %v593
    %v595 = vpop.f32.mrb[0].mxu0
    %596 = vdwg.mxu0
    %597 = vrot.lane.b32.xlu0 %v164, 112
    %v598 = vpop.permute.xlu0 %597
    %599 = vrot.lane.b32.xlu0 %v164, 80
    %v600 = vpop.permute.xlu0 %599
    %v601 = vsel %vm170, %v598, 0
    %v603 = vsel %vm170, %v600, 0
    %605 = vmatprep.subr.mxu0 0.0
    %606 = vmatpush1.xpose.msra.mxu0 %v603
    %607 = vmatprep.subr.mxu0 0.0
    %608 = vmatpush1.xpose.msra.mxu0 0.0
    %609 = vmatprep.subr.mxu0 0.0
    %610 = vmatpush1.xpose.msra.mxu0 0.0
    %611 = vmatprep.subr.mxu0 0.0
    %612 = vmatpush1.xpose.msra.mxu0 0.0
    %613 = vmatprep.subr.mxu0 0.0
    %614 = vmatpush1.xpose.msra.mxu0 0.0
    %615 = vmatprep.subr.mxu0 0.0
    %616 = vmatpush1.xpose.msra.mxu0 0.0
    %617 = vmatprep.subr.mxu0 0.0
    %618 = vmatpush1.xpose.msra.mxu0 0.0
    %619 = vmatprep.subr.mxu0 0.0
    %620 = vmatpush1.xpose.msra.mxu0 0.0
    %621 = vmatprep.subr.mxu0 0.0
    %622 = vmatpush1.xpose.msra.mxu0 0.0
    %623 = vmatprep.subr.mxu0 0.0
    %624 = vmatpush1.xpose.msra.mxu0 0.0
    %625 = vmatprep.subr.mxu0 0.0
    %626 = vmatpush1.xpose.msra.mxu0 0.0
    %627 = vmatprep.subr.mxu0 0.0
    %628 = vmatpush1.xpose.msra.mxu0 0.0
    %629 = vmatprep.subr.mxu0 0.0
    %630 = vmatpush1.xpose.msra.mxu0 0.0
    %631 = vmatprep.subr.mxu0 0.0
    %632 = vmatpush1.xpose.msra.mxu0 0.0
    %633 = vmatprep.subr.mxu0 0.0
    %634 = vmatpush1.xpose.msra.mxu0 0.0
    %635 = vmatprep.subr.mxu0 0.0
    %636 = vmatpush1.xpose.msra.mxu0 0.0
    %637 = vmatprep.subr.mxu0 0.0
    %638 = vmatpush1.xpose.msra.mxu0 0.0
    %639 = vmatprep.subr.mxu0 0.0
    %640 = vmatpush1.xpose.msra.mxu0 0.0
    %641 = vmatprep.subr.mxu0 0.0
    %642 = vmatpush1.xpose.msra.mxu0 0.0
    %643 = vmatprep.subr.mxu0 0.0
    %644 = vmatpush1.xpose.msra.mxu0 0.0
    %645 = vmatprep.subr.mxu0 0.0
    %646 = vmatpush1.xpose.msra.mxu0 0.0
    %647 = vmatprep.subr.mxu0 0.0
    %648 = vmatpush1.xpose.msra.mxu0 0.0
    %649 = vmatprep.subr.mxu0 0.0
    %650 = vmatpush1.xpose.msra.mxu0 0.0
    %651 = vmatprep.subr.mxu0 0.0
    %652 = vmatpush1.xpose.msra.mxu0 0.0
    %653 = vmatprep.subr.mxu0 0.0
    %654 = vmatpush1.xpose.msra.mxu0 0.0
    %655 = vmatprep.subr.mxu0 0.0
    %656 = vmatpush1.xpose.msra.mxu0 0.0
    %657 = vmatprep.subr.mxu0 0.0
    %658 = vmatpush1.xpose.msra.mxu0 0.0
    %659 = vmatprep.subr.mxu0 0.0
    %660 = vmatpush1.xpose.msra.mxu0 0.0
    %661 = vmatprep.subr.mxu0 0.0
    %662 = vmatpush1.xpose.msra.mxu0 0.0
    %663 = vmatprep.subr.mxu0 0.0
    %664 = vmatpush1.xpose.msra.mxu0 0.0
    %665 = vmatprep.subr.mxu0 0.0
    %666 = vmatpush1.xpose.msra.mxu0 0.0
    %667 = vmatprep.subr.mxu0 0.0
    %668 = vmatpush1.xpose.msra.mxu0 0.0
    %669 = vmatprep.mubr.f32.mxu0 0.0
    %670 = vmatmul.mubr.f32.gmra.mrb[0].mxu0 %v601
    %v671 = vpop.f32.mrb[0].mxu0
    %v672 = vadd.f32 0.0, %v671
    %v673 = vpop.f32.mrb[0].mxu0
    %674 = vdwg.mxu0
    %v675 = vmul.f32 %v594, 0.25
    %v676 = vmul.f32 %v672, 0.25
    %v677 = vadd.f32 %v675, %v327
    %v678 = vadd.f32 %v676, %v331
    %v679 = vsel %vm336, %v677, -inf
    %680 = vmax.xlane.f32.xlu0 %v679
    %v681 = vpop.xlane.xlu0 %680
    %v682 = vsel %vm336, %v678, -inf
    %683 = vmax.xlane.f32.xlu0 %v682
    %v684 = vpop.xlane.xlu0 %683
    %v685 = vsub.f32 %v677, %v681
    %v686 = vsub.f32 %v678, %v684
    %v687 = vmul.f32 %v685, 1.442695
    %v688 = vpow.pop %v687
    %v689 = vmul.f32 %v686, 1.442695
    %v690 = vpow.pop %v689
    %v691 = vsel %vm336, %v688, 0.0
    %692 = vadd.xlane.f32.xlu0 %v691
    %v693 = vpop.xlane.xlu0 %692
    %v694 = vsel %vm336, %v690, 0.0
    %695 = vadd.xlane.f32.xlu0 %v694
    %v696 = vpop.xlane.xlu0 %695
    %v697 = vrcp.pop %v693
    %v698 = vrcp.pop %v696
    %v699 = vmul.f32 %v693, %v697
    %v700 = vmul.f32 %v696, %v698
    %v701 = vsub.f32 2.0, %v699
    %v702 = vsub.f32 2.0, %v700
    %v703 = vmul.f32 %v697, %v701
    %v704 = vmul.f32 %v698, %v702
    %v705 = vmul.f32 %v688, %v703
    %v706 = vmul.f32 %v690, %v704
    %707 = vrot.lane.b32.xlu0 %v159, 48
    %v708 = vpop.permute.xlu0 %707
    %v711 = vsel %vm336, %v705, 0
    %713 = vmatprep.subr.mxu0 0.0
    %714 = vmatpush1.msra.mxu0 %v708
    %715 = vmatprep.subr.mxu0 0.0
    %716 = vmatpush1.msra.mxu0 0.0
    %717 = vmatprep.subr.mxu0 0.0
    %718 = vmatpush1.msra.mxu0 0.0
    %719 = vmatprep.subr.mxu0 0.0
    %720 = vmatpush1.msra.mxu0 0.0
    %721 = vmatprep.subr.mxu0 0.0
    %722 = vmatpush1.msra.mxu0 0.0
    %723 = vmatprep.subr.mxu0 0.0
    %724 = vmatpush1.msra.mxu0 0.0
    %725 = vmatprep.subr.mxu0 0.0
    %726 = vmatpush1.msra.mxu0 0.0
    %727 = vmatprep.subr.mxu0 0.0
    %728 = vmatpush1.msra.mxu0 0.0
    %729 = vmatprep.subr.mxu0 0.0
    %730 = vmatpush1.msra.mxu0 0.0
    %731 = vmatprep.subr.mxu0 0.0
    %732 = vmatpush1.msra.mxu0 0.0
    %733 = vmatprep.subr.mxu0 0.0
    %734 = vmatpush1.msra.mxu0 0.0
    %735 = vmatprep.subr.mxu0 0.0
    %736 = vmatpush1.msra.mxu0 0.0
    %737 = vmatprep.subr.mxu0 0.0
    %738 = vmatpush1.msra.mxu0 0.0
    %739 = vmatprep.subr.mxu0 0.0
    %740 = vmatpush1.msra.mxu0 0.0
    %741 = vmatprep.subr.mxu0 0.0
    %742 = vmatpush1.msra.mxu0 0.0
    %743 = vmatprep.subr.mxu0 0.0
    %744 = vmatpush1.msra.mxu0 0.0
    %745 = vmatprep.subr.mxu0 0.0
    %746 = vmatpush1.msra.mxu0 0.0
    %747 = vmatprep.subr.mxu0 0.0
    %748 = vmatpush1.msra.mxu0 0.0
    %749 = vmatprep.subr.mxu0 0.0
    %750 = vmatpush1.msra.mxu0 0.0
    %751 = vmatprep.subr.mxu0 0.0
    %752 = vmatpush1.msra.mxu0 0.0
    %753 = vmatprep.subr.mxu0 0.0
    %754 = vmatpush1.msra.mxu0 0.0
    %755 = vmatprep.subr.mxu0 0.0
    %756 = vmatpush1.msra.mxu0 0.0
    %757 = vmatprep.subr.mxu0 0.0
    %758 = vmatpush1.msra.mxu0 0.0
    %759 = vmatprep.subr.mxu0 0.0
    %760 = vmatpush1.msra.mxu0 0.0
    %761 = vmatprep.subr.mxu0 0.0
    %762 = vmatpush1.msra.mxu0 0.0
    %763 = vmatprep.subr.mxu0 0.0
    %764 = vmatpush1.msra.mxu0 0.0
    %765 = vmatprep.subr.mxu0 0.0
    %766 = vmatpush1.msra.mxu0 0.0
    %767 = vmatprep.subr.mxu0 0.0
    %768 = vmatpush1.msra.mxu0 0.0
    %769 = vmatprep.subr.mxu0 0.0
    %770 = vmatpush1.msra.mxu0 0.0
    %771 = vmatprep.subr.mxu0 0.0
    %772 = vmatpush1.msra.mxu0 0.0
    %773 = vmatprep.subr.mxu0 0.0
    %774 = vmatpush1.msra.mxu0 0.0
    %775 = vmatprep.subr.mxu0 0.0
    %776 = vmatpush1.msra.mxu0 0.0
    %777 = vmatprep.mubr.f32.mxu0 0.0
    %778 = vmatmul.mubr.f32.gmra.mrb[0].mxu0 %v711
    %v779 = vpop.f32.mrb[0].mxu0
    %v780 = vadd.f32 0.0, %v779
    %v781 = vpop.f32.mrb[0].mxu0
    %782 = vdwg.mxu0
    %783 = vrot.lane.b32.xlu0 %v164, 48
    %v784 = vpop.permute.xlu0 %783
    %v787 = vsel %vm336, %v706, 0
    %789 = vmatprep.subr.mxu0 0.0
    %790 = vmatpush1.msra.mxu0 %v784
    %791 = vmatprep.subr.mxu0 0.0
    %792 = vmatpush1.msra.mxu0 0.0
    %793 = vmatprep.subr.mxu0 0.0
    %794 = vmatpush1.msra.mxu0 0.0
    %795 = vmatprep.subr.mxu0 0.0
    %796 = vmatpush1.msra.mxu0 0.0
    %797 = vmatprep.subr.mxu0 0.0
    %798 = vmatpush1.msra.mxu0 0.0
    %799 = vmatprep.subr.mxu0 0.0
    %800 = vmatpush1.msra.mxu0 0.0
    %801 = vmatprep.subr.mxu0 0.0
    %802 = vmatpush1.msra.mxu0 0.0
    %803 = vmatprep.subr.mxu0 0.0
    %804 = vmatpush1.msra.mxu0 0.0
    %805 = vmatprep.subr.mxu0 0.0
    %806 = vmatpush1.msra.mxu0 0.0
    %807 = vmatprep.subr.mxu0 0.0
    %808 = vmatpush1.msra.mxu0 0.0
    %809 = vmatprep.subr.mxu0 0.0
    %810 = vmatpush1.msra.mxu0 0.0
    %811 = vmatprep.subr.mxu0 0.0
    %812 = vmatpush1.msra.mxu0 0.0
    %813 = vmatprep.subr.mxu0 0.0
    %814 = vmatpush1.msra.mxu0 0.0
    %815 = vmatprep.subr.mxu0 0.0
    %816 = vmatpush1.msra.mxu0 0.0
    %817 = vmatprep.subr.mxu0 0.0
    %818 = vmatpush1.msra.mxu0 0.0
    %819 = vmatprep.subr.mxu0 0.0
    %820 = vmatpush1.msra.mxu0 0.0
    %821 = vmatprep.subr.mxu0 0.0
    %822 = vmatpush1.msra.mxu0 0.0
    %823 = vmatprep.subr.mxu0 0.0
    %824 = vmatpush1.msra.mxu0 0.0
    %825 = vmatprep.subr.mxu0 0.0
    %826 = vmatpush1.msra.mxu0 0.0
    %827 = vmatprep.subr.mxu0 0.0
    %828 = vmatpush1.msra.mxu0 0.0
    %829 = vmatprep.subr.mxu0 0.0
    %830 = vmatpush1.msra.mxu0 0.0
    %831 = vmatprep.subr.mxu0 0.0
    %832 = vmatpush1.msra.mxu0 0.0
    %833 = vmatprep.subr.mxu0 0.0
    %834 = vmatpush1.msra.mxu0 0.0
    %835 = vmatprep.subr.mxu0 0.0
    %836 = vmatpush1.msra.mxu0 0.0
    %837 = vmatprep.subr.mxu0 0.0
    %838 = vmatpush1.msra.mxu0 0.0
    %839 = vmatprep.subr.mxu0 0.0
    %840 = vmatpush1.msra.mxu0 0.0
    %841 = vmatprep.subr.mxu0 0.0
    %842 = vmatpush1.msra.mxu0 0.0
    %843 = vmatprep.subr.mxu0 0.0
    %844 = vmatpush1.msra.mxu0 0.0
    %845 = vmatprep.subr.mxu0 0.0
    %846 = vmatpush1.msra.mxu0 0.0
    %847 = vmatprep.subr.mxu0 0.0
    %848 = vmatpush1.msra.mxu0 0.0
    %849 = vmatprep.subr.mxu0 0.0
    %850 = vmatpush1.msra.mxu0 0.0
    %851 = vmatprep.subr.mxu0 0.0
    %852 = vmatpush1.msra.mxu0 0.0
    %853 = vmatprep.mubr.f32.mxu0 0.0
    %854 = vmatmul.mubr.f32.gmra.mrb[0].mxu0 %v787
    %v855 = vpop.f32.mrb[0].mxu0
    %v856 = vadd.f32 0.0, %v855
    %v857 = vpop.f32.mrb[0].mxu0
    %858 = vdwg.mxu0
    %s859 = scalar_lea.vmem %s4, 16
    %v860 = vld [vmem:[%s859] sm:$0xff]
    %v861 = vld [vmem:[%s859 + $0x8] sm:$0xff]
    %v863 = vsel %vm170, %v780, 0
    %v866 = vsel %vm170, %v856, 0
    %868 = vmatprep.subr.mxu0 0.0
    %869 = vmatpush1.msra.mxu0 %v860
    %870 = vmatprep.subr.mxu0 0.0
    %871 = vmatpush1.msra.mxu0 %v861
    %872 = vmatprep.subr.mxu0 0.0
    %873 = vmatpush1.msra.mxu0 0.0
    %874 = vmatprep.subr.mxu0 0.0
    %875 = vmatpush1.msra.mxu0 0.0
    %876 = vmatprep.subr.mxu0 0.0
    %877 = vmatpush1.msra.mxu0 0.0
    %878 = vmatprep.subr.mxu0 0.0
    %879 = vmatpush1.msra.mxu0 0.0
    %880 = vmatprep.subr.mxu0 0.0
    %881 = vmatpush1.msra.mxu0 0.0
    %882 = vmatprep.subr.mxu0 0.0
    %883 = vmatpush1.msra.mxu0 0.0
    %884 = vmatprep.subr.mxu0 0.0
    %885 = vmatpush1.msra.mxu0 0.0
    %886 = vmatprep.subr.mxu0 0.0
    %887 = vmatpush1.msra.mxu0 0.0
    %888 = vmatprep.subr.mxu0 0.0
    %889 = vmatpush1.msra.mxu0 0.0
    %890 = vmatprep.subr.mxu0 0.0
    %891 = vmatpush1.msra.mxu0 0.0
    %892 = vmatprep.subr.mxu0 0.0
    %893 = vmatpush1.msra.mxu0 0.0
    %894 = vmatprep.subr.mxu0 0.0
    %895 = vmatpush1.msra.mxu0 0.0
    %896 = vmatprep.subr.mxu0 0.0
    %897 = vmatpush1.msra.mxu0 0.0
    %898 = vmatprep.subr.mxu0 0.0
    %899 = vmatpush1.msra.mxu0 0.0
    %900 = vmatprep.subr.mxu0 0.0
    %901 = vmatpush1.msra.mxu0 0.0
    %902 = vmatprep.subr.mxu0 0.0
    %903 = vmatpush1.msra.mxu0 0.0
    %904 = vmatprep.subr.mxu0 0.0
    %905 = vmatpush1.msra.mxu0 0.0
    %906 = vmatprep.subr.mxu0 0.0
    %907 = vmatpush1.msra.mxu0 0.0
    %908 = vmatprep.subr.mxu0 0.0
    %909 = vmatpush1.msra.mxu0 0.0
    %910 = vmatprep.subr.mxu0 0.0
    %911 = vmatpush1.msra.mxu0 0.0
    %912 = vmatprep.subr.mxu0 0.0
    %913 = vmatpush1.msra.mxu0 0.0
    %914 = vmatprep.subr.mxu0 0.0
    %915 = vmatpush1.msra.mxu0 0.0
    %916 = vmatprep.subr.mxu0 0.0
    %917 = vmatpush1.msra.mxu0 0.0
    %918 = vmatprep.subr.mxu0 0.0
    %919 = vmatpush1.msra.mxu0 0.0
    %920 = vmatprep.subr.mxu0 0.0
    %921 = vmatpush1.msra.mxu0 0.0
    %922 = vmatprep.subr.mxu0 0.0
    %923 = vmatpush1.msra.mxu0 0.0
    %924 = vmatprep.subr.mxu0 0.0
    %925 = vmatpush1.msra.mxu0 0.0
    %926 = vmatprep.subr.mxu0 0.0
    %927 = vmatpush1.msra.mxu0 0.0
    %928 = vmatprep.subr.mxu0 0.0
    %929 = vmatpush1.msra.mxu0 0.0
    %930 = vmatprep.subr.mxu0 0.0
    %931 = vmatpush1.msra.mxu0 0.0
    %932 = vmatprep.mubr.f32.mxu0 0.0
    %933 = vmatmul.mubr.f32.gmra.mrb[0].mxu0 %v863
    %v934 = vpop.f32.mrb[0].mxu0
    %v935 = vadd.f32 0.0, %v934
    %v936 = vpop.f32.mrb[0].mxu0
    %937 = vmatprep.mubr.f32.mxu0 0.0
    %938 = vmatmul.mubr.f32.gmra.mrb[0].mxu0 %v866
    %v939 = vpop.f32.mrb[0].mxu0
    %v940 = vadd.f32 0.0, %v939
    %v941 = vpop.f32.mrb[0].mxu0
    %942 = vdwg.mxu0
    %v944 = vsel %vm170, %v438, 0
    %v947 = vsel %vm170, %v514, 0
    %949 = vmatprep.subr.mxu0 0.0
    %950 = vmatpush1.msra.mxu0 %v517
    %951 = vmatprep.subr.mxu0 0.0
    %952 = vmatpush1.msra.mxu0 %v518
    %953 = vmatprep.subr.mxu0 0.0
    %954 = vmatpush1.msra.mxu0 0.0
    %955 = vmatprep.subr.mxu0 0.0
    %956 = vmatpush1.msra.mxu0 0.0
    %957 = vmatprep.subr.mxu0 0.0
    %958 = vmatpush1.msra.mxu0 0.0
    %959 = vmatprep.subr.mxu0 0.0
    %960 = vmatpush1.msra.mxu0 0.0
    %961 = vmatprep.subr.mxu0 0.0
    %962 = vmatpush1.msra.mxu0 0.0
    %963 = vmatprep.subr.mxu0 0.0
    %964 = vmatpush1.msra.mxu0 0.0
    %965 = vmatprep.subr.mxu0 0.0
    %966 = vmatpush1.msra.mxu0 0.0
    %967 = vmatprep.subr.mxu0 0.0
    %968 = vmatpush1.msra.mxu0 0.0
    %969 = vmatprep.subr.mxu0 0.0
    %970 = vmatpush1.msra.mxu0 0.0
    %971 = vmatprep.subr.mxu0 0.0
    %972 = vmatpush1.msra.mxu0 0.0
    %973 = vmatprep.subr.mxu0 0.0
    %974 = vmatpush1.msra.mxu0 0.0
    %975 = vmatprep.subr.mxu0 0.0
    %976 = vmatpush1.msra.mxu0 0.0
    %977 = vmatprep.subr.mxu0 0.0
    %978 = vmatpush1.msra.mxu0 0.0
    %979 = vmatprep.subr.mxu0 0.0
    %980 = vmatpush1.msra.mxu0 0.0
    %981 = vmatprep.subr.mxu0 0.0
    %982 = vmatpush1.msra.mxu0 0.0
    %983 = vmatprep.subr.mxu0 0.0
    %984 = vmatpush1.msra.mxu0 0.0
    %985 = vmatprep.subr.mxu0 0.0
    %986 = vmatpush1.msra.mxu0 0.0
    %987 = vmatprep.subr.mxu0 0.0
    %988 = vmatpush1.msra.mxu0 0.0
    %989 = vmatprep.subr.mxu0 0.0
    %990 = vmatpush1.msra.mxu0 0.0
    %991 = vmatprep.subr.mxu0 0.0
    %992 = vmatpush1.msra.mxu0 0.0
    %993 = vmatprep.subr.mxu0 0.0
    %994 = vmatpush1.msra.mxu0 0.0
    %995 = vmatprep.subr.mxu0 0.0
    %996 = vmatpush1.msra.mxu0 0.0
    %997 = vmatprep.subr.mxu0 0.0
    %998 = vmatpush1.msra.mxu0 0.0
    %999 = vmatprep.subr.mxu0 0.0
    %1000 = vmatpush1.msra.mxu0 0.0
    %1001 = vmatprep.subr.mxu0 0.0
    %1002 = vmatpush1.msra.mxu0 0.0
    %1003 = vmatprep.subr.mxu0 0.0
    %1004 = vmatpush1.msra.mxu0 0.0
    %1005 = vmatprep.subr.mxu0 0.0
    %1006 = vmatpush1.msra.mxu0 0.0
    %1007 = vmatprep.subr.mxu0 0.0
    %1008 = vmatpush1.msra.mxu0 0.0
    %1009 = vmatprep.subr.mxu0 0.0
    %1010 = vmatpush1.msra.mxu0 0.0
    %1011 = vmatprep.subr.mxu0 0.0
    %1012 = vmatpush1.msra.mxu0 0.0
    %1013 = vmatprep.mubr.f32.mxu0 0.0
    %1014 = vmatmul.mubr.f32.gmra.mrb[0].mxu0 %v944
    %v1015 = vpop.f32.mrb[0].mxu0
    %v1016 = vadd.f32 %v935, %v1015
    %v1017 = vpop.f32.mrb[0].mxu0
    %1018 = vmatprep.mubr.f32.mxu0 0.0
    %1019 = vmatmul.mubr.f32.gmra.mrb[0].mxu0 %v947
    %v1020 = vpop.f32.mrb[0].mxu0
    %v1021 = vadd.f32 %v940, %v1020
    %v1022 = vpop.f32.mrb[0].mxu0
    %1023 = vdwg.mxu0
    %v1024 = vld [vmem:[%s5] sm:$0x1]
    %v1026 = vlaneseq
    %v1027 = vshrl.u32 %v1026, 7
    %v1028 = vsub.s32 0, %v1027
    %v1029 = vrot.slane %v1024, %v1028
    %v1031 = vadd.f32 %v1016, %v1029
    %v1032 = vadd.f32 %v1021, %v1029
    %v1033 = vadd.f32 %v48, %v1031
    %v1034 = vadd.f32 %v49, %v1032
    %v1035 = vld [vmem:[%s6] sm:$0x1]
    %v1036 = vld [vmem:[%s7] sm:$0x1]
    %v1037 = vsel %vm85, %v1033, 0.0
    %1038 = vadd.xlane.f32.xlu0 %v1037
    %v1039 = vpop.xlane.xlu0 %1038
    %v1040 = vsel %vm85, %v1034, 0.0
    %1041 = vadd.xlane.f32.xlu0 %v1040
    %v1042 = vpop.xlane.xlu0 %1041
    %v1043 = vrcp.pop 32.0
    %v1044 = vmul.f32 %v1039, %v1043
    %v1045 = vmul.f32 %v1042, %v1043
    %v1046 = vsub.f32 %v1033, %v1044
    %v1047 = vsub.f32 %v1034, %v1045
    %v1048 = vmul.f32 %v1046, %v1046
    %v1049 = vmul.f32 %v1047, %v1047
    %v1050 = vsel %vm85, %v1048, 0.0
    %1051 = vadd.xlane.f32.xlu0 %v1050
    %v1052 = vpop.xlane.xlu0 %1051
    %v1053 = vsel %vm85, %v1049, 0.0
    %1054 = vadd.xlane.f32.xlu0 %v1053
    %v1055 = vpop.xlane.xlu0 %1054
    %v1056 = vmul.f32 %v1052, %v1043
    %v1057 = vmul.f32 %v1055, %v1043
    %v1058 = vadd.f32 %v1056, 1e-05
    %v1059 = vadd.f32 %v1057, 1e-05
    %v1060 = vrsqrt.pop %v1058
    %v1061 = vrsqrt.pop %v1059
    %v1062 = vmul.f32 %v1046, %v1060
    %v1063 = vmul.f32 %v1047, %v1061
    %v1065 = vlaneseq
    %v1066 = vshrl.u32 %v1065, 7
    %v1067 = vsub.s32 0, %v1066
    %v1068 = vrot.slane %v1035, %v1067
    %v1070 = vmul.f32 %v1062, %v1068
    %v1071 = vmul.f32 %v1063, %v1068
    %v1073 = vlaneseq
    %v1074 = vshrl.u32 %v1073, 7
    %v1075 = vsub.s32 0, %v1074
    %v1076 = vrot.slane %v1036, %v1075
    %v1078 = vadd.f32 %v1070, %v1076
    %v1079 = vadd.f32 %v1071, %v1076
    %v1080 = vld [vmem:[%s8] sm:$0xff]
    %v1081 = vld [vmem:[%s8 + $0x8] sm:$0xff]
    %v1082 = vld [vmem:[%s8 + $0x10] sm:$0xff]
    %v1083 = vld [vmem:[%s8 + $0x18] sm:$0xff]
    %v1084 = vld [vmem:[%s9] sm:$0x1]
    %v1086 = vlaneseq
    %v1087 = vshrl.u32 %v1086, 7
    %v1088 = vsub.s32 0, %v1087
    %v1089 = vrot.slane %v1084, %v1088
    %v1092 = vsel %vm85, %v1078, 0
    %v1095 = vsel %vm85, %v1079, 0
    %1097 = vmatprep.subr.mxu0 0.0
    %1098 = vmatpush1.msra.mxu0 %v1080
    %1099 = vmatprep.subr.mxu0 0.0
    %1100 = vmatpush1.msra.mxu0 %v1081
    %1101 = vmatprep.subr.mxu0 0.0
    %1102 = vmatpush1.msra.mxu0 %v1082
    %1103 = vmatprep.subr.mxu0 0.0
    %1104 = vmatpush1.msra.mxu0 %v1083
    %1105 = vmatprep.subr.mxu0 0.0
    %1106 = vmatpush1.msra.mxu0 0.0
    %1107 = vmatprep.subr.mxu0 0.0
    %1108 = vmatpush1.msra.mxu0 0.0
    %1109 = vmatprep.subr.mxu0 0.0
    %1110 = vmatpush1.msra.mxu0 0.0
    %1111 = vmatprep.subr.mxu0 0.0
    %1112 = vmatpush1.msra.mxu0 0.0
    %1113 = vmatprep.subr.mxu0 0.0
    %1114 = vmatpush1.msra.mxu0 0.0
    %1115 = vmatprep.subr.mxu0 0.0
    %1116 = vmatpush1.msra.mxu0 0.0
    %1117 = vmatprep.subr.mxu0 0.0
    %1118 = vmatpush1.msra.mxu0 0.0
    %1119 = vmatprep.subr.mxu0 0.0
    %1120 = vmatpush1.msra.mxu0 0.0
    %1121 = vmatprep.subr.mxu0 0.0
    %1122 = vmatpush1.msra.mxu0 0.0
    %1123 = vmatprep.subr.mxu0 0.0
    %1124 = vmatpush1.msra.mxu0 0.0
    %1125 = vmatprep.subr.mxu0 0.0
    %1126 = vmatpush1.msra.mxu0 0.0
    %1127 = vmatprep.subr.mxu0 0.0
    %1128 = vmatpush1.msra.mxu0 0.0
    %1129 = vmatprep.subr.mxu0 0.0
    %1130 = vmatpush1.msra.mxu0 0.0
    %1131 = vmatprep.subr.mxu0 0.0
    %1132 = vmatpush1.msra.mxu0 0.0
    %1133 = vmatprep.subr.mxu0 0.0
    %1134 = vmatpush1.msra.mxu0 0.0
    %1135 = vmatprep.subr.mxu0 0.0
    %1136 = vmatpush1.msra.mxu0 0.0
    %1137 = vmatprep.subr.mxu0 0.0
    %1138 = vmatpush1.msra.mxu0 0.0
    %1139 = vmatprep.subr.mxu0 0.0
    %1140 = vmatpush1.msra.mxu0 0.0
    %1141 = vmatprep.subr.mxu0 0.0
    %1142 = vmatpush1.msra.mxu0 0.0
    %1143 = vmatprep.subr.mxu0 0.0
    %1144 = vmatpush1.msra.mxu0 0.0
    %1145 = vmatprep.subr.mxu0 0.0
    %1146 = vmatpush1.msra.mxu0 0.0
    %1147 = vmatprep.subr.mxu0 0.0
    %1148 = vmatpush1.msra.mxu0 0.0
    %1149 = vmatprep.subr.mxu0 0.0
    %1150 = vmatpush1.msra.mxu0 0.0
    %1151 = vmatprep.subr.mxu0 0.0
    %1152 = vmatpush1.msra.mxu0 0.0
    %1153 = vmatprep.subr.mxu0 0.0
    %1154 = vmatpush1.msra.mxu0 0.0
    %1155 = vmatprep.subr.mxu0 0.0
    %1156 = vmatpush1.msra.mxu0 0.0
    %1157 = vmatprep.subr.mxu0 0.0
    %1158 = vmatpush1.msra.mxu0 0.0
    %1159 = vmatprep.subr.mxu0 0.0
    %1160 = vmatpush1.msra.mxu0 0.0
    %1161 = vmatprep.mubr.f32.mxu0 0.0
    %1162 = vmatmul.mubr.f32.gmra.mrb[0].mxu0 %v1092
    %v1163 = vpop.f32.mrb[0].mxu0
    %v1164 = vadd.f32 %v1089, %v1163
    %v1165 = vpop.f32.mrb[0].mxu0
    %1166 = vmatprep.mubr.f32.mxu0 0.0
    %1167 = vmatmul.mubr.f32.gmra.mrb[0].mxu0 %v1095
    %v1168 = vpop.f32.mrb[0].mxu0
    %v1169 = vadd.f32 %v1089, %v1168
    %v1170 = vpop.f32.mrb[0].mxu0
    %1171 = vdwg.mxu0
    %v1172 = vxor.u32 %v1164, 2147483648
    %v1173 = vxor.u32 %v1169, 2147483648
    %v1174 = vmul.f32 %v1172, 1.442695
    %v1175 = vpow.pop %v1174
    %v1176 = vmul.f32 %v1173, 1.442695
    %v1177 = vpow.pop %v1176
    %v1178 = vadd.f32 %v1175, 1.0
    %v1179 = vadd.f32 %v1177, 1.0
    %v1180 = vrcp.pop %v1178
    %v1181 = vmul.f32 1.0, %v1180
    %v1182 = vrcp.pop %v1179
    %v1183 = vmul.f32 1.0, %v1182
    %1185 = vset.pattern.permute.xlu0 64
    %1186 = vperm.xlu0 %1185, %v1181
    %v1187 = vpop.permute.xlu0 %1186
    %1190 = vset.pattern.permute.xlu0 64
    %1191 = vperm.xlu0 %1190, %v1183
    %v1192 = vpop.permute.xlu0 %1191
    %v1194 = vmul.f32 %v1164, %v1187
    %v1195 = vmul.f32 %v1169, %v1192
    %v1196 = vmax.f32 %v1194, 0.0
    %v1197 = vmax.f32 %v1195, 0.0
    %v1198 = vld [vmem:[%s10] sm:$0xff]
    %v1199 = vld [vmem:[%s10 + $0x8] sm:$0xff]
    %v1200 = vld [vmem:[%s10 + $0x10] sm:$0xff]
    %v1201 = vld [vmem:[%s10 + $0x18] sm:$0xff]
    %v1202 = vld [vmem:[%s10 + $0x20] sm:$0xff]
    %v1203 = vld [vmem:[%s10 + $0x28] sm:$0xff]
    %v1204 = vld [vmem:[%s10 + $0x30] sm:$0xff]
    %v1205 = vld [vmem:[%s10 + $0x38] sm:$0xff]
    %v1206 = vld [vmem:[%s11] sm:$0x1]
    %v1208 = vlaneseq
    %v1209 = vshrl.u32 %v1208, 7
    %v1210 = vsub.s32 0, %v1209
    %v1211 = vrot.slane %v1206, %v1210
    %vm1213 = vcmask 523264
    %v1215 = vsel %vm1213, %v1196, 0
    %v1218 = vsel %vm1213, %v1197, 0
    %1220 = vmatprep.subr.mxu0 0.0
    %1221 = vmatpush1.msra.mxu0 %v1198
    %1222 = vmatprep.subr.mxu0 0.0
    %1223 = vmatpush1.msra.mxu0 %v1199
    %1224 = vmatprep.subr.mxu0 0.0
    %1225 = vmatpush1.msra.mxu0 %v1200
    %1226 = vmatprep.subr.mxu0 0.0
    %1227 = vmatpush1.msra.mxu0 %v1201
    %1228 = vmatprep.subr.mxu0 0.0
    %1229 = vmatpush1.msra.mxu0 %v1202
    %1230 = vmatprep.subr.mxu0 0.0
    %1231 = vmatpush1.msra.mxu0 %v1203
    %1232 = vmatprep.subr.mxu0 0.0
    %1233 = vmatpush1.msra.mxu0 %v1204
    %1234 = vmatprep.subr.mxu0 0.0
    %1235 = vmatpush1.msra.mxu0 %v1205
    %1236 = vmatprep.subr.mxu0 0.0
    %1237 = vmatpush1.msra.mxu0 0.0
    %1238 = vmatprep.subr.mxu0 0.0
    %1239 = vmatpush1.msra.mxu0 0.0
    %1240 = vmatprep.subr.mxu0 0.0
    %1241 = vmatpush1.msra.mxu0 0.0
    %1242 = vmatprep.subr.mxu0 0.0
    %1243 = vmatpush1.msra.mxu0 0.0
    %1244 = vmatprep.subr.mxu0 0.0
    %1245 = vmatpush1.msra.mxu0 0.0
    %1246 = vmatprep.subr.mxu0 0.0
    %1247 = vmatpush1.msra.mxu0 0.0
    %1248 = vmatprep.subr.mxu0 0.0
    %1249 = vmatpush1.msra.mxu0 0.0
    %1250 = vmatprep.subr.mxu0 0.0
    %1251 = vmatpush1.msra.mxu0 0.0
    %1252 = vmatprep.subr.mxu0 0.0
    %1253 = vmatpush1.msra.mxu0 0.0
    %1254 = vmatprep.subr.mxu0 0.0
    %1255 = vmatpush1.msra.mxu0 0.0
    %1256 = vmatprep.subr.mxu0 0.0
    %1257 = vmatpush1.msra.mxu0 0.0
    %1258 = vmatprep.subr.mxu0 0.0
    %1259 = vmatpush1.msra.mxu0 0.0
    %1260 = vmatprep.subr.mxu0 0.0
    %1261 = vmatpush1.msra.mxu0 0.0
    %1262 = vmatprep.subr.mxu0 0.0
    %1263 = vmatpush1.msra.mxu0 0.0
    %1264 = vmatprep.subr.mxu0 0.0
    %1265 = vmatpush1.msra.mxu0 0.0
    %1266 = vmatprep.subr.mxu0 0.0
    %1267 = vmatpush1.msra.mxu0 0.0
    %1268 = vmatprep.subr.mxu0 0.0
    %1269 = vmatpush1.msra.mxu0 0.0
    %1270 = vmatprep.subr.mxu0 0.0
    %1271 = vmatpush1.msra.mxu0 0.0
    %1272 = vmatprep.subr.mxu0 0.0
    %1273 = vmatpush1.msra.mxu0 0.0
    %1274 = vmatprep.subr.mxu0 0.0
    %1275 = vmatpush1.msra.mxu0 0.0
    %1276 = vmatprep.subr.mxu0 0.0
    %1277 = vmatpush1.msra.mxu0 0.0
    %1278 = vmatprep.subr.mxu0 0.0
    %1279 = vmatpush1.msra.mxu0 0.0
    %1280 = vmatprep.subr.mxu0 0.0
    %1281 = vmatpush1.msra.mxu0 0.0
    %1282 = vmatprep.subr.mxu0 0.0
    %1283 = vmatpush1.msra.mxu0 0.0
    %1284 = vmatprep.mubr.f32.mxu0 0.0
    %1285 = vmatmul.mubr.f32.gmra.mrb[0].mxu0 %v1215
    %v1286 = vpop.f32.mrb[0].mxu0
    %v1287 = vadd.f32 %v1211, %v1286
    %v1288 = vpop.f32.mrb[0].mxu0
    %1289 = vmatprep.mubr.f32.mxu0 0.0
    %1290 = vmatmul.mubr.f32.gmra.mrb[0].mxu0 %v1218
    %v1291 = vpop.f32.mrb[0].mxu0
    %v1292 = vadd.f32 %v1211, %v1291
    %v1293 = vpop.f32.mrb[0].mxu0
    %1294 = vdwg.mxu0
    %v1295 = vadd.f32 %v1078, %v1287
    %v1296 = vadd.f32 %v1079, %v1292
    %v1297 = vld [vmem:[%s12] sm:$0x1]
    %v1298 = vld [vmem:[%s13] sm:$0x1]
    %v1299 = vsel %vm85, %v1295, 0.0
    %1300 = vadd.xlane.f32.xlu0 %v1299
    %v1301 = vpop.xlane.xlu0 %1300
    %v1302 = vsel %vm85, %v1296, 0.0
    %1303 = vadd.xlane.f32.xlu0 %v1302
    %v1304 = vpop.xlane.xlu0 %1303
    %v1305 = vmul.f32 %v1301, %v1043
    %v1306 = vmul.f32 %v1304, %v1043
    %v1307 = vsub.f32 %v1295, %v1305
    %v1308 = vsub.f32 %v1296, %v1306
    %v1309 = vmul.f32 %v1307, %v1307
    %v1310 = vmul.f32 %v1308, %v1308
    %v1311 = vsel %vm85, %v1309, 0.0
    %1312 = vadd.xlane.f32.xlu0 %v1311
    %v1313 = vpop.xlane.xlu0 %1312
    %v1314 = vsel %vm85, %v1310, 0.0
    %1315 = vadd.xlane.f32.xlu0 %v1314
    %v1316 = vpop.xlane.xlu0 %1315
    %v1317 = vmul.f32 %v1313, %v1043
    %v1318 = vmul.f32 %v1316, %v1043
    %v1319 = vadd.f32 %v1317, 1e-05
    %v1320 = vadd.f32 %v1318, 1e-05
    %v1321 = vrsqrt.pop %v1319
    %v1322 = vrsqrt.pop %v1320
    %v1323 = vmul.f32 %v1307, %v1321
    %v1324 = vmul.f32 %v1308, %v1322
    %v1326 = vlaneseq
    %v1327 = vshrl.u32 %v1326, 7
    %v1328 = vsub.s32 0, %v1327
    %v1329 = vrot.slane %v1297, %v1328
    %v1331 = vmul.f32 %v1323, %v1329
    %v1332 = vmul.f32 %v1324, %v1329
    %v1334 = vlaneseq
    %v1335 = vshrl.u32 %v1334, 7
    %v1336 = vsub.s32 0, %v1335
    %v1337 = vrot.slane %v1298, %v1336
    %v1339 = vadd.f32 %v1331, %v1337
    %v1340 = vadd.f32 %v1332, %v1337
    %s1341 = scalar_lea.vmem %s2, 32
    %v1342 = vld [vmem:[%s1341] sm:$0xff]
    %v1343 = vld [vmem:[%s1341 + $0x8] sm:$0xff]
    %v1344 = vld [vmem:[%s1341 + $0x10] sm:$0xff]
    %v1345 = vld [vmem:[%s1341 + $0x18] sm:$0xff]
    %s1346 = scalar_lea.vmem %s3, 1
    %v1347 = vld [vmem:[%s1346] sm:$0x1]
    %v1349 = vlaneseq
    %v1350 = vshrl.u32 %v1349, 7
    %v1351 = vsub.s32 0, %v1350
    %v1352 = vrot.slane %v1347, %v1351
    %v1355 = vsel %vm85, %v1339, 0
    %v1358 = vsel %vm85, %v1340, 0
    %1360 = vmatprep.subr.mxu0 0.0
    %1361 = vmatpush1.msra.mxu0 %v1342
    %1362 = vmatprep.subr.mxu0 0.0
    %1363 = vmatpush1.msra.mxu0 %v1343
    %1364 = vmatprep.subr.mxu0 0.0
    %1365 = vmatpush1.msra.mxu0 %v1344
    %1366 = vmatprep.subr.mxu0 0.0
    %1367 = vmatpush1.msra.mxu0 %v1345
    %1368 = vmatprep.subr.mxu0 0.0
    %1369 = vmatpush1.msra.mxu0 0.0
    %1370 = vmatprep.subr.mxu0 0.0
    %1371 = vmatpush1.msra.mxu0 0.0
    %1372 = vmatprep.subr.mxu0 0.0
    %1373 = vmatpush1.msra.mxu0 0.0
    %1374 = vmatprep.subr.mxu0 0.0
    %1375 = vmatpush1.msra.mxu0 0.0
    %1376 = vmatprep.subr.mxu0 0.0
    %1377 = vmatpush1.msra.mxu0 0.0
    %1378 = vmatprep.subr.mxu0 0.0
    %1379 = vmatpush1.msra.mxu0 0.0
    %1380 = vmatprep.subr.mxu0 0.0
    %1381 = vmatpush1.msra.mxu0 0.0
    %1382 = vmatprep.subr.mxu0 0.0
    %1383 = vmatpush1.msra.mxu0 0.0
    %1384 = vmatprep.subr.mxu0 0.0
    %1385 = vmatpush1.msra.mxu0 0.0
    %1386 = vmatprep.subr.mxu0 0.0
    %1387 = vmatpush1.msra.mxu0 0.0
    %1388 = vmatprep.subr.mxu0 0.0
    %1389 = vmatpush1.msra.mxu0 0.0
    %1390 = vmatprep.subr.mxu0 0.0
    %1391 = vmatpush1.msra.mxu0 0.0
    %1392 = vmatprep.subr.mxu0 0.0
    %1393 = vmatpush1.msra.mxu0 0.0
    %1394 = vmatprep.subr.mxu0 0.0
    %1395 = vmatpush1.msra.mxu0 0.0
    %1396 = vmatprep.subr.mxu0 0.0
    %1397 = vmatpush1.msra.mxu0 0.0
    %1398 = vmatprep.subr.mxu0 0.0
    %1399 = vmatpush1.msra.mxu0 0.0
    %1400 = vmatprep.subr.mxu0 0.0
    %1401 = vmatpush1.msra.mxu0 0.0
    %1402 = vmatprep.subr.mxu0 0.0
    %1403 = vmatpush1.msra.mxu0 0.0
    %1404 = vmatprep.subr.mxu0 0.0
    %1405 = vmatpush1.msra.mxu0 0.0
    %1406 = vmatprep.subr.mxu0 0.0
    %1407 = vmatpush1.msra.mxu0 0.0
    %1408 = vmatprep.subr.mxu0 0.0
    %1409 = vmatpush1.msra.mxu0 0.0
    %1410 = vmatprep.subr.mxu0 0.0
    %1411 = vmatpush1.msra.mxu0 0.0
    %1412 = vmatprep.subr.mxu0 0.0
    %1413 = vmatpush1.msra.mxu0 0.0
    %1414 = vmatprep.subr.mxu0 0.0
    %1415 = vmatpush1.msra.mxu0 0.0
    %1416 = vmatprep.subr.mxu0 0.0
    %1417 = vmatpush1.msra.mxu0 0.0
    %1418 = vmatprep.subr.mxu0 0.0
    %1419 = vmatpush1.msra.mxu0 0.0
    %1420 = vmatprep.subr.mxu0 0.0
    %1421 = vmatpush1.msra.mxu0 0.0
    %1422 = vmatprep.subr.mxu0 0.0
    %1423 = vmatpush1.msra.mxu0 0.0
    %1424 = vmatprep.mubr.f32.mxu0 0.0
    %1425 = vmatmul.mubr.f32.gmra.mrb[0].mxu0 %v1355
    %v1426 = vpop.f32.mrb[0].mxu0
    %v1427 = vadd.f32 %v1352, %v1426
    %v1428 = vpop.f32.mrb[0].mxu0
    %1429 = vmatprep.mubr.f32.mxu0 0.0
    %1430 = vmatmul.mubr.f32.gmra.mrb[0].mxu0 %v1358
    %v1431 = vpop.f32.mrb[0].mxu0
    %v1432 = vadd.f32 %v1352, %v1431
    %v1433 = vpop.f32.mrb[0].mxu0
    %1434 = vdwg.mxu0
    %1436 = vrot.lane.b32.xlu0 %v1427, 96
    %v1437 = vpop.permute.xlu0 %1436
    %v1438 = vsel %vm170, %v1427, 0
    %v1440 = vsel %vm170, %v1437, 0
    %1442 = vmatprep.subr.mxu0 0.0
    %1443 = vmatpush1.xpose.msra.mxu0 %v1440
    %1444 = vmatprep.subr.mxu0 0.0
    %1445 = vmatpush1.xpose.msra.mxu0 0.0
    %1446 = vmatprep.subr.mxu0 0.0
    %1447 = vmatpush1.xpose.msra.mxu0 0.0
    %1448 = vmatprep.subr.mxu0 0.0
    %1449 = vmatpush1.xpose.msra.mxu0 0.0
    %1450 = vmatprep.subr.mxu0 0.0
    %1451 = vmatpush1.xpose.msra.mxu0 0.0
    %1452 = vmatprep.subr.mxu0 0.0
    %1453 = vmatpush1.xpose.msra.mxu0 0.0
    %1454 = vmatprep.subr.mxu0 0.0
    %1455 = vmatpush1.xpose.msra.mxu0 0.0
    %1456 = vmatprep.subr.mxu0 0.0
    %1457 = vmatpush1.xpose.msra.mxu0 0.0
    %1458 = vmatprep.subr.mxu0 0.0
    %1459 = vmatpush1.xpose.msra.mxu0 0.0
    %1460 = vmatprep.subr.mxu0 0.0
    %1461 = vmatpush1.xpose.msra.mxu0 0.0
    %1462 = vmatprep.subr.mxu0 0.0
    %1463 = vmatpush1.xpose.msra.mxu0 0.0
    %1464 = vmatprep.subr.mxu0 0.0
    %1465 = vmatpush1.xpose.msra.mxu0 0.0
    %1466 = vmatprep.subr.mxu0 0.0
    %1467 = vmatpush1.xpose.msra.mxu0 0.0
    %1468 = vmatprep.subr.mxu0 0.0
    %1469 = vmatpush1.xpose.msra.mxu0 0.0
    %1470 = vmatprep.subr.mxu0 0.0
    %1471 = vmatpush1.xpose.msra.mxu0 0.0
    %1472 = vmatprep.subr.mxu0 0.0
    %1473 = vmatpush1.xpose.msra.mxu0 0.0
    %1474 = vmatprep.subr.mxu0 0.0
    %1475 = vmatpush1.xpose.msra.mxu0 0.0
    %1476 = vmatprep.subr.mxu0 0.0
    %1477 = vmatpush1.xpose.msra.mxu0 0.0
    %1478 = vmatprep.subr.mxu0 0.0
    %1479 = vmatpush1.xpose.msra.mxu0 0.0
    %1480 = vmatprep.subr.mxu0 0.0
    %1481 = vmatpush1.xpose.msra.mxu0 0.0
    %1482 = vmatprep.subr.mxu0 0.0
    %1483 = vmatpush1.xpose.msra.mxu0 0.0
    %1484 = vmatprep.subr.mxu0 0.0
    %1485 = vmatpush1.xpose.msra.mxu0 0.0
    %1486 = vmatprep.subr.mxu0 0.0
    %1487 = vmatpush1.xpose.msra.mxu0 0.0
    %1488 = vmatprep.subr.mxu0 0.0
    %1489 = vmatpush1.xpose.msra.mxu0 0.0
    %1490 = vmatprep.subr.mxu0 0.0
    %1491 = vmatpush1.xpose.msra.mxu0 0.0
    %1492 = vmatprep.subr.mxu0 0.0
    %1493 = vmatpush1.xpose.msra.mxu0 0.0
    %1494 = vmatprep.subr.mxu0 0.0
    %1495 = vmatpush1.xpose.msra.mxu0 0.0
    %1496 = vmatprep.subr.mxu0 0.0
    %1497 = vmatpush1.xpose.msra.mxu0 0.0
    %1498 = vmatprep.subr.mxu0 0.0
    %1499 = vmatpush1.xpose.msra.mxu0 0.0
    %1500 = vmatprep.subr.mxu0 0.0
    %1501 = vmatpush1.xpose.msra.mxu0 0.0
    %1502 = vmatprep.subr.mxu0 0.0
    %1503 = vmatpush1.xpose.msra.mxu0 0.0
    %1504 = vmatprep.subr.mxu0 0.0
    %1505 = vmatpush1.xpose.msra.mxu0 0.0
    %1506 = vmatprep.mubr.f32.mxu0 0.0
    %1507 = vmatmul.mubr.f32.gmra.mrb[0].mxu0 %v1438
    %v1508 = vpop.f32.mrb[0].mxu0
    %v1509 = vadd.f32 0.0, %v1508
    %v1510 = vpop.f32.mrb[0].mxu0
    %1511 = vdwg.mxu0
    %1513 = vrot.lane.b32.xlu0 %v1432, 96
    %v1514 = vpop.permute.xlu0 %1513
    %v1515 = vsel %vm170, %v1432, 0
    %v1517 = vsel %vm170, %v1514, 0
    %1519 = vmatprep.subr.mxu0 0.0
    %1520 = vmatpush1.xpose.msra.mxu0 %v1517
    %1521 = vmatprep.subr.mxu0 0.0
    %1522 = vmatpush1.xpose.msra.mxu0 0.0
    %1523 = vmatprep.subr.mxu0 0.0
    %1524 = vmatpush1.xpose.msra.mxu0 0.0
    %1525 = vmatprep.subr.mxu0 0.0
    %1526 = vmatpush1.xpose.msra.mxu0 0.0
    %1527 = vmatprep.subr.mxu0 0.0
    %1528 = vmatpush1.xpose.msra.mxu0 0.0
    %1529 = vmatprep.subr.mxu0 0.0
    %1530 = vmatpush1.xpose.msra.mxu0 0.0
    %1531 = vmatprep.subr.mxu0 0.0
    %1532 = vmatpush1.xpose.msra.mxu0 0.0
    %1533 = vmatprep.subr.mxu0 0.0
    %1534 = vmatpush1.xpose.msra.mxu0 0.0
    %1535 = vmatprep.subr.mxu0 0.0
    %1536 = vmatpush1.xpose.msra.mxu0 0.0
    %1537 = vmatprep.subr.mxu0 0.0
    %1538 = vmatpush1.xpose.msra.mxu0 0.0
    %1539 = vmatprep.subr.mxu0 0.0
    %1540 = vmatpush1.xpose.msra.mxu0 0.0
    %1541 = vmatprep.subr.mxu0 0.0
    %1542 = vmatpush1.xpose.msra.mxu0 0.0
    %1543 = vmatprep.subr.mxu0 0.0
    %1544 = vmatpush1.xpose.msra.mxu0 0.0
    %1545 = vmatprep.subr.mxu0 0.0
    %1546 = vmatpush1.xpose.msra.mxu0 0.0
    %1547 = vmatprep.subr.mxu0 0.0
    %1548 = vmatpush1.xpose.msra.mxu0 0.0
    %1549 = vmatprep.subr.mxu0 0.0
    %1550 = vmatpush1.xpose.msra.mxu0 0.0
    %1551 = vmatprep.subr.mxu0 0.0
    %1552 = vmatpush1.xpose.msra.mxu0 0.0
    %1553 = vmatprep.subr.mxu0 0.0
    %1554 = vmatpush1.xpose.msra.mxu0 0.0
    %1555 = vmatprep.subr.mxu0 0.0
    %1556 = vmatpush1.xpose.msra.mxu0 0.0
    %1557 = vmatprep.subr.mxu0 0.0
    %1558 = vmatpush1.xpose.msra.mxu0 0.0
    %1559 = vmatprep.subr.mxu0 0.0
    %1560 = vmatpush1.xpose.msra.mxu0 0.0
    %1561 = vmatprep.subr.mxu0 0.0
    %1562 = vmatpush1.xpose.msra.mxu0 0.0
    %1563 = vmatprep.subr.mxu0 0.0
    %1564 = vmatpush1.xpose.msra.mxu0 0.0
    %1565 = vmatprep.subr.mxu0 0.0
    %1566 = vmatpush1.xpose.msra.mxu0 0.0
    %1567 = vmatprep.subr.mxu0 0.0
    %1568 = vmatpush1.xpose.msra.mxu0 0.0
    %1569 = vmatprep.subr.mxu0 0.0
    %1570 = vmatpush1.xpose.msra.mxu0 0.0
    %1571 = vmatprep.subr.mxu0 0.0
    %1572 = vmatpush1.xpose.msra.mxu0 0.0
    %1573 = vmatprep.subr.mxu0 0.0
    %1574 = vmatpush1.xpose.msra.mxu0 0.0
    %1575 = vmatprep.subr.mxu0 0.0
    %1576 = vmatpush1.xpose.msra.mxu0 0.0
    %1577 = vmatprep.subr.mxu0 0.0
    %1578 = vmatpush1.xpose.msra.mxu0 0.0
    %1579 = vmatprep.subr.mxu0 0.0
    %1580 = vmatpush1.xpose.msra.mxu0 0.0
    %1581 = vmatprep.subr.mxu0 0.0
    %1582 = vmatpush1.xpose.msra.mxu0 0.0
    %1583 = vmatprep.mubr.f32.mxu0 0.0
    %1584 = vmatmul.mubr.f32.gmra.mrb[0].mxu0 %v1515
    %v1585 = vpop.f32.mrb[0].mxu0
    %v1586 = vadd.f32 0.0, %v1585
    %v1587 = vpop.f32.mrb[0].mxu0
    %1588 = vdwg.mxu0
    %v1589 = vmul.f32 %v1509, 0.25
    %v1590 = vmul.f32 %v1586, 0.25
    %v1591 = vadd.f32 %v1589, %v327
    %v1592 = vadd.f32 %v1590, %v331
    %v1593 = vsel %vm336, %v1591, -inf
    %1594 = vmax.xlane.f32.xlu0 %v1593
    %v1595 = vpop.xlane.xlu0 %1594
    %v1596 = vsel %vm336, %v1592, -inf
    %1597 = vmax.xlane.f32.xlu0 %v1596
    %v1598 = vpop.xlane.xlu0 %1597
    %v1599 = vsub.f32 %v1591, %v1595
    %v1600 = vsub.f32 %v1592, %v1598
    %v1601 = vmul.f32 %v1599, 1.442695
    %v1602 = vpow.pop %v1601
    %v1603 = vmul.f32 %v1600, 1.442695
    %v1604 = vpow.pop %v1603
    %v1605 = vsel %vm336, %v1602, 0.0
    %1606 = vadd.xlane.f32.xlu0 %v1605
    %v1607 = vpop.xlane.xlu0 %1606
    %v1608 = vsel %vm336, %v1604, 0.0
    %1609 = vadd.xlane.f32.xlu0 %v1608
    %v1610 = vpop.xlane.xlu0 %1609
    %v1611 = vrcp.pop %v1607
    %v1612 = vrcp.pop %v1610
    %v1613 = vmul.f32 %v1607, %v1611
    %v1614 = vmul.f32 %v1610, %v1612
    %v1615 = vsub.f32 2.0, %v1613
    %v1616 = vsub.f32 2.0, %v1614
    %v1617 = vmul.f32 %v1611, %v1615
    %v1618 = vmul.f32 %v1612, %v1616
    %v1619 = vmul.f32 %v1602, %v1617
    %v1620 = vmul.f32 %v1604, %v1618
    %1621 = vrot.lane.b32.xlu0 %v1427, 64
    %v1622 = vpop.permute.xlu0 %1621
    %v1625 = vsel %vm336, %v1619, 0
    %1627 = vmatprep.subr.mxu0 0.0
    %1628 = vmatpush1.msra.mxu0 %v1622
    %1629 = vmatprep.subr.mxu0 0.0
    %1630 = vmatpush1.msra.mxu0 0.0
    %1631 = vmatprep.subr.mxu0 0.0
    %1632 = vmatpush1.msra.mxu0 0.0
    %1633 = vmatprep.subr.mxu0 0.0
    %1634 = vmatpush1.msra.mxu0 0.0
    %1635 = vmatprep.subr.mxu0 0.0
    %1636 = vmatpush1.msra.mxu0 0.0
    %1637 = vmatprep.subr.mxu0 0.0
    %1638 = vmatpush1.msra.mxu0 0.0
    %1639 = vmatprep.subr.mxu0 0.0
    %1640 = vmatpush1.msra.mxu0 0.0
    %1641 = vmatprep.subr.mxu0 0.0
    %1642 = vmatpush1.msra.mxu0 0.0
    %1643 = vmatprep.subr.mxu0 0.0
    %1644 = vmatpush1.msra.mxu0 0.0
    %1645 = vmatprep.subr.mxu0 0.0
    %1646 = vmatpush1.msra.mxu0 0.0
    %1647 = vmatprep.subr.mxu0 0.0
    %1648 = vmatpush1.msra.mxu0 0.0
    %1649 = vmatprep.subr.mxu0 0.0
    %1650 = vmatpush1.msra.mxu0 0.0
    %1651 = vmatprep.subr.mxu0 0.0
    %1652 = vmatpush1.msra.mxu0 0.0
    %1653 = vmatprep.subr.mxu0 0.0
    %1654 = vmatpush1.msra.mxu0 0.0
    %1655 = vmatprep.subr.mxu0 0.0
    %1656 = vmatpush1.msra.mxu0 0.0
    %1657 = vmatprep.subr.mxu0 0.0
    %1658 = vmatpush1.msra.mxu0 0.0
    %1659 = vmatprep.subr.mxu0 0.0
    %1660 = vmatpush1.msra.mxu0 0.0
    %1661 = vmatprep.subr.mxu0 0.0
    %1662 = vmatpush1.msra.mxu0 0.0
    %1663 = vmatprep.subr.mxu0 0.0
    %1664 = vmatpush1.msra.mxu0 0.0
    %1665 = vmatprep.subr.mxu0 0.0
    %1666 = vmatpush1.msra.mxu0 0.0
    %1667 = vmatprep.subr.mxu0 0.0
    %1668 = vmatpush1.msra.mxu0 0.0
    %1669 = vmatprep.subr.mxu0 0.0
    %1670 = vmatpush1.msra.mxu0 0.0
    %1671 = vmatprep.subr.mxu0 0.0
    %1672 = vmatpush1.msra.mxu0 0.0
    %1673 = vmatprep.subr.mxu0 0.0
    %1674 = vmatpush1.msra.mxu0 0.0
    %1675 = vmatprep.subr.mxu0 0.0
    %1676 = vmatpush1.msra.mxu0 0.0
    %1677 = vmatprep.subr.mxu0 0.0
    %1678 = vmatpush1.msra.mxu0 0.0
    %1679 = vmatprep.subr.mxu0 0.0
    %1680 = vmatpush1.msra.mxu0 0.0
    %1681 = vmatprep.subr.mxu0 0.0
    %1682 = vmatpush1.msra.mxu0 0.0
    %1683 = vmatprep.subr.mxu0 0.0
    %1684 = vmatpush1.msra.mxu0 0.0
    %1685 = vmatprep.subr.mxu0 0.0
    %1686 = vmatpush1.msra.mxu0 0.0
    %1687 = vmatprep.subr.mxu0 0.0
    %1688 = vmatpush1.msra.mxu0 0.0
    %1689 = vmatprep.subr.mxu0 0.0
    %1690 = vmatpush1.msra.mxu0 0.0
    %1691 = vmatprep.mubr.f32.mxu0 0.0
    %1692 = vmatmul.mubr.f32.gmra.mrb[0].mxu0 %v1625
    %v1693 = vpop.f32.mrb[0].mxu0
    %v1694 = vadd.f32 0.0, %v1693
    %v1695 = vpop.f32.mrb[0].mxu0
    %1696 = vdwg.mxu0
    %1697 = vrot.lane.b32.xlu0 %v1432, 64
    %v1698 = vpop.permute.xlu0 %1697
    %v1701 = vsel %vm336, %v1620, 0
    %1703 = vmatprep.subr.mxu0 0.0
    %1704 = vmatpush1.msra.mxu0 %v1698
    %1705 = vmatprep.subr.mxu0 0.0
    %1706 = vmatpush1.msra.mxu0 0.0
    %1707 = vmatprep.subr.mxu0 0.0
    %1708 = vmatpush1.msra.mxu0 0.0
    %1709 = vmatprep.subr.mxu0 0.0
    %1710 = vmatpush1.msra.mxu0 0.0
    %1711 = vmatprep.subr.mxu0 0.0
    %1712 = vmatpush1.msra.mxu0 0.0
    %1713 = vmatprep.subr.mxu0 0.0
    %1714 = vmatpush1.msra.mxu0 0.0
    %1715 = vmatprep.subr.mxu0 0.0
    %1716 = vmatpush1.msra.mxu0 0.0
    %1717 = vmatprep.subr.mxu0 0.0
    %1718 = vmatpush1.msra.mxu0 0.0
    %1719 = vmatprep.subr.mxu0 0.0
    %1720 = vmatpush1.msra.mxu0 0.0
    %1721 = vmatprep.subr.mxu0 0.0
    %1722 = vmatpush1.msra.mxu0 0.0
    %1723 = vmatprep.subr.mxu0 0.0
    %1724 = vmatpush1.msra.mxu0 0.0
    %1725 = vmatprep.subr.mxu0 0.0
    %1726 = vmatpush1.msra.mxu0 0.0
    %1727 = vmatprep.subr.mxu0 0.0
    %1728 = vmatpush1.msra.mxu0 0.0
    %1729 = vmatprep.subr.mxu0 0.0
    %1730 = vmatpush1.msra.mxu0 0.0
    %1731 = vmatprep.subr.mxu0 0.0
    %1732 = vmatpush1.msra.mxu0 0.0
    %1733 = vmatprep.subr.mxu0 0.0
    %1734 = vmatpush1.msra.mxu0 0.0
    %1735 = vmatprep.subr.mxu0 0.0
    %1736 = vmatpush1.msra.mxu0 0.0
    %1737 = vmatprep.subr.mxu0 0.0
    %1738 = vmatpush1.msra.mxu0 0.0
    %1739 = vmatprep.subr.mxu0 0.0
    %1740 = vmatpush1.msra.mxu0 0.0
    %1741 = vmatprep.subr.mxu0 0.0
    %1742 = vmatpush1.msra.mxu0 0.0
    %1743 = vmatprep.subr.mxu0 0.0
    %1744 = vmatpush1.msra.mxu0 0.0
    %1745 = vmatprep.subr.mxu0 0.0
    %1746 = vmatpush1.msra.mxu0 0.0
    %1747 = vmatprep.subr.mxu0 0.0
    %1748 = vmatpush1.msra.mxu0 0.0
    %1749 = vmatprep.subr.mxu0 0.0
    %1750 = vmatpush1.msra.mxu0 0.0
    %1751 = vmatprep.subr.mxu0 0.0
    %1752 = vmatpush1.msra.mxu0 0.0
    %1753 = vmatprep.subr.mxu0 0.0
    %1754 = vmatpush1.msra.mxu0 0.0
    %1755 = vmatprep.subr.mxu0 0.0
    %1756 = vmatpush1.msra.mxu0 0.0
    %1757 = vmatprep.subr.mxu0 0.0
    %1758 = vmatpush1.msra.mxu0 0.0
    %1759 = vmatprep.subr.mxu0 0.0
    %1760 = vmatpush1.msra.mxu0 0.0
    %1761 = vmatprep.subr.mxu0 0.0
    %1762 = vmatpush1.msra.mxu0 0.0
    %1763 = vmatprep.subr.mxu0 0.0
    %1764 = vmatpush1.msra.mxu0 0.0
    %1765 = vmatprep.subr.mxu0 0.0
    %1766 = vmatpush1.msra.mxu0 0.0
    %1767 = vmatprep.mubr.f32.mxu0 0.0
    %1768 = vmatmul.mubr.f32.gmra.mrb[0].mxu0 %v1701
    %v1769 = vpop.f32.mrb[0].mxu0
    %v1770 = vadd.f32 0.0, %v1769
    %v1771 = vpop.f32.mrb[0].mxu0
    %1772 = vdwg.mxu0
    %s1773 = scalar_lea.vmem %s4, 32
    %v1774 = vld [vmem:[%s1773] sm:$0xff]
    %v1775 = vld [vmem:[%s1773 + $0x8] sm:$0xff]
    %1776 = vrot.lane.b32.xlu0 %v1427, 112
    %v1777 = vpop.permute.xlu0 %1776
    %1778 = vrot.lane.b32.xlu0 %v1427, 80
    %v1779 = vpop.permute.xlu0 %1778
    %v1780 = vsel %vm170, %v1777, 0
    %v1782 = vsel %vm170, %v1779, 0
    %1784 = vmatprep.subr.mxu0 0.0
    %1785 = vmatpush1.xpose.msra.mxu0 %v1782
    %1786 = vmatprep.subr.mxu0 0.0
    %1787 = vmatpush1.xpose.msra.mxu0 0.0
    %1788 = vmatprep.subr.mxu0 0.0
    %1789 = vmatpush1.xpose.msra.mxu0 0.0
    %1790 = vmatprep.subr.mxu0 0.0
    %1791 = vmatpush1.xpose.msra.mxu0 0.0
    %1792 = vmatprep.subr.mxu0 0.0
    %1793 = vmatpush1.xpose.msra.mxu0 0.0
    %1794 = vmatprep.subr.mxu0 0.0
    %1795 = vmatpush1.xpose.msra.mxu0 0.0
    %1796 = vmatprep.subr.mxu0 0.0
    %1797 = vmatpush1.xpose.msra.mxu0 0.0
    %1798 = vmatprep.subr.mxu0 0.0
    %1799 = vmatpush1.xpose.msra.mxu0 0.0
    %1800 = vmatprep.subr.mxu0 0.0
    %1801 = vmatpush1.xpose.msra.mxu0 0.0
    %1802 = vmatprep.subr.mxu0 0.0
    %1803 = vmatpush1.xpose.msra.mxu0 0.0
    %1804 = vmatprep.subr.mxu0 0.0
    %1805 = vmatpush1.xpose.msra.mxu0 0.0
    %1806 = vmatprep.subr.mxu0 0.0
    %1807 = vmatpush1.xpose.msra.mxu0 0.0
    %1808 = vmatprep.subr.mxu0 0.0
    %1809 = vmatpush1.xpose.msra.mxu0 0.0
    %1810 = vmatprep.subr.mxu0 0.0
    %1811 = vmatpush1.xpose.msra.mxu0 0.0
    %1812 = vmatprep.subr.mxu0 0.0
    %1813 = vmatpush1.xpose.msra.mxu0 0.0
    %1814 = vmatprep.subr.mxu0 0.0
    %1815 = vmatpush1.xpose.msra.mxu0 0.0
    %1816 = vmatprep.subr.mxu0 0.0
    %1817 = vmatpush1.xpose.msra.mxu0 0.0
    %1818 = vmatprep.subr.mxu0 0.0
    %1819 = vmatpush1.xpose.msra.mxu0 0.0
    %1820 = vmatprep.subr.mxu0 0.0
    %1821 = vmatpush1.xpose.msra.mxu0 0.0
    %1822 = vmatprep.subr.mxu0 0.0
    %1823 = vmatpush1.xpose.msra.mxu0 0.0
    %1824 = vmatprep.subr.mxu0 0.0
    %1825 = vmatpush1.xpose.msra.mxu0 0.0
    %1826 = vmatprep.subr.mxu0 0.0
    %1827 = vmatpush1.xpose.msra.mxu0 0.0
    %1828 = vmatprep.subr.mxu0 0.0
    %1829 = vmatpush1.xpose.msra.mxu0 0.0
    %1830 = vmatprep.subr.mxu0 0.0
    %1831 = vmatpush1.xpose.msra.mxu0 0.0
    %1832 = vmatprep.subr.mxu0 0.0
    %1833 = vmatpush1.xpose.msra.mxu0 0.0
    %1834 = vmatprep.subr.mxu0 0.0
    %1835 = vmatpush1.xpose.msra.mxu0 0.0
    %1836 = vmatprep.subr.mxu0 0.0
    %1837 = vmatpush1.xpose.msra.mxu0 0.0
    %1838 = vmatprep.subr.mxu0 0.0
    %1839 = vmatpush1.xpose.msra.mxu0 0.0
    %1840 = vmatprep.subr.mxu0 0.0
    %1841 = vmatpush1.xpose.msra.mxu0 0.0
    %1842 = vmatprep.subr.mxu0 0.0
    %1843 = vmatpush1.xpose.msra.mxu0 0.0
    %1844 = vmatprep.subr.mxu0 0.0
    %1845 = vmatpush1.xpose.msra.mxu0 0.0
    %1846 = vmatprep.subr.mxu0 0.0
    %1847 = vmatpush1.xpose.msra.mxu0 0.0
    %1848 = vmatprep.mubr.f32.mxu0 0.0
    %1849 = vmatmul.mubr.f32.gmra.mrb[0].mxu0 %v1780
    %v1850 = vpop.f32.mrb[0].mxu0
    %v1851 = vadd.f32 0.0, %v1850
    %v1852 = vpop.f32.mrb[0].mxu0
    %1853 = vdwg.mxu0
    %1854 = vrot.lane.b32.xlu0 %v1432, 112
    %v1855 = vpop.permute.xlu0 %1854
    %1856 = vrot.lane.b32.xlu0 %v1432, 80
    %v1857 = vpop.permute.xlu0 %1856
    %v1858 = vsel %vm170, %v1855, 0
    %v1860 = vsel %vm170, %v1857, 0
    %1862 = vmatprep.subr.mxu0 0.0
    %1863 = vmatpush1.xpose.msra.mxu0 %v1860
    %1864 = vmatprep.subr.mxu0 0.0
    %1865 = vmatpush1.xpose.msra.mxu0 0.0
    %1866 = vmatprep.subr.mxu0 0.0
    %1867 = vmatpush1.xpose.msra.mxu0 0.0
    %1868 = vmatprep.subr.mxu0 0.0
    %1869 = vmatpush1.xpose.msra.mxu0 0.0
    %1870 = vmatprep.subr.mxu0 0.0
    %1871 = vmatpush1.xpose.msra.mxu0 0.0
    %1872 = vmatprep.subr.mxu0 0.0
    %1873 = vmatpush1.xpose.msra.mxu0 0.0
    %1874 = vmatprep.subr.mxu0 0.0
    %1875 = vmatpush1.xpose.msra.mxu0 0.0
    %1876 = vmatprep.subr.mxu0 0.0
    %1877 = vmatpush1.xpose.msra.mxu0 0.0
    %1878 = vmatprep.subr.mxu0 0.0
    %1879 = vmatpush1.xpose.msra.mxu0 0.0
    %1880 = vmatprep.subr.mxu0 0.0
    %1881 = vmatpush1.xpose.msra.mxu0 0.0
    %1882 = vmatprep.subr.mxu0 0.0
    %1883 = vmatpush1.xpose.msra.mxu0 0.0
    %1884 = vmatprep.subr.mxu0 0.0
    %1885 = vmatpush1.xpose.msra.mxu0 0.0
    %1886 = vmatprep.subr.mxu0 0.0
    %1887 = vmatpush1.xpose.msra.mxu0 0.0
    %1888 = vmatprep.subr.mxu0 0.0
    %1889 = vmatpush1.xpose.msra.mxu0 0.0
    %1890 = vmatprep.subr.mxu0 0.0
    %1891 = vmatpush1.xpose.msra.mxu0 0.0
    %1892 = vmatprep.subr.mxu0 0.0
    %1893 = vmatpush1.xpose.msra.mxu0 0.0
    %1894 = vmatprep.subr.mxu0 0.0
    %1895 = vmatpush1.xpose.msra.mxu0 0.0
    %1896 = vmatprep.subr.mxu0 0.0
    %1897 = vmatpush1.xpose.msra.mxu0 0.0
    %1898 = vmatprep.subr.mxu0 0.0
    %1899 = vmatpush1.xpose.msra.mxu0 0.0
    %1900 = vmatprep.subr.mxu0 0.0
    %1901 = vmatpush1.xpose.msra.mxu0 0.0
    %1902 = vmatprep.subr.mxu0 0.0
    %1903 = vmatpush1.xpose.msra.mxu0 0.0
    %1904 = vmatprep.subr.mxu0 0.0
    %1905 = vmatpush1.xpose.msra.mxu0 0.0
    %1906 = vmatprep.subr.mxu0 0.0
    %1907 = vmatpush1.xpose.msra.mxu0 0.0
    %1908 = vmatprep.subr.mxu0 0.0
    %1909 = vmatpush1.xpose.msra.mxu0 0.0
    %1910 = vmatprep.subr.mxu0 0.0
    %1911 = vmatpush1.xpose.msra.mxu0 0.0
    %1912 = vmatprep.subr.mxu0 0.0
    %1913 = vmatpush1.xpose.msra.mxu0 0.0
    %1914 = vmatprep.subr.mxu0 0.0
    %1915 = vmatpush1.xpose.msra.mxu0 0.0
    %1916 = vmatprep.subr.mxu0 0.0
    %1917 = vmatpush1.xpose.msra.mxu0 0.0
    %1918 = vmatprep.subr.mxu0 0.0
    %1919 = vmatpush1.xpose.msra.mxu0 0.0
    %1920 = vmatprep.subr.mxu0 0.0
    %1921 = vmatpush1.xpose.msra.mxu0 0.0
    %1922 = vmatprep.subr.mxu0 0.0
    %1923 = vmatpush1.xpose.msra.mxu0 0.0
    %1924 = vmatprep.subr.mxu0 0.0
    %1925 = vmatpush1.xpose.msra.mxu0 0.0
    %1926 = vmatprep.mubr.f32.mxu0 0.0
    %1927 = vmatmul.mubr.f32.gmra.mrb[0].mxu0 %v1858
    %v1928 = vpop.f32.mrb[0].mxu0
    %v1929 = vadd.f32 0.0, %v1928
    %v1930 = vpop.f32.mrb[0].mxu0
    %1931 = vdwg.mxu0
    %v1932 = vmul.f32 %v1851, 0.25
    %v1933 = vmul.f32 %v1929, 0.25
    %v1934 = vadd.f32 %v1932, %v327
    %v1935 = vadd.f32 %v1933, %v331
    %v1936 = vsel %vm336, %v1934, -inf
    %1937 = vmax.xlane.f32.xlu0 %v1936
    %v1938 = vpop.xlane.xlu0 %1937
    %v1939 = vsel %vm336, %v1935, -inf
    %1940 = vmax.xlane.f32.xlu0 %v1939
    %v1941 = vpop.xlane.xlu0 %1940
    %v1942 = vsub.f32 %v1934, %v1938
    %v1943 = vsub.f32 %v1935, %v1941
    %v1944 = vmul.f32 %v1942, 1.442695
    %v1945 = vpow.pop %v1944
    %v1946 = vmul.f32 %v1943, 1.442695
    %v1947 = vpow.pop %v1946
    %v1948 = vsel %vm336, %v1945, 0.0
    %1949 = vadd.xlane.f32.xlu0 %v1948
    %v1950 = vpop.xlane.xlu0 %1949
    %v1951 = vsel %vm336, %v1947, 0.0
    %1952 = vadd.xlane.f32.xlu0 %v1951
    %v1953 = vpop.xlane.xlu0 %1952
    %v1954 = vrcp.pop %v1950
    %v1955 = vrcp.pop %v1953
    %v1956 = vmul.f32 %v1950, %v1954
    %v1957 = vmul.f32 %v1953, %v1955
    %v1958 = vsub.f32 2.0, %v1956
    %v1959 = vsub.f32 2.0, %v1957
    %v1960 = vmul.f32 %v1954, %v1958
    %v1961 = vmul.f32 %v1955, %v1959
    %v1962 = vmul.f32 %v1945, %v1960
    %v1963 = vmul.f32 %v1947, %v1961
    %1964 = vrot.lane.b32.xlu0 %v1427, 48
    %v1965 = vpop.permute.xlu0 %1964
    %v1968 = vsel %vm336, %v1962, 0
    %1970 = vmatprep.subr.mxu0 0.0
    %1971 = vmatpush1.msra.mxu0 %v1965
    %1972 = vmatprep.subr.mxu0 0.0
    %1973 = vmatpush1.msra.mxu0 0.0
    %1974 = vmatprep.subr.mxu0 0.0
    %1975 = vmatpush1.msra.mxu0 0.0
    %1976 = vmatprep.subr.mxu0 0.0
    %1977 = vmatpush1.msra.mxu0 0.0
    %1978 = vmatprep.subr.mxu0 0.0
    %1979 = vmatpush1.msra.mxu0 0.0
    %1980 = vmatprep.subr.mxu0 0.0
    %1981 = vmatpush1.msra.mxu0 0.0
    %1982 = vmatprep.subr.mxu0 0.0
    %1983 = vmatpush1.msra.mxu0 0.0
    %1984 = vmatprep.subr.mxu0 0.0
    %1985 = vmatpush1.msra.mxu0 0.0
    %1986 = vmatprep.subr.mxu0 0.0
    %1987 = vmatpush1.msra.mxu0 0.0
    %1988 = vmatprep.subr.mxu0 0.0
    %1989 = vmatpush1.msra.mxu0 0.0
    %1990 = vmatprep.subr.mxu0 0.0
    %1991 = vmatpush1.msra.mxu0 0.0
    %1992 = vmatprep.subr.mxu0 0.0
    %1993 = vmatpush1.msra.mxu0 0.0
    %1994 = vmatprep.subr.mxu0 0.0
    %1995 = vmatpush1.msra.mxu0 0.0
    %1996 = vmatprep.subr.mxu0 0.0
    %1997 = vmatpush1.msra.mxu0 0.0
    %1998 = vmatprep.subr.mxu0 0.0
    %1999 = vmatpush1.msra.mxu0 0.0
    %2000 = vmatprep.subr.mxu0 0.0
    %2001 = vmatpush1.msra.mxu0 0.0
    %2002 = vmatprep.subr.mxu0 0.0
    %2003 = vmatpush1.msra.mxu0 0.0
    %2004 = vmatprep.subr.mxu0 0.0
    %2005 = vmatpush1.msra.mxu0 0.0
    %2006 = vmatprep.subr.mxu0 0.0
    %2007 = vmatpush1.msra.mxu0 0.0
    %2008 = vmatprep.subr.mxu0 0.0
    %2009 = vmatpush1.msra.mxu0 0.0
    %2010 = vmatprep.subr.mxu0 0.0
    %2011 = vmatpush1.msra.mxu0 0.0
    %2012 = vmatprep.subr.mxu0 0.0
    %2013 = vmatpush1.msra.mxu0 0.0
    %2014 = vmatprep.subr.mxu0 0.0
    %2015 = vmatpush1.msra.mxu0 0.0
    %2016 = vmatprep.subr.mxu0 0.0
    %2017 = vmatpush1.msra.mxu0 0.0
    %2018 = vmatprep.subr.mxu0 0.0
    %2019 = vmatpush1.msra.mxu0 0.0
    %2020 = vmatprep.subr.mxu0 0.0
    %2021 = vmatpush1.msra.mxu0 0.0
    %2022 = vmatprep.subr.mxu0 0.0
    %2023 = vmatpush1.msra.mxu0 0.0
    %2024 = vmatprep.subr.mxu0 0.0
    %2025 = vmatpush1.msra.mxu0 0.0
    %2026 = vmatprep.subr.mxu0 0.0
    %2027 = vmatpush1.msra.mxu0 0.0
    %2028 = vmatprep.subr.mxu0 0.0
    %2029 = vmatpush1.msra.mxu0 0.0
    %2030 = vmatprep.subr.mxu0 0.0
    %2031 = vmatpush1.msra.mxu0 0.0
    %2032 = vmatprep.subr.mxu0 0.0
    %2033 = vmatpush1.msra.mxu0 0.0
    %2034 = vmatprep.mubr.f32.mxu0 0.0
    %2035 = vmatmul.mubr.f32.gmra.mrb[0].mxu0 %v1968
    %v2036 = vpop.f32.mrb[0].mxu0
    %v2037 = vadd.f32 0.0, %v2036
    %v2038 = vpop.f32.mrb[0].mxu0
    %2039 = vdwg.mxu0
    %2040 = vrot.lane.b32.xlu0 %v1432, 48
    %v2041 = vpop.permute.xlu0 %2040
    %v2044 = vsel %vm336, %v1963, 0
    %2046 = vmatprep.subr.mxu0 0.0
    %2047 = vmatpush1.msra.mxu0 %v2041
    %2048 = vmatprep.subr.mxu0 0.0
    %2049 = vmatpush1.msra.mxu0 0.0
    %2050 = vmatprep.subr.mxu0 0.0
    %2051 = vmatpush1.msra.mxu0 0.0
    %2052 = vmatprep.subr.mxu0 0.0
    %2053 = vmatpush1.msra.mxu0 0.0
    %2054 = vmatprep.subr.mxu0 0.0
    %2055 = vmatpush1.msra.mxu0 0.0
    %2056 = vmatprep.subr.mxu0 0.0
    %2057 = vmatpush1.msra.mxu0 0.0
    %2058 = vmatprep.subr.mxu0 0.0
    %2059 = vmatpush1.msra.mxu0 0.0
    %2060 = vmatprep.subr.mxu0 0.0
    %2061 = vmatpush1.msra.mxu0 0.0
    %2062 = vmatprep.subr.mxu0 0.0
    %2063 = vmatpush1.msra.mxu0 0.0
    %2064 = vmatprep.subr.mxu0 0.0
    %2065 = vmatpush1.msra.mxu0 0.0
    %2066 = vmatprep.subr.mxu0 0.0
    %2067 = vmatpush1.msra.mxu0 0.0
    %2068 = vmatprep.subr.mxu0 0.0
    %2069 = vmatpush1.msra.mxu0 0.0
    %2070 = vmatprep.subr.mxu0 0.0
    %2071 = vmatpush1.msra.mxu0 0.0
    %2072 = vmatprep.subr.mxu0 0.0
    %2073 = vmatpush1.msra.mxu0 0.0
    %2074 = vmatprep.subr.mxu0 0.0
    %2075 = vmatpush1.msra.mxu0 0.0
    %2076 = vmatprep.subr.mxu0 0.0
    %2077 = vmatpush1.msra.mxu0 0.0
    %2078 = vmatprep.subr.mxu0 0.0
    %2079 = vmatpush1.msra.mxu0 0.0
    %2080 = vmatprep.subr.mxu0 0.0
    %2081 = vmatpush1.msra.mxu0 0.0
    %2082 = vmatprep.subr.mxu0 0.0
    %2083 = vmatpush1.msra.mxu0 0.0
    %2084 = vmatprep.subr.mxu0 0.0
    %2085 = vmatpush1.msra.mxu0 0.0
    %2086 = vmatprep.subr.mxu0 0.0
    %2087 = vmatpush1.msra.mxu0 0.0
    %2088 = vmatprep.subr.mxu0 0.0
    %2089 = vmatpush1.msra.mxu0 0.0
    %2090 = vmatprep.subr.mxu0 0.0
    %2091 = vmatpush1.msra.mxu0 0.0
    %2092 = vmatprep.subr.mxu0 0.0
    %2093 = vmatpush1.msra.mxu0 0.0
    %2094 = vmatprep.subr.mxu0 0.0
    %2095 = vmatpush1.msra.mxu0 0.0
    %2096 = vmatprep.subr.mxu0 0.0
    %2097 = vmatpush1.msra.mxu0 0.0
    %2098 = vmatprep.subr.mxu0 0.0
    %2099 = vmatpush1.msra.mxu0 0.0
    %2100 = vmatprep.subr.mxu0 0.0
    %2101 = vmatpush1.msra.mxu0 0.0
    %2102 = vmatprep.subr.mxu0 0.0
    %2103 = vmatpush1.msra.mxu0 0.0
    %2104 = vmatprep.subr.mxu0 0.0
    %2105 = vmatpush1.msra.mxu0 0.0
    %2106 = vmatprep.subr.mxu0 0.0
    %2107 = vmatpush1.msra.mxu0 0.0
    %2108 = vmatprep.subr.mxu0 0.0
    %2109 = vmatpush1.msra.mxu0 0.0
    %2110 = vmatprep.mubr.f32.mxu0 0.0
    %2111 = vmatmul.mubr.f32.gmra.mrb[0].mxu0 %v2044
    %v2112 = vpop.f32.mrb[0].mxu0
    %v2113 = vadd.f32 0.0, %v2112
    %v2114 = vpop.f32.mrb[0].mxu0
    %2115 = vdwg.mxu0
    %s2116 = scalar_lea.vmem %s4, 48
    %v2117 = vld [vmem:[%s2116] sm:$0xff]
    %v2118 = vld [vmem:[%s2116 + $0x8] sm:$0xff]
    %v2120 = vsel %vm170, %v2037, 0
    %v2123 = vsel %vm170, %v2113, 0
    %2125 = vmatprep.subr.mxu0 0.0
    %2126 = vmatpush1.msra.mxu0 %v2117
    %2127 = vmatprep.subr.mxu0 0.0
    %2128 = vmatpush1.msra.mxu0 %v2118
    %2129 = vmatprep.subr.mxu0 0.0
    %2130 = vmatpush1.msra.mxu0 0.0
    %2131 = vmatprep.subr.mxu0 0.0
    %2132 = vmatpush1.msra.mxu0 0.0
    %2133 = vmatprep.subr.mxu0 0.0
    %2134 = vmatpush1.msra.mxu0 0.0
    %2135 = vmatprep.subr.mxu0 0.0
    %2136 = vmatpush1.msra.mxu0 0.0
    %2137 = vmatprep.subr.mxu0 0.0
    %2138 = vmatpush1.msra.mxu0 0.0
    %2139 = vmatprep.subr.mxu0 0.0
    %2140 = vmatpush1.msra.mxu0 0.0
    %2141 = vmatprep.subr.mxu0 0.0
    %2142 = vmatpush1.msra.mxu0 0.0
    %2143 = vmatprep.subr.mxu0 0.0
    %2144 = vmatpush1.msra.mxu0 0.0
    %2145 = vmatprep.subr.mxu0 0.0
    %2146 = vmatpush1.msra.mxu0 0.0
    %2147 = vmatprep.subr.mxu0 0.0
    %2148 = vmatpush1.msra.mxu0 0.0
    %2149 = vmatprep.subr.mxu0 0.0
    %2150 = vmatpush1.msra.mxu0 0.0
    %2151 = vmatprep.subr.mxu0 0.0
    %2152 = vmatpush1.msra.mxu0 0.0
    %2153 = vmatprep.subr.mxu0 0.0
    %2154 = vmatpush1.msra.mxu0 0.0
    %2155 = vmatprep.subr.mxu0 0.0
    %2156 = vmatpush1.msra.mxu0 0.0
    %2157 = vmatprep.subr.mxu0 0.0
    %2158 = vmatpush1.msra.mxu0 0.0
    %2159 = vmatprep.subr.mxu0 0.0
    %2160 = vmatpush1.msra.mxu0 0.0
    %2161 = vmatprep.subr.mxu0 0.0
    %2162 = vmatpush1.msra.mxu0 0.0
    %2163 = vmatprep.subr.mxu0 0.0
    %2164 = vmatpush1.msra.mxu0 0.0
    %2165 = vmatprep.subr.mxu0 0.0
    %2166 = vmatpush1.msra.mxu0 0.0
    %2167 = vmatprep.subr.mxu0 0.0
    %2168 = vmatpush1.msra.mxu0 0.0
    %2169 = vmatprep.subr.mxu0 0.0
    %2170 = vmatpush1.msra.mxu0 0.0
    %2171 = vmatprep.subr.mxu0 0.0
    %2172 = vmatpush1.msra.mxu0 0.0
    %2173 = vmatprep.subr.mxu0 0.0
    %2174 = vmatpush1.msra.mxu0 0.0
    %2175 = vmatprep.subr.mxu0 0.0
    %2176 = vmatpush1.msra.mxu0 0.0
    %2177 = vmatprep.subr.mxu0 0.0
    %2178 = vmatpush1.msra.mxu0 0.0
    %2179 = vmatprep.subr.mxu0 0.0
    %2180 = vmatpush1.msra.mxu0 0.0
    %2181 = vmatprep.subr.mxu0 0.0
    %2182 = vmatpush1.msra.mxu0 0.0
    %2183 = vmatprep.subr.mxu0 0.0
    %2184 = vmatpush1.msra.mxu0 0.0
    %2185 = vmatprep.subr.mxu0 0.0
    %2186 = vmatpush1.msra.mxu0 0.0
    %2187 = vmatprep.subr.mxu0 0.0
    %2188 = vmatpush1.msra.mxu0 0.0
    %2189 = vmatprep.mubr.f32.mxu0 0.0
    %2190 = vmatmul.mubr.f32.gmra.mrb[0].mxu0 %v2120
    %v2191 = vpop.f32.mrb[0].mxu0
    %v2192 = vadd.f32 0.0, %v2191
    %v2193 = vpop.f32.mrb[0].mxu0
    %2194 = vmatprep.mubr.f32.mxu0 0.0
    %2195 = vmatmul.mubr.f32.gmra.mrb[0].mxu0 %v2123
    %v2196 = vpop.f32.mrb[0].mxu0
    %v2197 = vadd.f32 0.0, %v2196
    %v2198 = vpop.f32.mrb[0].mxu0
    %2199 = vdwg.mxu0
    %v2201 = vsel %vm170, %v1694, 0
    %v2204 = vsel %vm170, %v1770, 0
    %2206 = vmatprep.subr.mxu0 0.0
    %2207 = vmatpush1.msra.mxu0 %v1774
    %2208 = vmatprep.subr.mxu0 0.0
    %2209 = vmatpush1.msra.mxu0 %v1775
    %2210 = vmatprep.subr.mxu0 0.0
    %2211 = vmatpush1.msra.mxu0 0.0
    %2212 = vmatprep.subr.mxu0 0.0
    %2213 = vmatpush1.msra.mxu0 0.0
    %2214 = vmatprep.subr.mxu0 0.0
    %2215 = vmatpush1.msra.mxu0 0.0
    %2216 = vmatprep.subr.mxu0 0.0
    %2217 = vmatpush1.msra.mxu0 0.0
    %2218 = vmatprep.subr.mxu0 0.0
    %2219 = vmatpush1.msra.mxu0 0.0
    %2220 = vmatprep.subr.mxu0 0.0
    %2221 = vmatpush1.msra.mxu0 0.0
    %2222 = vmatprep.subr.mxu0 0.0
    %2223 = vmatpush1.msra.mxu0 0.0
    %2224 = vmatprep.subr.mxu0 0.0
    %2225 = vmatpush1.msra.mxu0 0.0
    %2226 = vmatprep.subr.mxu0 0.0
    %2227 = vmatpush1.msra.mxu0 0.0
    %2228 = vmatprep.subr.mxu0 0.0
    %2229 = vmatpush1.msra.mxu0 0.0
    %2230 = vmatprep.subr.mxu0 0.0
    %2231 = vmatpush1.msra.mxu0 0.0
    %2232 = vmatprep.subr.mxu0 0.0
    %2233 = vmatpush1.msra.mxu0 0.0
    %2234 = vmatprep.subr.mxu0 0.0
    %2235 = vmatpush1.msra.mxu0 0.0
    %2236 = vmatprep.subr.mxu0 0.0
    %2237 = vmatpush1.msra.mxu0 0.0
    %2238 = vmatprep.subr.mxu0 0.0
    %2239 = vmatpush1.msra.mxu0 0.0
    %2240 = vmatprep.subr.mxu0 0.0
    %2241 = vmatpush1.msra.mxu0 0.0
    %2242 = vmatprep.subr.mxu0 0.0
    %2243 = vmatpush1.msra.mxu0 0.0
    %2244 = vmatprep.subr.mxu0 0.0
    %2245 = vmatpush1.msra.mxu0 0.0
    %2246 = vmatprep.subr.mxu0 0.0
    %2247 = vmatpush1.msra.mxu0 0.0
    %2248 = vmatprep.subr.mxu0 0.0
    %2249 = vmatpush1.msra.mxu0 0.0
    %2250 = vmatprep.subr.mxu0 0.0
    %2251 = vmatpush1.msra.mxu0 0.0
    %2252 = vmatprep.subr.mxu0 0.0
    %2253 = vmatpush1.msra.mxu0 0.0
    %2254 = vmatprep.subr.mxu0 0.0
    %2255 = vmatpush1.msra.mxu0 0.0
    %2256 = vmatprep.subr.mxu0 0.0
    %2257 = vmatpush1.msra.mxu0 0.0
    %2258 = vmatprep.subr.mxu0 0.0
    %2259 = vmatpush1.msra.mxu0 0.0
    %2260 = vmatprep.subr.mxu0 0.0
    %2261 = vmatpush1.msra.mxu0 0.0
    %2262 = vmatprep.subr.mxu0 0.0
    %2263 = vmatpush1.msra.mxu0 0.0
    %2264 = vmatprep.subr.mxu0 0.0
    %2265 = vmatpush1.msra.mxu0 0.0
    %2266 = vmatprep.subr.mxu0 0.0
    %2267 = vmatpush1.msra.mxu0 0.0
    %2268 = vmatprep.subr.mxu0 0.0
    %2269 = vmatpush1.msra.mxu0 0.0
    %2270 = vmatprep.mubr.f32.mxu0 0.0
    %2271 = vmatmul.mubr.f32.gmra.mrb[0].mxu0 %v2201
    %v2272 = vpop.f32.mrb[0].mxu0
    %v2273 = vadd.f32 %v2192, %v2272
    %v2274 = vpop.f32.mrb[0].mxu0
    %2275 = vmatprep.mubr.f32.mxu0 0.0
    %2276 = vmatmul.mubr.f32.gmra.mrb[0].mxu0 %v2204
    %v2277 = vpop.f32.mrb[0].mxu0
    %v2278 = vadd.f32 %v2197, %v2277
    %v2279 = vpop.f32.mrb[0].mxu0
    %2280 = vdwg.mxu0
    %s2281 = scalar_lea.vmem %s5, 1
    %v2282 = vld [vmem:[%s2281] sm:$0x1]
    %v2284 = vlaneseq
    %v2285 = vshrl.u32 %v2284, 7
    %v2286 = vsub.s32 0, %v2285
    %v2287 = vrot.slane %v2282, %v2286
    %v2289 = vadd.f32 %v2273, %v2287
    %v2290 = vadd.f32 %v2278, %v2287
    %v2291 = vadd.f32 %v1339, %v2289
    %v2292 = vadd.f32 %v1340, %v2290
    %s2293 = scalar_lea.vmem %s6, 1
    %v2294 = vld [vmem:[%s2293] sm:$0x1]
    %s2295 = scalar_lea.vmem %s7, 1
    %v2296 = vld [vmem:[%s2295] sm:$0x1]
    %v2297 = vsel %vm85, %v2291, 0.0
    %2298 = vadd.xlane.f32.xlu0 %v2297
    %v2299 = vpop.xlane.xlu0 %2298
    %v2300 = vsel %vm85, %v2292, 0.0
    %2301 = vadd.xlane.f32.xlu0 %v2300
    %v2302 = vpop.xlane.xlu0 %2301
    %v2303 = vmul.f32 %v2299, %v1043
    %v2304 = vmul.f32 %v2302, %v1043
    %v2305 = vsub.f32 %v2291, %v2303
    %v2306 = vsub.f32 %v2292, %v2304
    %v2307 = vmul.f32 %v2305, %v2305
    %v2308 = vmul.f32 %v2306, %v2306
    %v2309 = vsel %vm85, %v2307, 0.0
    %2310 = vadd.xlane.f32.xlu0 %v2309
    %v2311 = vpop.xlane.xlu0 %2310
    %v2312 = vsel %vm85, %v2308, 0.0
    %2313 = vadd.xlane.f32.xlu0 %v2312
    %v2314 = vpop.xlane.xlu0 %2313
    %v2315 = vmul.f32 %v2311, %v1043
    %v2316 = vmul.f32 %v2314, %v1043
    %v2317 = vadd.f32 %v2315, 1e-05
    %v2318 = vadd.f32 %v2316, 1e-05
    %v2319 = vrsqrt.pop %v2317
    %v2320 = vrsqrt.pop %v2318
    %v2321 = vmul.f32 %v2305, %v2319
    %v2322 = vmul.f32 %v2306, %v2320
    %v2324 = vlaneseq
    %v2325 = vshrl.u32 %v2324, 7
    %v2326 = vsub.s32 0, %v2325
    %v2327 = vrot.slane %v2294, %v2326
    %v2329 = vmul.f32 %v2321, %v2327
    %v2330 = vmul.f32 %v2322, %v2327
    %v2332 = vlaneseq
    %v2333 = vshrl.u32 %v2332, 7
    %v2334 = vsub.s32 0, %v2333
    %v2335 = vrot.slane %v2296, %v2334
    %v2337 = vadd.f32 %v2329, %v2335
    %v2338 = vadd.f32 %v2330, %v2335
    %s2339 = scalar_lea.vmem %s8, 32
    %v2340 = vld [vmem:[%s2339] sm:$0xff]
    %v2341 = vld [vmem:[%s2339 + $0x8] sm:$0xff]
    %v2342 = vld [vmem:[%s2339 + $0x10] sm:$0xff]
    %v2343 = vld [vmem:[%s2339 + $0x18] sm:$0xff]
    %s2344 = scalar_lea.vmem %s9, 1
    %v2345 = vld [vmem:[%s2344] sm:$0x1]
    %v2347 = vlaneseq
    %v2348 = vshrl.u32 %v2347, 7
    %v2349 = vsub.s32 0, %v2348
    %v2350 = vrot.slane %v2345, %v2349
    %v2353 = vsel %vm85, %v2337, 0
    %v2356 = vsel %vm85, %v2338, 0
    %2358 = vmatprep.subr.mxu0 0.0
    %2359 = vmatpush1.msra.mxu0 %v2340
    %2360 = vmatprep.subr.mxu0 0.0
    %2361 = vmatpush1.msra.mxu0 %v2341
    %2362 = vmatprep.subr.mxu0 0.0
    %2363 = vmatpush1.msra.mxu0 %v2342
    %2364 = vmatprep.subr.mxu0 0.0
    %2365 = vmatpush1.msra.mxu0 %v2343
    %2366 = vmatprep.subr.mxu0 0.0
    %2367 = vmatpush1.msra.mxu0 0.0
    %2368 = vmatprep.subr.mxu0 0.0
    %2369 = vmatpush1.msra.mxu0 0.0
    %2370 = vmatprep.subr.mxu0 0.0
    %2371 = vmatpush1.msra.mxu0 0.0
    %2372 = vmatprep.subr.mxu0 0.0
    %2373 = vmatpush1.msra.mxu0 0.0
    %2374 = vmatprep.subr.mxu0 0.0
    %2375 = vmatpush1.msra.mxu0 0.0
    %2376 = vmatprep.subr.mxu0 0.0
    %2377 = vmatpush1.msra.mxu0 0.0
    %2378 = vmatprep.subr.mxu0 0.0
    %2379 = vmatpush1.msra.mxu0 0.0
    %2380 = vmatprep.subr.mxu0 0.0
    %2381 = vmatpush1.msra.mxu0 0.0
    %2382 = vmatprep.subr.mxu0 0.0
    %2383 = vmatpush1.msra.mxu0 0.0
    %2384 = vmatprep.subr.mxu0 0.0
    %2385 = vmatpush1.msra.mxu0 0.0
    %2386 = vmatprep.subr.mxu0 0.0
    %2387 = vmatpush1.msra.mxu0 0.0
    %2388 = vmatprep.subr.mxu0 0.0
    %2389 = vmatpush1.msra.mxu0 0.0
    %2390 = vmatprep.subr.mxu0 0.0
    %2391 = vmatpush1.msra.mxu0 0.0
    %2392 = vmatprep.subr.mxu0 0.0
    %2393 = vmatpush1.msra.mxu0 0.0
    %2394 = vmatprep.subr.mxu0 0.0
    %2395 = vmatpush1.msra.mxu0 0.0
    %2396 = vmatprep.subr.mxu0 0.0
    %2397 = vmatpush1.msra.mxu0 0.0
    %2398 = vmatprep.subr.mxu0 0.0
    %2399 = vmatpush1.msra.mxu0 0.0
    %2400 = vmatprep.subr.mxu0 0.0
    %2401 = vmatpush1.msra.mxu0 0.0
    %2402 = vmatprep.subr.mxu0 0.0
    %2403 = vmatpush1.msra.mxu0 0.0
    %2404 = vmatprep.subr.mxu0 0.0
    %2405 = vmatpush1.msra.mxu0 0.0
    %2406 = vmatprep.subr.mxu0 0.0
    %2407 = vmatpush1.msra.mxu0 0.0
    %2408 = vmatprep.subr.mxu0 0.0
    %2409 = vmatpush1.msra.mxu0 0.0
    %2410 = vmatprep.subr.mxu0 0.0
    %2411 = vmatpush1.msra.mxu0 0.0
    %2412 = vmatprep.subr.mxu0 0.0
    %2413 = vmatpush1.msra.mxu0 0.0
    %2414 = vmatprep.subr.mxu0 0.0
    %2415 = vmatpush1.msra.mxu0 0.0
    %2416 = vmatprep.subr.mxu0 0.0
    %2417 = vmatpush1.msra.mxu0 0.0
    %2418 = vmatprep.subr.mxu0 0.0
    %2419 = vmatpush1.msra.mxu0 0.0
    %2420 = vmatprep.subr.mxu0 0.0
    %2421 = vmatpush1.msra.mxu0 0.0
    %2422 = vmatprep.mubr.f32.mxu0 0.0
    %2423 = vmatmul.mubr.f32.gmra.mrb[0].mxu0 %v2353
    %v2424 = vpop.f32.mrb[0].mxu0
    %v2425 = vadd.f32 %v2350, %v2424
    %v2426 = vpop.f32.mrb[0].mxu0
    %2427 = vmatprep.mubr.f32.mxu0 0.0
    %2428 = vmatmul.mubr.f32.gmra.mrb[0].mxu0 %v2356
    %v2429 = vpop.f32.mrb[0].mxu0
    %v2430 = vadd.f32 %v2350, %v2429
    %v2431 = vpop.f32.mrb[0].mxu0
    %2432 = vdwg.mxu0
    %v2433 = vxor.u32 %v2425, 2147483648
    %v2434 = vxor.u32 %v2430, 2147483648
    %v2435 = vmul.f32 %v2433, 1.442695
    %v2436 = vpow.pop %v2435
    %v2437 = vmul.f32 %v2434, 1.442695
    %v2438 = vpow.pop %v2437
    %v2439 = vadd.f32 %v2436, 1.0
    %v2440 = vadd.f32 %v2438, 1.0
    %v2441 = vrcp.pop %v2439
    %v2442 = vmul.f32 1.0, %v2441
    %v2443 = vrcp.pop %v2440
    %v2444 = vmul.f32 1.0, %v2443
    %2446 = vset.pattern.permute.xlu0 64
    %2447 = vperm.xlu0 %2446, %v2442
    %v2448 = vpop.permute.xlu0 %2447
    %2451 = vset.pattern.permute.xlu0 64
    %2452 = vperm.xlu0 %2451, %v2444
    %v2453 = vpop.permute.xlu0 %2452
    %v2455 = vmul.f32 %v2425, %v2448
    %v2456 = vmul.f32 %v2430, %v2453
    %v2457 = vmax.f32 %v2455, 0.0
    %v2458 = vmax.f32 %v2456, 0.0
    %s2459 = scalar_lea.vmem %s10, 64
    %v2460 = vld [vmem:[%s2459] sm:$0xff]
    %v2461 = vld [vmem:[%s2459 + $0x8] sm:$0xff]
    %v2462 = vld [vmem:[%s2459 + $0x10] sm:$0xff]
    %v2463 = vld [vmem:[%s2459 + $0x18] sm:$0xff]
    %v2464 = vld [vmem:[%s2459 + $0x20] sm:$0xff]
    %v2465 = vld [vmem:[%s2459 + $0x28] sm:$0xff]
    %v2466 = vld [vmem:[%s2459 + $0x30] sm:$0xff]
    %v2467 = vld [vmem:[%s2459 + $0x38] sm:$0xff]
    %s2468 = scalar_lea.vmem %s11, 1
    %v2469 = vld [vmem:[%s2468] sm:$0x1]
    %v2471 = vlaneseq
    %v2472 = vshrl.u32 %v2471, 7
    %v2473 = vsub.s32 0, %v2472
    %v2474 = vrot.slane %v2469, %v2473
    %v2477 = vsel %vm1213, %v2457, 0
    %v2480 = vsel %vm1213, %v2458, 0
    %2482 = vmatprep.subr.mxu0 0.0
    %2483 = vmatpush1.msra.mxu0 %v2460
    %2484 = vmatprep.subr.mxu0 0.0
    %2485 = vmatpush1.msra.mxu0 %v2461
    %2486 = vmatprep.subr.mxu0 0.0
    %2487 = vmatpush1.msra.mxu0 %v2462
    %2488 = vmatprep.subr.mxu0 0.0
    %2489 = vmatpush1.msra.mxu0 %v2463
    %2490 = vmatprep.subr.mxu0 0.0
    %2491 = vmatpush1.msra.mxu0 %v2464
    %2492 = vmatprep.subr.mxu0 0.0
    %2493 = vmatpush1.msra.mxu0 %v2465
    %2494 = vmatprep.subr.mxu0 0.0
    %2495 = vmatpush1.msra.mxu0 %v2466
    %2496 = vmatprep.subr.mxu0 0.0
    %2497 = vmatpush1.msra.mxu0 %v2467
    %2498 = vmatprep.subr.mxu0 0.0
    %2499 = vmatpush1.msra.mxu0 0.0
    %2500 = vmatprep.subr.mxu0 0.0
    %2501 = vmatpush1.msra.mxu0 0.0
    %2502 = vmatprep.subr.mxu0 0.0
    %2503 = vmatpush1.msra.mxu0 0.0
    %2504 = vmatprep.subr.mxu0 0.0
    %2505 = vmatpush1.msra.mxu0 0.0
    %2506 = vmatprep.subr.mxu0 0.0
    %2507 = vmatpush1.msra.mxu0 0.0
    %2508 = vmatprep.subr.mxu0 0.0
    %2509 = vmatpush1.msra.mxu0 0.0
    %2510 = vmatprep.subr.mxu0 0.0
    %2511 = vmatpush1.msra.mxu0 0.0
    %2512 = vmatprep.subr.mxu0 0.0
    %2513 = vmatpush1.msra.mxu0 0.0
    %2514 = vmatprep.subr.mxu0 0.0
    %2515 = vmatpush1.msra.mxu0 0.0
    %2516 = vmatprep.subr.mxu0 0.0
    %2517 = vmatpush1.msra.mxu0 0.0
    %2518 = vmatprep.subr.mxu0 0.0
    %2519 = vmatpush1.msra.mxu0 0.0
    %2520 = vmatprep.subr.mxu0 0.0
    %2521 = vmatpush1.msra.mxu0 0.0
    %2522 = vmatprep.subr.mxu0 0.0
    %2523 = vmatpush1.msra.mxu0 0.0
    %2524 = vmatprep.subr.mxu0 0.0
    %2525 = vmatpush1.msra.mxu0 0.0
    %2526 = vmatprep.subr.mxu0 0.0
    %2527 = vmatpush1.msra.mxu0 0.0
    %2528 = vmatprep.subr.mxu0 0.0
    %2529 = vmatpush1.msra.mxu0 0.0
    %2530 = vmatprep.subr.mxu0 0.0
    %2531 = vmatpush1.msra.mxu0 0.0
    %2532 = vmatprep.subr.mxu0 0.0
    %2533 = vmatpush1.msra.mxu0 0.0
    %2534 = vmatprep.subr.mxu0 0.0
    %2535 = vmatpush1.msra.mxu0 0.0
    %2536 = vmatprep.subr.mxu0 0.0
    %2537 = vmatpush1.msra.mxu0 0.0
    %2538 = vmatprep.subr.mxu0 0.0
    %2539 = vmatpush1.msra.mxu0 0.0
    %2540 = vmatprep.subr.mxu0 0.0
    %2541 = vmatpush1.msra.mxu0 0.0
    %2542 = vmatprep.subr.mxu0 0.0
    %2543 = vmatpush1.msra.mxu0 0.0
    %2544 = vmatprep.subr.mxu0 0.0
    %2545 = vmatpush1.msra.mxu0 0.0
    %2546 = vmatprep.mubr.f32.mxu0 0.0
    %2547 = vmatmul.mubr.f32.gmra.mrb[0].mxu0 %v2477
    %v2548 = vpop.f32.mrb[0].mxu0
    %v2549 = vadd.f32 %v2474, %v2548
    %v2550 = vpop.f32.mrb[0].mxu0
    %2551 = vmatprep.mubr.f32.mxu0 0.0
    %2552 = vmatmul.mubr.f32.gmra.mrb[0].mxu0 %v2480
    %v2553 = vpop.f32.mrb[0].mxu0
    %v2554 = vadd.f32 %v2474, %v2553
    %v2555 = vpop.f32.mrb[0].mxu0
    %2556 = vdwg.mxu0
    %v2557 = vadd.f32 %v2337, %v2549
    %v2558 = vadd.f32 %v2338, %v2554
    %s2559 = scalar_lea.vmem %s12, 1
    %v2560 = vld [vmem:[%s2559] sm:$0x1]
    %s2561 = scalar_lea.vmem %s13, 1
    %v2562 = vld [vmem:[%s2561] sm:$0x1]
    %v2563 = vsel %vm85, %v2557, 0.0
    %2564 = vadd.xlane.f32.xlu0 %v2563
    %v2565 = vpop.xlane.xlu0 %2564
    %v2566 = vsel %vm85, %v2558, 0.0
    %2567 = vadd.xlane.f32.xlu0 %v2566
    %v2568 = vpop.xlane.xlu0 %2567
    %v2569 = vmul.f32 %v2565, %v1043
    %v2570 = vmul.f32 %v2568, %v1043
    %v2571 = vsub.f32 %v2557, %v2569
    %v2572 = vsub.f32 %v2558, %v2570
    %v2573 = vmul.f32 %v2571, %v2571
    %v2574 = vmul.f32 %v2572, %v2572
    %v2575 = vsel %vm85, %v2573, 0.0
    %2576 = vadd.xlane.f32.xlu0 %v2575
    %v2577 = vpop.xlane.xlu0 %2576
    %v2578 = vsel %vm85, %v2574, 0.0
    %2579 = vadd.xlane.f32.xlu0 %v2578
    %v2580 = vpop.xlane.xlu0 %2579
    %v2581 = vmul.f32 %v2577, %v1043
    %v2582 = vmul.f32 %v2580, %v1043
    %v2583 = vadd.f32 %v2581, 1e-05
    %v2584 = vadd.f32 %v2582, 1e-05
    %v2585 = vrsqrt.pop %v2583
    %v2586 = vrsqrt.pop %v2584
    %v2587 = vmul.f32 %v2571, %v2585
    %v2588 = vmul.f32 %v2572, %v2586
    %v2590 = vlaneseq
    %v2591 = vshrl.u32 %v2590, 7
    %v2592 = vsub.s32 0, %v2591
    %v2593 = vrot.slane %v2560, %v2592
    %v2595 = vmul.f32 %v2587, %v2593
    %v2596 = vmul.f32 %v2588, %v2593
    %v2598 = vlaneseq
    %v2599 = vshrl.u32 %v2598, 7
    %v2600 = vsub.s32 0, %v2599
    %v2601 = vrot.slane %v2562, %v2600
    %v2603 = vadd.f32 %v2595, %v2601
    %v2604 = vadd.f32 %v2596, %v2601
    %2605 = vst.msk [vmem:[#allocation2] sm:$0xff] %vm85, %v2603
    %2606 = vst.msk [vmem:[#allocation2 + $0x8] sm:$0xff] %vm85, %v2604
    // Predicated region
    $region58: #{cm2_encoder.1} parent=1 // pred_check
      _
    $region59: #{cm2_encoder.1} parent=1 // pred_check_branch
      %2608 = sbr.rel (0) target = $region61
    $region60: #{cm2_encoder.1} parent=1 // pred_region
      %s2610 = ssub.s32 256, 256
      %2611 = vsyncadd [#allocation3], %s2610
      %s2612 = sshll.u32 [#allocation2], 4
      %s2613 = int_to_ptr.vmem [resolvable:$true] %s2612
      %2618 = dma.vmem_to_hbm [thread:$0]  %s2613, 256, %s14, [#allocation3], 128, 128, 8
    $region61: #{cm2_encoder.1} parent=1 // pred_fallthru
      _
    // Predicated region
    $region62: #{cm2_encoder.1} parent=1 // pred_check
      _
    $region63: #{cm2_encoder.1} parent=1 // pred_check_branch
      %2620 = sbr.rel (0) target = $region65
    $region64: #{cm2_encoder.1} parent=1 // pred_region
      %2621 = dma.done [#allocation3], 256
    $region65: #{cm2_encoder.1} parent=1 // pred_fallthru
      _
    %2622 = vsyncpa [#allocation3], 1

</llo_original>
